<compile_context>
chip_gen: v7x
topology: tpu7x:2x2x1
jax: 0.10.0
libtpu: 0.0.40
codegen_flags: <defaults>
</compile_context>

<pallas_src>
import functools

import jax
import jax.numpy as jnp
from jax import lax
from jax.experimental import pallas as pl
from jax.experimental.pallas import tpu as pltpu


def lowrank_inr_kernel(x_ref, g_ref, bmat_t_ref, w_enc_ref, b_enc_ref,
                       w_body_ref, b_body_ref, w_dec_ref, b_dec_ref,
                       o_ref, *, n_plain, compute_dtype, precision):
    dot = functools.partial(jnp.dot, preferred_element_type=jnp.float32,
                            precision=precision)

    # --- RFF phase on the VPU (degenerate K = dim_in contraction as broadcast FMAs) --
    xb = x_ref[...]                          # (dim_in, TN) f32
    bmt = bmat_t_ref[...]                    # (ff_half, dim_in) f32, 2*pi pre-folded
    dim_in = xb.shape[0]
    proj = bmt[:, 0:1] * xb[0:1, :]          # (ff_half, TN) f32
    for i in range(1, dim_in):
        proj = proj + bmt[:, i:i + 1] * xb[i:i + 1, :]

    # cos/sin in f32 on the EUP; single fused gamma = [cos; sin] along sublanes.
    gamma = jnp.concatenate([jnp.cos(proj), jnp.sin(proj)], axis=0)   # (ff_dim, TN)

    # --- encoder: one MXU pass, relu(W_enc @ gamma + b_enc) --------------------------
    h = jnp.maximum(
        dot(w_enc_ref[...], gamma.astype(compute_dtype)) + b_enc_ref[...], 0.0)

    # --- body[0]: low-rank modulated layer (G hoisted per batch; no bias) ------------
    h = jnp.maximum(dot(g_ref[...], h.astype(compute_dtype)), 0.0)    # (H, TN)

    # --- remaining plain INR layers ---------------------------------------------------
    # TODO(synk): if n_plain grows past ~8, switch to a grid axis so activation live
    # ranges stay bounded at large TN.
    if n_plain > 0:
        def body(i, hh):
            z = dot(w_body_ref[i], hh.astype(compute_dtype)) + b_body_ref[i]
            return jnp.maximum(z, 0.0)
        h = lax.fori_loop(0, n_plain, body, h, unroll=True)

    # --- decoder: lane-dense (dim_out, TN) store; out_bias already folded into b_dec --
    o_ref[...] = (dot(w_dec_ref[...], h.astype(compute_dtype))
                  + b_dec_ref[...]).astype(o_ref.dtype)


def _pick_tile(N, B, tn):
    """Lane-dense point tile; keep >= 2 grid steps when B == 1 (v7x megacore)."""
    tn = max(128, (int(tn) // 128) * 128)
    if N <= tn:
        tn = N                       # full axis: allowed even if not a multiple of 128
    if B == 1 and tn == N and N >= 256:
        tn = max(128, ((N // 2) // 128) * 128)
    return tn


def lowrank_inr_forward(x, v_mat, params, *, out_bias, tn=2048,
                        compute_dtype=jnp.bfloat16, precision=None,
                        out_dtype=jnp.float32, channel_major_output=False,
                        stream_buffers=2,
                        vmem_limit_bytes=32 * 1024 * 1024):
    B, N, dim_in = x.shape
    H = v_mat.shape[2]
    ff_half = params["bmat"].shape[1]
    ff_dim = 2 * ff_half
    dim_out = params["w_dec"].shape[0]
    n_plain = int(params["w_body"].shape[0])

    tn = _pick_tile(N, B, tn)
    n_tiles = pl.cdiv(N, tn)

    # ---- hoisted prep (cheap XLA ops; no big intermediate streams) -------------------
    xt = jnp.transpose(x, (0, 2, 1)).astype(jnp.float32)            # (B, dim_in, N)
    bmat_t = ((2.0 * jnp.pi)
              * jnp.transpose(params["bmat"]).astype(jnp.float32))  # (ff_half, dim_in)
    g_mod = jnp.einsum("or,bri->boi", params["w_lr"],
                       v_mat).astype(compute_dtype)                 # (B, H, H)

    w_enc = params["w_enc"].astype(compute_dtype)                   # (H, ff_dim)
    b_enc = jnp.reshape(params["b_enc"], (-1,)).astype(jnp.float32)[:, None]
    assert w_enc.shape == (H, ff_dim) and b_enc.shape == (H, 1)

    if n_plain > 0:
        w_body = params["w_body"].astype(compute_dtype)             # (P, H, H)
        b_body = jnp.reshape(params["b_body"],
                             (n_plain, H)).astype(jnp.float32)[:, :, None]
    else:  # dummies (statically skipped in the kernel)
        w_body = jnp.zeros((1, H, H), compute_dtype)
        b_body = jnp.zeros((1, H, 1), jnp.float32)

    w_dec = params["w_dec"].astype(compute_dtype)                   # (dim_out, H)
    b_dec = (jnp.reshape(params["b_dec"], (-1,)).astype(jnp.float32)
             + jnp.asarray(out_bias, jnp.float32))[:, None]         # out_bias folded in
    assert b_dec.shape == (dim_out, 1)

    sq = pl.Squeezed()

    def resident(arr):   # full array, constant block index -> stays VMEM-resident
        return pl.BlockSpec(arr.shape, lambda b, n, _nd=arr.ndim: (0,) * _nd)

    x_idx = lambda b, n: (b, 0, n)
    if stream_buffers is not None and stream_buffers != 2:
        x_spec = pl.BlockSpec((sq, dim_in, tn), x_idx,
                              pipeline_mode=pl.Buffered(int(stream_buffers)))
    else:
        x_spec = pl.BlockSpec((sq, dim_in, tn), x_idx)

    kernel = functools.partial(lowrank_inr_kernel, n_plain=n_plain,
                               compute_dtype=compute_dtype, precision=precision)

    out_t = pl.pallas_call(
        kernel,
        out_shape=jax.ShapeDtypeStruct((B, dim_out, N), out_dtype),
        grid_spec=pltpu.PrefetchScalarGridSpec(
            num_scalar_prefetch=0,
            grid=(B, n_tiles),
            in_specs=[
                x_spec,                                              # streamed x tile
                pl.BlockSpec((sq, H, H), lambda b, n: (b, 0, 0)),    # G per batch
                resident(bmat_t), resident(w_enc), resident(b_enc),
                resident(w_body), resident(b_body),
                resident(w_dec), resident(b_dec),
            ],
            out_specs=pl.BlockSpec((sq, dim_out, tn), lambda b, n: (b, 0, n)),
        ),
        compiler_params=pltpu.CompilerParams(
            dimension_semantics=("parallel", "parallel"),
            vmem_limit_bytes=vmem_limit_bytes),
    )(xt, g_mod, bmat_t, w_enc, b_enc, w_body, b_body, w_dec, b_dec)

    if channel_major_output:
        return out_t                                                 # (B, dim_out, N)
    # Module semantics: (B, N, dim_out). Consumers chasing bandwidth should take the
    # channel-major output (or out_dtype=bf16) to remove / halve this extra XLA pass.
    return jnp.transpose(out_t, (0, 2, 1))


def reference_forward(x, v_mat, p, *, out_bias, compute_dtype=jnp.float32,
                      precision=None):
    """Pure-JAX replica of LowRankINR.lowrank_modulated_forward.

    With compute_dtype != f32 it mirrors the kernel's GEMM casts (operands in
    compute_dtype, f32 accumulation) so the comparison is apples-to-apples.
    """
    cd = compute_dtype
    ein = functools.partial(jnp.einsum, preferred_element_type=jnp.float32,
                            precision=precision)
    proj = (2.0 * jnp.pi) * jnp.einsum("bni,if->bnf", x, p["bmat"])
    ff = jnp.concatenate([jnp.cos(proj), jnp.sin(proj)], axis=-1)
    h = jax.nn.relu(ein("bnf,hf->bnh", ff.astype(cd), p["w_enc"].astype(cd))
                    + jnp.reshape(p["b_enc"], (-1,)))
    G = jnp.einsum("or,bri->boi", p["w_lr"], v_mat).astype(cd)
    h = jax.nn.relu(ein("bni,boi->bno", h.astype(cd), G))
    for i in range(p["w_body"].shape[0]):
        h = jax.nn.relu(ein("bni,oi->bno", h.astype(cd), p["w_body"][i].astype(cd))
                        + jnp.reshape(p["b_body"][i], (-1,)))
    return (ein("bni,oi->bno", h.astype(cd), p["w_dec"].astype(cd))
            + jnp.reshape(p["b_dec"], (-1,)) + out_bias)


if __name__ == "__main__":
    # Small shapes consistent with the module (dim_in = 2D coordinates).
    B, N = 2, 512
    dim_in, dim_out, dim_hidden = 2, 3, 32
    num_layers, rank, ff_dim, sigma, out_bias = 5, 4, 32, 10.0, 0.5
    n_plain = num_layers - 3          # plain INRLayers after the low-rank one

    key = jax.random.PRNGKey(0)
    ks = jax.random.split(key, 12)

    def uinit(k, shape, fan_in):
        bound = 1.0 / jnp.sqrt(jnp.float32(fan_in))
        return jax.random.uniform(k, shape, jnp.float32, -bound, bound)

    params = {
        # RandomFourierFeatures projection matrix, entries ~ N(0, sigma^2)
        "bmat": sigma * jax.random.normal(ks[0], (dim_in, ff_dim // 2), jnp.float32),
        # encoder Linear(ff_dim -> dim_hidden)
        "w_enc": uinit(ks[1], (dim_hidden, ff_dim), ff_dim),
        "b_enc": uinit(ks[2], (1, dim_hidden), ff_dim),
        # LowRankINRLayer Linear(rank -> dim_hidden)  (its bias is unused in forward)
        "w_lr": uinit(ks[3], (dim_hidden, rank), rank),
        # plain body INRLayers (stacked)
        "w_body": uinit(ks[4], (n_plain, dim_hidden, dim_hidden), dim_hidden),
        "b_body": uinit(ks[5], (n_plain, dim_hidden), dim_hidden),
        # decoder Linear(dim_hidden -> dim_out)
        "w_dec": uinit(ks[6], (dim_out, dim_hidden), dim_hidden),
        "b_dec": uinit(ks[7], (1, dim_out), dim_hidden),
    }

    x = jax.random.uniform(ks[8], (B, N, dim_in), jnp.float32, -1.0, 1.0)
    v_mat = jax.random.normal(ks[9], (B, rank, dim_hidden), jnp.float32)

    # --- f32 compute path, remainder tile (tn=384 -> tiles of 384 + clipped 128) -----
    ref32 = reference_forward(x, v_mat, params, out_bias=out_bias,
                              compute_dtype=jnp.float32)
    out32 = lowrank_inr_forward(x, v_mat, params, out_bias=out_bias, tn=384,
                                compute_dtype=jnp.float32)
    out32 = jax.block_until_ready(out32)
    assert out32.shape == (B, N, dim_out)
    assert jnp.allclose(out32, ref32, atol=2e-3, rtol=2e-3), "f32 mismatch vs ref"

    # --- bf16 GEMM path (default), default large tile ---------------------------------
    # Tolerance is looser here: the in-kernel VPU phase and XLA's reference phase differ
    # by a few f32 ULPs, which occasionally flips bf16 rounding of cos/sin at the casts.
    refbf = reference_forward(x, v_mat, params, out_bias=out_bias,
                              compute_dtype=jnp.bfloat16)
    outbf = jax.block_until_ready(
        lowrank_inr_forward(x, v_mat, params, out_bias=out_bias))
    assert outbf.shape == (B, N, dim_out)
    assert jnp.allclose(outbf, refbf, atol=3e-2, rtol=3e-2), "bf16 mismatch vs ref"

    # --- channel-major output (skips the post-kernel transpose entirely) --------------
    out_cm = jax.block_until_ready(
        lowrank_inr_forward(x, v_mat, params, out_bias=out_bias,
                            channel_major_output=True))
    assert out_cm.shape == (B, dim_out, N)
    assert jnp.allclose(jnp.transpose(out_cm, (0, 2, 1)), refbf,
                        atol=3e-2, rtol=3e-2), "channel-major mismatch vs ref"

    # --- B == 1: tile capping keeps >= 2 parallel grid steps (v7x megacore path) ------
    out_b1 = jax.block_until_ready(
        lowrank_inr_forward(x[:1], v_mat[:1], params, out_bias=out_bias))
    assert out_b1.shape == (1, N, dim_out)
    assert jnp.allclose(out_b1, refbf[:1], atol=3e-2, rtol=3e-2), "B==1 mismatch vs ref"

    print("KERNEL_OK")
</pallas_src>

<mosaic_0001>
module attributes {stable_mosaic.version = 11 : i64} {
  func.func @lowrank_inr_kernel(%arg0: i32, %arg1: i32, %arg2: memref<1x2x384xf32, #tpu.memory_space<vmem>>, %arg3: memref<1x32x32xf32, #tpu.memory_space<vmem>>, %arg4: memref<16x2xf32, #tpu.memory_space<vmem>>, %arg5: memref<32x32xf32, #tpu.memory_space<vmem>>, %arg6: memref<32x1xf32, #tpu.memory_space<vmem>>, %arg7: memref<2x32x32xf32, #tpu.memory_space<vmem>>, %arg8: memref<2x32x1xf32, #tpu.memory_space<vmem>>, %arg9: memref<3x32xf32, #tpu.memory_space<vmem>>, %arg10: memref<3x1xf32, #tpu.memory_space<vmem>>, %arg11: memref<1x3x384xf32, #tpu.memory_space<vmem>>) attributes {dimension_semantics = [#tpu.dimension_semantics<parallel>, #tpu.dimension_semantics<parallel>], iteration_bounds = array<i64: 2, 2>, scalar_prefetch = 0 : i64, scratch_operands = 0 : i64, tpu.core_type = #tpu.core_type<tc>, window_params = [{transform_indices = @transform_0, window_bounds = array<i64: 1, 2, 384>}, {transform_indices = @transform_1, window_bounds = array<i64: 1, 32, 32>}, {pipeline_mode = #tpu.pipeline_mode<synchronous>, transform_indices = @transform_2, window_bounds = array<i64: 16, 2>}, {pipeline_mode = #tpu.pipeline_mode<synchronous>, transform_indices = @transform_3, window_bounds = array<i64: 32, 32>}, {pipeline_mode = #tpu.pipeline_mode<synchronous>, transform_indices = @transform_4, window_bounds = array<i64: 32, 1>}, {pipeline_mode = #tpu.pipeline_mode<synchronous>, transform_indices = @transform_5, window_bounds = array<i64: 2, 32, 32>}, {pipeline_mode = #tpu.pipeline_mode<synchronous>, transform_indices = @transform_6, window_bounds = array<i64: 2, 32, 1>}, {pipeline_mode = #tpu.pipeline_mode<synchronous>, transform_indices = @transform_7, window_bounds = array<i64: 3, 32>}, {pipeline_mode = #tpu.pipeline_mode<synchronous>, transform_indices = @transform_8, window_bounds = array<i64: 3, 1>}, {transform_indices = @transform_9, window_bounds = array<i64: 1, 3, 384>}]} {
    %c0 = arith.constant 0 : index
    %c0_0 = arith.constant 0 : index
    %c0_1 = arith.constant 0 : index
    %0 = vector.load %arg2[%c0, %c0_0, %c0_1] : memref<1x2x384xf32, #tpu.memory_space<vmem>>, vector<1x2x384xf32>
    %1 = vector.shape_cast %0 : vector<1x2x384xf32> to vector<2x384xf32>
    %c0_2 = arith.constant 0 : index
    %c0_3 = arith.constant 0 : index
    %2 = vector.load %arg4[%c0_2, %c0_3] : memref<16x2xf32, #tpu.memory_space<vmem>>, vector<16x2xf32>
    %3 = vector.extract_strided_slice %2 {offsets = [0, 0], sizes = [16, 1], strides = [1, 1]} : vector<16x2xf32> to vector<16x1xf32>
    %4 = vector.extract_strided_slice %1 {offsets = [0, 0], sizes = [1, 384], strides = [1, 1]} : vector<2x384xf32> to vector<1x384xf32>
    %5 = vector.broadcast %3 : vector<16x1xf32> to vector<16x384xf32>
    %6 = vector.broadcast %4 : vector<1x384xf32> to vector<16x384xf32>
    %7 = arith.mulf %5, %6 : vector<16x384xf32>
    %8 = vector.extract_strided_slice %2 {offsets = [0, 1], sizes = [16, 1], strides = [1, 1]} : vector<16x2xf32> to vector<16x1xf32>
    %9 = vector.extract_strided_slice %1 {offsets = [1, 0], sizes = [1, 384], strides = [1, 1]} : vector<2x384xf32> to vector<1x384xf32>
    %10 = vector.broadcast %8 : vector<16x1xf32> to vector<16x384xf32>
    %11 = vector.broadcast %9 : vector<1x384xf32> to vector<16x384xf32>
    %12 = arith.mulf %10, %11 : vector<16x384xf32>
    %13 = arith.addf %7, %12 : vector<16x384xf32>
    %14 = math.cos %13 : vector<16x384xf32>
    %15 = math.sin %13 : vector<16x384xf32>
    %16 = tpu.concatenate %14, %15 in 0 : vector<16x384xf32>, vector<16x384xf32> -> vector<32x384xf32>
    %c0_4 = arith.constant 0 : index
    %c0_5 = arith.constant 0 : index
    %17 = vector.load %arg5[%c0_4, %c0_5] : memref<32x32xf32, #tpu.memory_space<vmem>>, vector<32x32xf32>
    %cst = arith.constant dense<0.000000e+00> : vector<32x384xf32>
    %18 = tpu.matmul %17, %16, %cst {dimension_numbers = #tpu.dot_dimension_numbers<[1], [0], [0], [1], [0, 0, 1, 1], [], []>} : vector<32x32xf32>, vector<32x384xf32>, vector<32x384xf32> -> vector<32x384xf32>
    %c0_6 = arith.constant 0 : index
    %c0_7 = arith.constant 0 : index
    %19 = vector.load %arg6[%c0_6, %c0_7] : memref<32x1xf32, #tpu.memory_space<vmem>>, vector<32x1xf32>
    %20 = vector.broadcast %19 : vector<32x1xf32> to vector<32x384xf32>
    %21 = arith.addf %18, %20 : vector<32x384xf32>
    %cst_8 = arith.constant 0.000000e+00 : f32
    %22 = vector.broadcast %cst_8 : f32 to vector<32x384xf32>
    %23 = arith.maximumf %21, %22 : vector<32x384xf32>
    %c0_9 = arith.constant 0 : index
    %c0_10 = arith.constant 0 : index
    %c0_11 = arith.constant 0 : index
    %24 = vector.load %arg3[%c0_9, %c0_10, %c0_11] : memref<1x32x32xf32, #tpu.memory_space<vmem>>, vector<1x32x32xf32>
    %25 = vector.shape_cast %24 : vector<1x32x32xf32> to vector<32x32xf32>
    %cst_12 = arith.constant dense<0.000000e+00> : vector<32x384xf32>
    %26 = tpu.matmul %25, %23, %cst_12 {dimension_numbers = #tpu.dot_dimension_numbers<[1], [0], [0], [1], [0, 0, 1, 1], [], []>} : vector<32x32xf32>, vector<32x384xf32>, vector<32x384xf32> -> vector<32x384xf32>
    %cst_13 = arith.constant 0.000000e+00 : f32
    %27 = vector.broadcast %cst_13 : f32 to vector<32x384xf32>
    %28 = arith.maximumf %26, %27 : vector<32x384xf32>
    %c0_i32 = arith.constant 0 : i32
    %29 = arith.index_cast %c0_i32 : i32 to index
    %c0_14 = arith.constant 0 : index
    %c0_15 = arith.constant 0 : index
    %30 = vector.load %arg7[%29, %c0_14, %c0_15] : memref<2x32x32xf32, #tpu.memory_space<vmem>>, vector<1x32x32xf32>
    %31 = vector.shape_cast %30 : vector<1x32x32xf32> to vector<32x32xf32>
    %cst_16 = arith.constant dense<0.000000e+00> : vector<32x384xf32>
    %32 = tpu.matmul %31, %28, %cst_16 {dimension_numbers = #tpu.dot_dimension_numbers<[1], [0], [0], [1], [0, 0, 1, 1], [], []>} : vector<32x32xf32>, vector<32x384xf32>, vector<32x384xf32> -> vector<32x384xf32>
    %33 = arith.index_cast %c0_i32 : i32 to index
    %c0_17 = arith.constant 0 : index
    %c0_18 = arith.constant 0 : index
    %34 = vector.load %arg8[%33, %c0_17, %c0_18] : memref<2x32x1xf32, #tpu.memory_space<vmem>>, vector<1x32x1xf32>
    %35 = vector.shape_cast %34 : vector<1x32x1xf32> to vector<32x1xf32>
    %36 = vector.broadcast %35 : vector<32x1xf32> to vector<32x384xf32>
    %37 = arith.addf %32, %36 : vector<32x384xf32>
    %cst_19 = arith.constant 0.000000e+00 : f32
    %38 = vector.broadcast %cst_19 : f32 to vector<32x384xf32>
    %39 = arith.maximumf %37, %38 : vector<32x384xf32>
    %c1_i32 = arith.constant 1 : i32
    %40 = arith.index_cast %c1_i32 : i32 to index
    %c0_20 = arith.constant 0 : index
    %c0_21 = arith.constant 0 : index
    %41 = vector.load %arg7[%40, %c0_20, %c0_21] : memref<2x32x32xf32, #tpu.memory_space<vmem>>, vector<1x32x32xf32>
    %42 = vector.shape_cast %41 : vector<1x32x32xf32> to vector<32x32xf32>
    %cst_22 = arith.constant dense<0.000000e+00> : vector<32x384xf32>
    %43 = tpu.matmul %42, %39, %cst_22 {dimension_numbers = #tpu.dot_dimension_numbers<[1], [0], [0], [1], [0, 0, 1, 1], [], []>} : vector<32x32xf32>, vector<32x384xf32>, vector<32x384xf32> -> vector<32x384xf32>
    %44 = arith.index_cast %c1_i32 : i32 to index
    %c0_23 = arith.constant 0 : index
    %c0_24 = arith.constant 0 : index
    %45 = vector.load %arg8[%44, %c0_23, %c0_24] : memref<2x32x1xf32, #tpu.memory_space<vmem>>, vector<1x32x1xf32>
    %46 = vector.shape_cast %45 : vector<1x32x1xf32> to vector<32x1xf32>
    %47 = vector.broadcast %46 : vector<32x1xf32> to vector<32x384xf32>
    %48 = arith.addf %43, %47 : vector<32x384xf32>
    %cst_25 = arith.constant 0.000000e+00 : f32
    %49 = vector.broadcast %cst_25 : f32 to vector<32x384xf32>
    %50 = arith.maximumf %48, %49 : vector<32x384xf32>
    %c2_i32 = arith.constant 2 : i32
    %c0_26 = arith.constant 0 : index
    %c0_27 = arith.constant 0 : index
    %51 = vector.load %arg9[%c0_26, %c0_27] : memref<3x32xf32, #tpu.memory_space<vmem>>, vector<3x32xf32>
    %cst_28 = arith.constant dense<0.000000e+00> : vector<3x384xf32>
    %52 = tpu.matmul %51, %50, %cst_28 {dimension_numbers = #tpu.dot_dimension_numbers<[1], [0], [0], [1], [0, 0, 1, 1], [], []>} : vector<3x32xf32>, vector<32x384xf32>, vector<3x384xf32> -> vector<3x384xf32>
    %c0_29 = arith.constant 0 : index
    %c0_30 = arith.constant 0 : index
    %53 = vector.load %arg10[%c0_29, %c0_30] : memref<3x1xf32, #tpu.memory_space<vmem>>, vector<3x1xf32>
    %54 = vector.broadcast %53 : vector<3x1xf32> to vector<3x384xf32>
    %55 = arith.addf %52, %54 : vector<3x384xf32>
    %c0_31 = arith.constant 0 : index
    %c0_32 = arith.constant 0 : index
    %c0_33 = arith.constant 0 : index
    %56 = vector.load %arg11[%c0_31, %c0_32, %c0_33] : memref<1x3x384xf32, #tpu.memory_space<vmem>>, vector<1x3x384xf32>
    %57 = vector.shape_cast %56 : vector<1x3x384xf32> to vector<3x384xf32>
    %58 = vector.shape_cast %55 : vector<3x384xf32> to vector<1x3x384xf32>
    tpu.vector_store %arg11[%c0_31, %c0_32, %c0_33], %58 {strides = array<i32>} : memref<1x3x384xf32, #tpu.memory_space<vmem>>, vector<1x3x384xf32>,
    return
  }
  func.func @transform_0(%arg0: i32, %arg1: i32) -> (i32, i32, i32) {
    %c0_i32 = arith.constant 0 : i32
    %c0_i32_0 = arith.constant 0 : i32
    return %arg0, %c0_i32, %arg1 : i32, i32, i32
  }
  func.func @transform_1(%arg0: i32, %arg1: i32) -> (i32, i32, i32) {
    %c0_i32 = arith.constant 0 : i32
    %c0_i32_0 = arith.constant 0 : i32
    %c0_i32_1 = arith.constant 0 : i32
    return %arg0, %c0_i32, %c0_i32_0 : i32, i32, i32
  }
  func.func @transform_2(%arg0: i32, %arg1: i32) -> (i32, i32) {
    %c0_i32 = arith.constant 0 : i32
    %c0_i32_0 = arith.constant 0 : i32
    %c0_i32_1 = arith.constant 0 : i32
    return %c0_i32, %c0_i32_0 : i32, i32
  }
  func.func @transform_3(%arg0: i32, %arg1: i32) -> (i32, i32) {
    %c0_i32 = arith.constant 0 : i32
    %c0_i32_0 = arith.constant 0 : i32
    %c0_i32_1 = arith.constant 0 : i32
    return %c0_i32, %c0_i32_0 : i32, i32
  }
  func.func @transform_4(%arg0: i32, %arg1: i32) -> (i32, i32) {
    %c0_i32 = arith.constant 0 : i32
    %c0_i32_0 = arith.constant 0 : i32
    %c0_i32_1 = arith.constant 0 : i32
    return %c0_i32, %c0_i32_0 : i32, i32
  }
  func.func @transform_5(%arg0: i32, %arg1: i32) -> (i32, i32, i32) {
    %c0_i32 = arith.constant 0 : i32
    %c0_i32_0 = arith.constant 0 : i32
    %c0_i32_1 = arith.constant 0 : i32
    %c0_i32_2 = arith.constant 0 : i32
    return %c0_i32, %c0_i32_0, %c0_i32_1 : i32, i32, i32
  }
  func.func @transform_6(%arg0: i32, %arg1: i32) -> (i32, i32, i32) {
    %c0_i32 = arith.constant 0 : i32
    %c0_i32_0 = arith.constant 0 : i32
    %c0_i32_1 = arith.constant 0 : i32
    %c0_i32_2 = arith.constant 0 : i32
    return %c0_i32, %c0_i32_0, %c0_i32_1 : i32, i32, i32
  }
  func.func @transform_7(%arg0: i32, %arg1: i32) -> (i32, i32) {
    %c0_i32 = arith.constant 0 : i32
    %c0_i32_0 = arith.constant 0 : i32
    %c0_i32_1 = arith.constant 0 : i32
    return %c0_i32, %c0_i32_0 : i32, i32
  }
  func.func @transform_8(%arg0: i32, %arg1: i32) -> (i32, i32) {
    %c0_i32 = arith.constant 0 : i32
    %c0_i32_0 = arith.constant 0 : i32
    %c0_i32_1 = arith.constant 0 : i32
    return %c0_i32, %c0_i32_0 : i32, i32
  }
  func.func @transform_9(%arg0: i32, %arg1: i32) -> (i32, i32, i32) {
    %c0_i32 = arith.constant 0 : i32
    %c0_i32_0 = arith.constant 0 : i32
    return %arg0, %c0_i32, %arg1 : i32, i32, i32
  }
}

</mosaic_0001>

<llo_original>
// kernel: tpu_custom_call.1
$region0: #{tpu_custom_call.1}
  #allocation0 [shape = 'u32[]', space=smem, size = 0x4, offset = 0x4, fixed_abs, tag = 'smem constant byte address 0x4 - core index']
  #allocation1 [shape = 'u32[144,128]{1,0:T(1,128)}', space=vmem, size = 0x12000, scoped, tag = 'internal scratch']
  %s0 = inlined_call_operand.hbm [shape: f32[2,2,512], index: 0, kind: input, shape index: {}]
  %s1 = inlined_call_operand.vmem [shape: f32[2,32,32], index: 1, kind: input, shape index: {}]
  %s2 = inlined_call_operand.vmem [shape: f32[16,2], index: 2, kind: input, shape index: {}]
  %s3 = inlined_call_operand.hbm [shape: f32[32,32], index: 3, kind: input, shape index: {}]
  %s4 = inlined_call_operand.vmem [shape: f32[32,1], index: 4, kind: input, shape index: {}]
  %s5 = inlined_call_operand.vmem [shape: f32[2,32,32], index: 5, kind: input, shape index: {}]
  %s6 = inlined_call_operand.vmem [shape: f32[2,32,1], index: 6, kind: input, shape index: {}]
  %s7 = inlined_call_operand.vmem [shape: f32[3,32], index: 7, kind: input, shape index: {}]
  %s8 = inlined_call_operand.vmem [shape: f32[3,1], index: 8, kind: input, shape index: {}]
  %s9 = inlined_call_operand.vmem [shape: f32[2,3,512], index: 9, kind: output, shape index: {}]
  %s10 = sld [smem:[#allocation0]]
  $region139: #{tpu_custom_call.1} parent=0
    _
  %s12 = ssub.s32 1, %s10
  %s13 = scalar_select 0, %s12, %s10
  $region1: #{tpu_custom_call.1} parent=0
    #allocation2 [shape = 'u8[6144]{0}', space=vmem, size = 0x1800, scoped, tag = 'input window, operand 0']
    #allocation3 [shape = 's32[2]{0}', space=sflag, size = 0x8, scoped, tag = 'scoped memory for tpu_custom_call.1']
    #allocation4 [shape = 'u8[16384]{0}', space=vmem, size = 0x4000, scoped, tag = 'input window, operand 3, single buffered']
    #allocation5 [shape = 's32[1]{0}', space=sflag, size = 0x4, scoped, tag = 'scoped memory for tpu_custom_call.1']
    #allocation6 [shape = 'u8[12288]{0}', space=vmem, size = 0x3000, scoped, tag = 'output window, operand 0']
    %14 = vsyncpa [#allocation3], 0
    %s15 = scalar_lea.sflag [#allocation3], 1
    %16 = vsyncpa %s15, 0
    %17 = vsyncpa [#allocation5], 0
    loop: start=0, step=1, limit=6
    $region2: #{tpu_custom_call.1} parent=1 // loop_pre_header
      _
    $region3: #{tpu_custom_call.1} parent=1 // loop_header
      %s19 = sphi 0, %s23
      %p20 = scmp.ge.s32.totalorder %s19, 6
      %s26 = sphi 0, %s38
      %s27 = sphi 0, %s34
      %s28 = sphi 0, %s26
      %s29 = sphi 0, %s27
      %s30 = sphi 0, %s28
      %s31 = sphi 0, %s29
      %s43 = sphi 0, %s45
      %s46 = sphi 0, %s43
      %s47 = sphi 0, %s46
      %s63 = sphi 0, %s47
      %s69 = sphi 0, %s71
      %s72 = sphi 0, %s69
      %s73 = sphi 0, %s72
      %s89 = sphi 0, %s73
      %s93 = sphi 0, %s93
      %s95 = sphi 0, %s93
      %s96 = sphi 0, %s95
      %s110 = sphi 0, %s96
      %s114 = sphi 0, %s114
      %s116 = sphi 0, %s114
      %s117 = sphi 0, %s116
      %s131 = sphi 0, %s117
      %s135 = sphi 0, %s135
      %s137 = sphi 0, %s135
      %s138 = sphi 0, %s137
      %s152 = sphi 0, %s138
      %s156 = sphi 0, %s156
      %s158 = sphi 0, %s156
      %s159 = sphi 0, %s158
      %s173 = sphi 0, %s159
      %s177 = sphi 0, %s177
      %s179 = sphi 0, %s177
      %s180 = sphi 0, %s179
      %s194 = sphi 0, %s180
      %s198 = sphi 0, %s198
      %s200 = sphi 0, %s198
      %s201 = sphi 0, %s200
      %s215 = sphi 0, %s201
      %s219 = sphi 0, %s219
      %s221 = sphi 0, %s219
      %s222 = sphi 0, %s221
      %s236 = sphi 0, %s222
      %s244 = sphi 0, %s246
      %s247 = sphi 0, %s244
      %s248 = sphi 0, %s247
      %s264 = sphi 0, %s248
    $region4: #{tpu_custom_call.1} parent=1 // loop_header_branch
      %22 = sbr.rel (%p20) target = $region8
    $region5: #{tpu_custom_call.1} parent=1 // loop_body
      %s24 = ssub.s32 %s19, 1
      %s25 = ssub.s32 %s19, 2
      %s32 = sadd.s32 1, %s27
      %p33 = scmp.ge.s32.totalorder %s32, 2
      %s34 = scalar_select %p33, 0, %s32
      %s35 = sadd.s32 1, %s26
      %s36 = scalar_select %p33, %s35, %s26
      %p37 = scmp.ge.s32.totalorder %s36, 2
      %s38 = scalar_select %p37, 0, %s36
      %s39 = ssub.s32 %s26, %s38
      %s40 = ssub.s32 %s27, %s34
      %s41 = sor.u32 %s39, %s40
      %p42 = scmp.eq.s32.totalorder %s41, 0
      %s44 = sadd.s32 %s43, 1
      %s45 = scalar_select %p42, %s43, %s44
      %p48 = pneg %p42
      %p49 = scmp.eq.s32.totalorder %s19, 3
      %p50 = por %p48, %p49
      %p51 = scmp.ne.s32.totalorder %s43, %s46
      %p52 = scmp.eq.s32.totalorder %s19, 0
      %p53 = por %p51, %p52
      %p54 = scmp.ne.s32.totalorder %s43, %s46
      %p55 = scmp.eq.s32.totalorder %s24, 3
      %p56 = por %p54, %p55
      %p57 = scmp.ne.s32.totalorder %s46, %s47
      %p58 = scmp.eq.s32.totalorder %s24, 0
      %p59 = por %p57, %p58
      %p60 = scmp.ne.s32.totalorder %s46, %s47
      %p61 = scmp.eq.s32.totalorder %s25, 3
      %p62 = por %p60, %p61
      %p64 = scmp.ne.s32.totalorder %s47, %s63
      %p65 = scmp.eq.s32.totalorder %s25, 0
      %p66 = por %p64, %p65
      %s67 = ssub.s32 %s26, %s38
      %p68 = scmp.eq.s32.totalorder %s67, 0
      %s70 = sadd.s32 %s69, 1
      %s71 = scalar_select %p68, %s69, %s70
      %p74 = pneg %p68
      %p75 = scmp.eq.s32.totalorder %s19, 3
      %p76 = por %p74, %p75
      %p77 = scmp.ne.s32.totalorder %s69, %s72
      %p78 = scmp.eq.s32.totalorder %s19, 0
      %p79 = por %p77, %p78
      %p80 = scmp.ne.s32.totalorder %s69, %s72
      %p81 = scmp.eq.s32.totalorder %s24, 3
      %p82 = por %p80, %p81
      %p83 = scmp.ne.s32.totalorder %s72, %s73
      %p84 = scmp.eq.s32.totalorder %s24, 0
      %p85 = por %p83, %p84
      %p86 = scmp.ne.s32.totalorder %s72, %s73
      %p87 = scmp.eq.s32.totalorder %s25, 3
      %p88 = por %p86, %p87
      %p90 = scmp.ne.s32.totalorder %s73, %s89
      %p91 = scmp.eq.s32.totalorder %s25, 0
      %p92 = por %p90, %p91
      %s94 = sadd.s32 %s93, 1
      %p97 = scmp.eq.s32.totalorder %s19, 3
      %p98 = scmp.ne.s32.totalorder %s93, %s95
      %p99 = scmp.eq.s32.totalorder %s19, 0
      %p100 = por %p98, %p99
      %p101 = scmp.ne.s32.totalorder %s93, %s95
      %p102 = scmp.eq.s32.totalorder %s24, 3
      %p103 = por %p101, %p102
      %p104 = scmp.ne.s32.totalorder %s95, %s96
      %p105 = scmp.eq.s32.totalorder %s24, 0
      %p106 = por %p104, %p105
      %p107 = scmp.ne.s32.totalorder %s95, %s96
      %p108 = scmp.eq.s32.totalorder %s25, 3
      %p109 = por %p107, %p108
      %p111 = scmp.ne.s32.totalorder %s96, %s110
      %p112 = scmp.eq.s32.totalorder %s25, 0
      %p113 = por %p111, %p112
      %s115 = sadd.s32 %s114, 1
      %p118 = scmp.eq.s32.totalorder %s19, 3
      %p119 = scmp.ne.s32.totalorder %s114, %s116
      %p120 = scmp.eq.s32.totalorder %s19, 0
      %p121 = por %p119, %p120
      %p122 = scmp.ne.s32.totalorder %s114, %s116
      %p123 = scmp.eq.s32.totalorder %s24, 3
      %p124 = por %p122, %p123
      %p125 = scmp.ne.s32.totalorder %s116, %s117
      %p126 = scmp.eq.s32.totalorder %s24, 0
      %p127 = por %p125, %p126
      %p128 = scmp.ne.s32.totalorder %s116, %s117
      %p129 = scmp.eq.s32.totalorder %s25, 3
      %p130 = por %p128, %p129
      %p132 = scmp.ne.s32.totalorder %s117, %s131
      %p133 = scmp.eq.s32.totalorder %s25, 0
      %p134 = por %p132, %p133
      %s136 = sadd.s32 %s135, 1
      %p139 = scmp.eq.s32.totalorder %s19, 3
      %p140 = scmp.ne.s32.totalorder %s135, %s137
      %p141 = scmp.eq.s32.totalorder %s19, 0
      %p142 = por %p140, %p141
      %p143 = scmp.ne.s32.totalorder %s135, %s137
      %p144 = scmp.eq.s32.totalorder %s24, 3
      %p145 = por %p143, %p144
      %p146 = scmp.ne.s32.totalorder %s137, %s138
      %p147 = scmp.eq.s32.totalorder %s24, 0
      %p148 = por %p146, %p147
      %p149 = scmp.ne.s32.totalorder %s137, %s138
      %p150 = scmp.eq.s32.totalorder %s25, 3
      %p151 = por %p149, %p150
      %p153 = scmp.ne.s32.totalorder %s138, %s152
      %p154 = scmp.eq.s32.totalorder %s25, 0
      %p155 = por %p153, %p154
      %s157 = sadd.s32 %s156, 1
      %p160 = scmp.eq.s32.totalorder %s19, 3
      %p161 = scmp.ne.s32.totalorder %s156, %s158
      %p162 = scmp.eq.s32.totalorder %s19, 0
      %p163 = por %p161, %p162
      %p164 = scmp.ne.s32.totalorder %s156, %s158
      %p165 = scmp.eq.s32.totalorder %s24, 3
      %p166 = por %p164, %p165
      %p167 = scmp.ne.s32.totalorder %s158, %s159
      %p168 = scmp.eq.s32.totalorder %s24, 0
      %p169 = por %p167, %p168
      %p170 = scmp.ne.s32.totalorder %s158, %s159
      %p171 = scmp.eq.s32.totalorder %s25, 3
      %p172 = por %p170, %p171
      %p174 = scmp.ne.s32.totalorder %s159, %s173
      %p175 = scmp.eq.s32.totalorder %s25, 0
      %p176 = por %p174, %p175
      %s178 = sadd.s32 %s177, 1
      %p181 = scmp.eq.s32.totalorder %s19, 3
      %p182 = scmp.ne.s32.totalorder %s177, %s179
      %p183 = scmp.eq.s32.totalorder %s19, 0
      %p184 = por %p182, %p183
      %p185 = scmp.ne.s32.totalorder %s177, %s179
      %p186 = scmp.eq.s32.totalorder %s24, 3
      %p187 = por %p185, %p186
      %p188 = scmp.ne.s32.totalorder %s179, %s180
      %p189 = scmp.eq.s32.totalorder %s24, 0
      %p190 = por %p188, %p189
      %p191 = scmp.ne.s32.totalorder %s179, %s180
      %p192 = scmp.eq.s32.totalorder %s25, 3
      %p193 = por %p191, %p192
      %p195 = scmp.ne.s32.totalorder %s180, %s194
      %p196 = scmp.eq.s32.totalorder %s25, 0
      %p197 = por %p195, %p196
      %s199 = sadd.s32 %s198, 1
      %p202 = scmp.eq.s32.totalorder %s19, 3
      %p203 = scmp.ne.s32.totalorder %s198, %s200
      %p204 = scmp.eq.s32.totalorder %s19, 0
      %p205 = por %p203, %p204
      %p206 = scmp.ne.s32.totalorder %s198, %s200
      %p207 = scmp.eq.s32.totalorder %s24, 3
      %p208 = por %p206, %p207
      %p209 = scmp.ne.s32.totalorder %s200, %s201
      %p210 = scmp.eq.s32.totalorder %s24, 0
      %p211 = por %p209, %p210
      %p212 = scmp.ne.s32.totalorder %s200, %s201
      %p213 = scmp.eq.s32.totalorder %s25, 3
      %p214 = por %p212, %p213
      %p216 = scmp.ne.s32.totalorder %s201, %s215
      %p217 = scmp.eq.s32.totalorder %s25, 0
      %p218 = por %p216, %p217
      %s220 = sadd.s32 %s219, 1
      %p223 = scmp.eq.s32.totalorder %s19, 3
      %p224 = scmp.ne.s32.totalorder %s219, %s221
      %p225 = scmp.eq.s32.totalorder %s19, 0
      %p226 = por %p224, %p225
      %p227 = scmp.ne.s32.totalorder %s219, %s221
      %p228 = scmp.eq.s32.totalorder %s24, 3
      %p229 = por %p227, %p228
      %p230 = scmp.ne.s32.totalorder %s221, %s222
      %p231 = scmp.eq.s32.totalorder %s24, 0
      %p232 = por %p230, %p231
      %p233 = scmp.ne.s32.totalorder %s221, %s222
      %p234 = scmp.eq.s32.totalorder %s25, 3
      %p235 = por %p233, %p234
      %p237 = scmp.ne.s32.totalorder %s222, %s236
      %p238 = scmp.eq.s32.totalorder %s25, 0
      %p239 = por %p237, %p238
      %s240 = ssub.s32 %s26, %s38
      %s241 = ssub.s32 %s27, %s34
      %s242 = sor.u32 %s240, %s241
      %p243 = scmp.eq.s32.totalorder %s242, 0
      %s245 = sadd.s32 %s244, 1
      %s246 = scalar_select %p243, %s244, %s245
      %p249 = pneg %p243
      %p250 = scmp.eq.s32.totalorder %s19, 3
      %p251 = por %p249, %p250
      %p252 = scmp.ne.s32.totalorder %s244, %s247
      %p253 = scmp.eq.s32.totalorder %s19, 0
      %p254 = por %p252, %p253
      %p255 = scmp.ne.s32.totalorder %s244, %s247
      %p256 = scmp.eq.s32.totalorder %s24, 3
      %p257 = por %p255, %p256
      %p258 = scmp.ne.s32.totalorder %s247, %s248
      %p259 = scmp.eq.s32.totalorder %s24, 0
      %p260 = por %p258, %p259
      %p261 = scmp.ne.s32.totalorder %s247, %s248
      %p262 = scmp.eq.s32.totalorder %s25, 3
      %p263 = por %p261, %p262
      %p265 = scmp.ne.s32.totalorder %s248, %s264
      %p266 = scmp.eq.s32.totalorder %s25, 0
      %p267 = por %p265, %p266
      %p268 = scmp.le.s32.totalorder 1, %s19
      %p269 = scmp.lt.s32.totalorder %s19, 5
      %p270 = pnand %p268, %p269
      %p271 = pneg %p270
      // Predicated region
      $region9: #{tpu_custom_call.1} parent=5 // pred_check
        _
      $region10: #{tpu_custom_call.1} parent=5 // pred_check_branch
        %273 = sbr.rel (%p270) target = $region12
      $region11: #{tpu_custom_call.1} parent=5 // pred_region
        %s274 = ssub.s32 %s19, 1
        // Predicated region
        $region13: #{tpu_custom_call.1} parent=11 // pred_check
          %p275 = pneg %p106
        $region14: #{tpu_custom_call.1} parent=11 // pred_check_branch
          %277 = sbr.rel (%p275) target = $region16
        $region15: #{tpu_custom_call.1} parent=11 // pred_region
          _
        $region16: #{tpu_custom_call.1} parent=11 // pred_fallthru
          _
        // Predicated region
        $region17: #{tpu_custom_call.1} parent=11 // pred_check
          %p278 = pneg %p127
        $region18: #{tpu_custom_call.1} parent=11 // pred_check_branch
          %280 = sbr.rel (%p278) target = $region20
        $region19: #{tpu_custom_call.1} parent=11 // pred_region
          %s282 = ssub.s32 512, 512
          %283 = vsyncadd [#allocation5], %s282
          %s284 = sshll.u32 [#allocation4], 4
          %s285 = int_to_ptr.vmem [resolvable:$true] %s284
          %290 = dma.hbm_to_vmem [thread:$0]  %s3, 512, %s285, [#allocation5], 128, 128, 8
        $region20: #{tpu_custom_call.1} parent=11 // pred_fallthru
          _
        // Predicated region
        $region21: #{tpu_custom_call.1} parent=11 // pred_check
          %p291 = pneg %p148
        $region22: #{tpu_custom_call.1} parent=11 // pred_check_branch
          %293 = sbr.rel (%p291) target = $region24
        $region23: #{tpu_custom_call.1} parent=11 // pred_region
          _
        $region24: #{tpu_custom_call.1} parent=11 // pred_fallthru
          _
        // Predicated region
        $region25: #{tpu_custom_call.1} parent=11 // pred_check
          %p294 = pneg %p169
        $region26: #{tpu_custom_call.1} parent=11 // pred_check_branch
          %296 = sbr.rel (%p294) target = $region28
        $region27: #{tpu_custom_call.1} parent=11 // pred_region
          _
        $region28: #{tpu_custom_call.1} parent=11 // pred_fallthru
          _
        // Predicated region
        $region29: #{tpu_custom_call.1} parent=11 // pred_check
          %p297 = pneg %p190
        $region30: #{tpu_custom_call.1} parent=11 // pred_check_branch
          %299 = sbr.rel (%p297) target = $region32
        $region31: #{tpu_custom_call.1} parent=11 // pred_region
          _
        $region32: #{tpu_custom_call.1} parent=11 // pred_fallthru
          _
        // Predicated region
        $region33: #{tpu_custom_call.1} parent=11 // pred_check
          %p300 = pneg %p211
        $region34: #{tpu_custom_call.1} parent=11 // pred_check_branch
          %302 = sbr.rel (%p300) target = $region36
        $region35: #{tpu_custom_call.1} parent=11 // pred_region
          _
        $region36: #{tpu_custom_call.1} parent=11 // pred_fallthru
          _
        // Predicated region
        $region37: #{tpu_custom_call.1} parent=11 // pred_check
          %p303 = pneg %p232
        $region38: #{tpu_custom_call.1} parent=11 // pred_check_branch
          %305 = sbr.rel (%p303) target = $region40
        $region39: #{tpu_custom_call.1} parent=11 // pred_region
          _
        $region40: #{tpu_custom_call.1} parent=11 // pred_fallthru
          _
      $region12: #{tpu_custom_call.1} parent=5 // pred_fallthru
        _
      %p306 = scmp.lt.s32.totalorder %s19, 4
      // Predicated region
      $region41: #{tpu_custom_call.1} parent=5 // pred_check
        %p307 = pneg %p306
      $region42: #{tpu_custom_call.1} parent=5 // pred_check_branch
        %309 = sbr.rel (%p307) target = $region44
      $region43: #{tpu_custom_call.1} parent=5 // pred_region
        // Predicated region
        $region45: #{tpu_custom_call.1} parent=43 // pred_check
          %p310 = pneg %p53
        $region46: #{tpu_custom_call.1} parent=43 // pred_check_branch
          %312 = sbr.rel (%p310) target = $region48
        $region47: #{tpu_custom_call.1} parent=43 // pred_region
          %s313 = sand.u32 %s43, 1
          %s314 = scalar_lea.sflag [#allocation3], %s313
          %s315 = sand.u32 %s43, 1
          %s316 = smul.addr %s315, 6
          %s317 = scalar_lea.vmem [#allocation2], %s316
          %s318 = smul.u32 3, %s27
          %s319 = ssub.s32 4, %s318
          %p320 = scmp.lt.s32.totalorder %s319, 3
          %s321 = scalar_select %p320, %s319, 3
          %s322 = smul.u32 32, %s321
          %s324 = ssub.s32 96, %s322
          %325 = vsyncadd %s314, %s324
          %p326 = scmp.ne.s32.totalorder 0, %s322
          %s327 = smul.addr %s26, 4
          %s328 = sadd.s32 %s318, %s327
          %s329 = smul.addr %s328, 32
          %s330 = scalar_lea.hbm %s0, %s329
          %s331 = smul.u32 %s321, 2
          %s332 = sshll.u32 %s331, 4
          %s333 = sshll.u32 %s317, 4
          %s334 = int_to_ptr.vmem [resolvable:$true] %s333
          %336 = dma.hbm_to_vmem [thread:$0]  (%p326), %s330, %s332, %s334, %s314
        $region48: #{tpu_custom_call.1} parent=43 // pred_fallthru
          _
        // Predicated region
        $region49: #{tpu_custom_call.1} parent=43 // pred_check
          %p337 = pneg %p79
        $region50: #{tpu_custom_call.1} parent=43 // pred_check_branch
          %339 = sbr.rel (%p337) target = $region52
        $region51: #{tpu_custom_call.1} parent=43 // pred_region
          %p340 = scmp.lt.s32.totalorder %s26, 1
          %s341 = scalar_select %p340, %s26, 1
          %s342 = smul.addr %s341, 4
          %s343 = smul.addr %s342, 8
          %s344 = scalar_lea.vmem %s1, %s343
        $region52: #{tpu_custom_call.1} parent=43 // pred_fallthru
          _
      $region44: #{tpu_custom_call.1} parent=5 // pred_fallthru
        _
      %p345 = scmp.le.s32.totalorder 1, %s19
      %p346 = scmp.lt.s32.totalorder %s19, 5
      %p347 = pnand %p345, %p346
      %p348 = pneg %p347
      // Predicated region
      $region53: #{tpu_custom_call.1} parent=5 // pred_check
        _
      $region54: #{tpu_custom_call.1} parent=5 // pred_check_branch
        %350 = sbr.rel (%p347) target = $region56
      $region55: #{tpu_custom_call.1} parent=5 // pred_region
        %s351 = ssub.s32 %s19, 1
        %s352 = sand.u32 %s46, 1
        %s353 = scalar_lea.sflag [#allocation3], %s352
        %s354 = sand.u32 %s46, 1
        %s355 = smul.addr %s354, 6
        %s356 = scalar_lea.vmem [#allocation2], %s355
        // Predicated region
        $region57: #{tpu_custom_call.1} parent=55 // pred_check
          %p357 = pneg %p59
        $region58: #{tpu_custom_call.1} parent=55 // pred_check_branch
          %359 = sbr.rel (%p357) target = $region60
        $region59: #{tpu_custom_call.1} parent=55 // pred_region
          %360 = dma.done %s353, 96
        $region60: #{tpu_custom_call.1} parent=55 // pred_fallthru
          _
        // Predicated region
        $region61: #{tpu_custom_call.1} parent=55 // pred_check
          %p361 = pneg %p127
        $region62: #{tpu_custom_call.1} parent=55 // pred_check_branch
          %363 = sbr.rel (%p361) target = $region64
        $region63: #{tpu_custom_call.1} parent=55 // pred_region
          %364 = dma.done [#allocation5], 512
        $region64: #{tpu_custom_call.1} parent=55 // pred_fallthru
          _
        %s365 = sand.u32 %s46, 1
        %s366 = scalar_lea.sflag [#allocation3], %s365
        %s367 = sand.u32 %s46, 1
        %s368 = smul.addr %s367, 6
        %s369 = scalar_lea.vmem [#allocation2], %s368
        %p370 = pneg %p59
        %p371 = pneg %p56
        %p372 = scmp.lt.s32.totalorder %s28, 1
        %s373 = scalar_select %p372, %s28, 1
        %s374 = smul.addr %s373, 4
        %s375 = smul.addr %s374, 8
        %s376 = scalar_lea.vmem %s1, %s375
        %p377 = pneg %p85
        %p378 = pneg %p82
        %p379 = pneg %p106
        %p380 = pneg %p103
        %p381 = pneg %p127
        %p382 = pneg %p124
        %p383 = pneg %p148
        %p384 = pneg %p145
        %p385 = pneg %p169
        %p386 = pneg %p166
        %p387 = pneg %p190
        %p388 = pneg %p187
        %p389 = pneg %p211
        %p390 = pneg %p208
        %p391 = pneg %p232
        %p392 = pneg %p229
        %p393 = pneg %p260
        %p394 = pneg %p257
        %s395 = sand.u32 %s247, 1
        %s396 = sand.u32 %s247, 1
        %s397 = smul.addr %s396, 12
        %s398 = scalar_lea.vmem [#allocation6], %s397
        %s399 = smul.u32 3, %s29
        %s400 = ssub.s32 4, %s399
        %p401 = scmp.lt.s32.totalorder %s400, 3
        %s402 = scalar_select %p401, %s400, 3
        %s403 = smul.u32 32, %s402
        %p404 = scmp.lt.s32.totalorder %s28, 1
        %s405 = scalar_select %p404, %s28, 1
        %s406 = smul.addr %s405, 4
        %s407 = smul.addr %s406, 8
        %s408 = scalar_lea.vmem %s1, %s407
        %s409 = smul.u32 3, %s29
        %s410 = ssub.s32 4, %s409
        %p411 = scmp.lt.s32.totalorder %s410, 3
        %s412 = scalar_select %p411, %s410, 3
        %s413 = smul.u32 64, %s412
        %v414 = vld [vmem:[%s356] sm:$0x3f]
        %v415 = vld [vmem:[%s2] sm:$0xff]
        %v416 = vld [vmem:[%s2 + $0x8] sm:$0xff]
        %418 = vset.pattern.permute.xlu0 0
        %419 = vperm.xlu0 %418, %v415
        %v420 = vpop.permute.xlu0 %419
        %423 = vset.pattern.permute.xlu0 0
        %424 = vperm.xlu0 %423, %v416
        %v425 = vpop.permute.xlu0 %424
        %v428 = vlaneseq
        %v429 = vshrl.u32 %v428, 7
        %v430 = vsub.s32 0, %v429
        %v431 = vrot.slane %v414, %v430
        %v432 = vlaneseq
        %v433 = vshrl.u32 %v432, 7
        %v434 = vsub.s32 2, %v433
        %v435 = vrot.slane %v414, %v434
        %v436 = vlaneseq
        %v437 = vshrl.u32 %v436, 7
        %v438 = vsub.s32 4, %v437
        %v439 = vrot.slane %v414, %v438
        %v443 = vlaneseq
        %v444 = vshrl.u32 %v443, 7
        %v445 = vsub.s32 0, %v444
        %v446 = vrot.slane %v431, %v445
        %v447 = vlaneseq
        %v448 = vshrl.u32 %v447, 7
        %v449 = vsub.s32 0, %v448
        %v450 = vrot.slane %v435, %v449
        %v451 = vlaneseq
        %v452 = vshrl.u32 %v451, 7
        %v453 = vsub.s32 0, %v452
        %v454 = vrot.slane %v439, %v453
        %v455 = vmul.f32 %v420, %v446
        %v456 = vmul.f32 %v420, %v450
        %v457 = vmul.f32 %v420, %v454
        %v458 = vmul.f32 %v425, %v446
        %v459 = vmul.f32 %v425, %v450
        %v460 = vmul.f32 %v425, %v454
        %461 = vset.pattern.permute.xlu0 1
        %462 = vperm.xlu0 %461, %v415
        %v463 = vpop.permute.xlu0 %462
        %465 = vset.pattern.permute.xlu0 1
        %466 = vperm.xlu0 %465, %v416
        %v467 = vpop.permute.xlu0 %466
        %v469 = vlaneseq
        %v470 = vshrl.u32 %v469, 7
        %v471 = vsub.s32 1, %v470
        %v472 = vrot.slane %v414, %v471
        %v473 = vlaneseq
        %v474 = vshrl.u32 %v473, 7
        %v475 = vsub.s32 3, %v474
        %v476 = vrot.slane %v414, %v475
        %v477 = vlaneseq
        %v478 = vshrl.u32 %v477, 7
        %v479 = vsub.s32 5, %v478
        %v480 = vrot.slane %v414, %v479
        %v484 = vlaneseq
        %v485 = vshrl.u32 %v484, 7
        %v486 = vsub.s32 1, %v485
        %v487 = vrot.slane %v472, %v486
        %v488 = vlaneseq
        %v489 = vshrl.u32 %v488, 7
        %v490 = vsub.s32 1, %v489
        %v491 = vrot.slane %v476, %v490
        %v492 = vlaneseq
        %v493 = vshrl.u32 %v492, 7
        %v494 = vsub.s32 1, %v493
        %v495 = vrot.slane %v480, %v494
        %v496 = vmul.f32 %v463, %v487
        %v497 = vmul.f32 %v463, %v491
        %v498 = vmul.f32 %v463, %v495
        %v499 = vmul.f32 %v467, %v487
        %v500 = vmul.f32 %v467, %v491
        %v501 = vmul.f32 %v467, %v495
        %v502 = vadd.f32 %v455, %v496
        %v503 = vadd.f32 %v456, %v497
        %v504 = vadd.f32 %v457, %v498
        %v505 = vadd.f32 %v458, %v499
        %v506 = vadd.f32 %v459, %v500
        %v507 = vadd.f32 %v460, %v501
        %v508 = vand.u32 2147483647, %v502
        %vm509 = vcmp.le.f32.partialorder %v508, 0.7853982
        %vm510 = vcmp.lt.s32.totalorder %v502, 0
        %v511 = vand.u32 %v502, 2139095040
        %v512 = vshrl.u32 %v511, 23
        %v513 = vsub.s32 %v512, 127
        %v514 = vand.u32 2147483647, %v502
        %v515 = vand.u32 %v514, 8388607
        %v516 = vor.u32 %v515, 8388608
        %v517 = vsub.s32 0, %v516
        %v518 = vadd.s32 %v513, 1
        %vm519 = vcmp.gt.s32.totalorder %v518, 0
        %v520 = vsel %vm519, %v518, 0
        %v521 = vshrl.u32 %v520, 5
        %v522 = vand.u32 %v520, 31
        %v523 = vsub.s32 32, %v522
        %v524 = vshrl.u32 683565275, %v523
        %v525 = vshll.u32 683565275, %v522
        %v526 = vshrl.u32 2475754826, %v523
        %v527 = vor.u32 %v525, %v526
        %v528 = vshll.u32 2475754826, %v522
        %v529 = vshrl.u32 2131351028, %v523
        %v530 = vor.u32 %v528, %v529
        %v531 = vshll.u32 2131351028, %v522
        %v532 = vshrl.u32 2102212464, %v523
        %v533 = vor.u32 %v531, %v532
        %v534 = vshll.u32 2102212464, %v522
        %v535 = vshrl.u32 920167782, %v523
        %v536 = vor.u32 %v534, %v535
        %v537 = vshll.u32 920167782, %v522
        %v538 = vshrl.u32 1326507024, %v523
        %v539 = vor.u32 %v537, %v538
        %vm540 = vcmp.lt.s32.totalorder %v521, 1
        %vm541 = vcmp.lt.s32.totalorder %v521, 2
        %vm542 = vcmp.lt.s32.totalorder %v521, 3
        %vm543 = vcmp.lt.s32.totalorder %v521, 4
        %v544 = vsel %vm540, %v524, %v527
        %v545 = vsel %vm543, %v533, 2102212464
        %v546 = vsel %vm542, %v530, %v545
        %v547 = vsel %vm541, %v544, %v546
        %v548 = vsel %vm540, %v527, %v530
        %v549 = vsel %vm543, %v536, 920167782
        %v550 = vsel %vm542, %v533, %v549
        %v551 = vsel %vm541, %v548, %v550
        %v552 = vsel %vm540, %v530, %v533
        %v553 = vsel %vm543, %v539, 1326507024
        %v554 = vsel %vm542, %v536, %v553
        %v555 = vsel %vm541, %v552, %v554
        %v556 = vshll.u32 %v516, 8
        %v557 = vmul.u32.u64.compose %v556, %v555
        %v558 = vextract.low.u32 %v557
        %v559 = vextract.high.u32 %v557
        %v560 = vmul.u32.u64.compose %v556, %v551
        %v561 = vextract.low.u32 %v560
        %v562 = vextract.high.u32 %v560
        %v563 = vmul.u32 %v556, %v547
        %v564 = vadd.s32 %v559, %v561
        %vm565 = vc.u32 %v559, %v561
        %v566 = vadd.s32 %v562, 1
        %v567 = vsel %vm565, %v566, %v562
        %v568 = vadd.s32 %v563, %v567
        %v569 = vadd.s32 %v568, 536870912
        %v570 = vshrl.u32 %v569, 30
        %v571 = vshll.u32 %v570, 30
        %v572 = vsub.s32 %v568, %v571
        %vm573 = vcmp.lt.s32.totalorder %v572, 0
        %v574 = vsub.s32 0, %v572
        %v575 = vsel %vm573, %v574, %v572
        %v576 = vclz %v575
        %v577 = vsub.s32 %v576, 2
        %vm578 = vcmp.gt.s32.totalorder 0, %v577
        %v579 = vsel %vm578, 0, %v577
        %v580 = vsub.s32 32, %v579
        %v581 = vshll.u32 %v572, %v579
        %v582 = vshrl.u32 %v564, %v580
        %v583 = vor.u32 %v581, %v582
        %v584 = vsub.s32 4294967266, %v579
        %v585 = vadd.s32 %v584, 127
        %v586 = vshll.u32 %v585, 23
        %v587 = vor.u32 4788187, %v586
        %v588 = vand.u32 2147483647, %v587
        %v590 = vcvt.s32.f32 %v583
        %v591 = vmul.f32 %v590, %v588
        %v592 = vxor.u32 %v591, 2147483648
        %v593 = vsel %vm510, %v592, %v591
        %v594 = vsub.s32 4, %v570
        %v595 = vsel %vm510, %v594, %v570
        %v596 = vsel %vm509, %v502, %v593
        %v597 = vsel %vm509, 0, %v595
        %v598 = vcosq.f32.pop %v596
        %v599 = vsinq.f32.pop %v596
        %vm600 = vweird.f32 %v502
        %v601 = vand.u32 %v597, 3
        %vm602 = vcmp.lt.s32.totalorder %v601, 2
        %vm603 = vcmp.eq.s32.totalorder %v601, 0
        %v604 = vxor.u32 %v599, 2147483648
        %v605 = vsel %vm603, %v598, %v604
        %vm606 = vcmp.eq.s32.totalorder %v601, 2
        %v607 = vxor.u32 %v598, 2147483648
        %v608 = vsel %vm606, %v607, %v599
        %v609 = vsel %vm602, %v605, %v608
        %v610 = vsel %vm600, nan, %v609
        %v611 = vand.u32 2147483647, %v503
        %vm612 = vcmp.le.f32.partialorder %v611, 0.7853982
        %vm613 = vcmp.lt.s32.totalorder %v503, 0
        %v614 = vand.u32 %v503, 2139095040
        %v615 = vshrl.u32 %v614, 23
        %v616 = vsub.s32 %v615, 127
        %v617 = vand.u32 2147483647, %v503
        %v618 = vand.u32 %v617, 8388607
        %v619 = vor.u32 %v618, 8388608
        %v620 = vsub.s32 0, %v619
        %v621 = vadd.s32 %v616, 1
        %vm622 = vcmp.gt.s32.totalorder %v621, 0
        %v623 = vsel %vm622, %v621, 0
        %v624 = vshrl.u32 %v623, 5
        %v625 = vand.u32 %v623, 31
        %v626 = vsub.s32 32, %v625
        %v627 = vshrl.u32 683565275, %v626
        %v628 = vshll.u32 683565275, %v625
        %v629 = vshrl.u32 2475754826, %v626
        %v630 = vor.u32 %v628, %v629
        %v631 = vshll.u32 2475754826, %v625
        %v632 = vshrl.u32 2131351028, %v626
        %v633 = vor.u32 %v631, %v632
        %v634 = vshll.u32 2131351028, %v625
        %v635 = vshrl.u32 2102212464, %v626
        %v636 = vor.u32 %v634, %v635
        %v637 = vshll.u32 2102212464, %v625
        %v638 = vshrl.u32 920167782, %v626
        %v639 = vor.u32 %v637, %v638
        %v640 = vshll.u32 920167782, %v625
        %v641 = vshrl.u32 1326507024, %v626
        %v642 = vor.u32 %v640, %v641
        %vm643 = vcmp.lt.s32.totalorder %v624, 1
        %vm644 = vcmp.lt.s32.totalorder %v624, 2
        %vm645 = vcmp.lt.s32.totalorder %v624, 3
        %vm646 = vcmp.lt.s32.totalorder %v624, 4
        %v647 = vsel %vm643, %v627, %v630
        %v648 = vsel %vm646, %v636, 2102212464
        %v649 = vsel %vm645, %v633, %v648
        %v650 = vsel %vm644, %v647, %v649
        %v651 = vsel %vm643, %v630, %v633
        %v652 = vsel %vm646, %v639, 920167782
        %v653 = vsel %vm645, %v636, %v652
        %v654 = vsel %vm644, %v651, %v653
        %v655 = vsel %vm643, %v633, %v636
        %v656 = vsel %vm646, %v642, 1326507024
        %v657 = vsel %vm645, %v639, %v656
        %v658 = vsel %vm644, %v655, %v657
        %v659 = vshll.u32 %v619, 8
        %v660 = vmul.u32.u64.compose %v659, %v658
        %v661 = vextract.low.u32 %v660
        %v662 = vextract.high.u32 %v660
        %v663 = vmul.u32.u64.compose %v659, %v654
        %v664 = vextract.low.u32 %v663
        %v665 = vextract.high.u32 %v663
        %v666 = vmul.u32 %v659, %v650
        %v667 = vadd.s32 %v662, %v664
        %vm668 = vc.u32 %v662, %v664
        %v669 = vadd.s32 %v665, 1
        %v670 = vsel %vm668, %v669, %v665
        %v671 = vadd.s32 %v666, %v670
        %v672 = vadd.s32 %v671, 536870912
        %v673 = vshrl.u32 %v672, 30
        %v674 = vshll.u32 %v673, 30
        %v675 = vsub.s32 %v671, %v674
        %vm676 = vcmp.lt.s32.totalorder %v675, 0
        %v677 = vsub.s32 0, %v675
        %v678 = vsel %vm676, %v677, %v675
        %v679 = vclz %v678
        %v680 = vsub.s32 %v679, 2
        %vm681 = vcmp.gt.s32.totalorder 0, %v680
        %v682 = vsel %vm681, 0, %v680
        %v683 = vsub.s32 32, %v682
        %v684 = vshll.u32 %v675, %v682
        %v685 = vshrl.u32 %v667, %v683
        %v686 = vor.u32 %v684, %v685
        %v687 = vsub.s32 4294967266, %v682
        %v688 = vadd.s32 %v687, 127
        %v689 = vshll.u32 %v688, 23
        %v690 = vor.u32 4788187, %v689
        %v691 = vand.u32 2147483647, %v690
        %v693 = vcvt.s32.f32 %v686
        %v694 = vmul.f32 %v693, %v691
        %v695 = vxor.u32 %v694, 2147483648
        %v696 = vsel %vm613, %v695, %v694
        %v697 = vsub.s32 4, %v673
        %v698 = vsel %vm613, %v697, %v673
        %v699 = vsel %vm612, %v503, %v696
        %v700 = vsel %vm612, 0, %v698
        %v701 = vcosq.f32.pop %v699
        %v702 = vsinq.f32.pop %v699
        %vm703 = vweird.f32 %v503
        %v704 = vand.u32 %v700, 3
        %vm705 = vcmp.lt.s32.totalorder %v704, 2
        %vm706 = vcmp.eq.s32.totalorder %v704, 0
        %v707 = vxor.u32 %v702, 2147483648
        %v708 = vsel %vm706, %v701, %v707
        %vm709 = vcmp.eq.s32.totalorder %v704, 2
        %v710 = vxor.u32 %v701, 2147483648
        %v711 = vsel %vm709, %v710, %v702
        %v712 = vsel %vm705, %v708, %v711
        %v713 = vsel %vm703, nan, %v712
        %v714 = vand.u32 2147483647, %v504
        %vm715 = vcmp.le.f32.partialorder %v714, 0.7853982
        %vm716 = vcmp.lt.s32.totalorder %v504, 0
        %v717 = vand.u32 %v504, 2139095040
        %v718 = vshrl.u32 %v717, 23
        %v719 = vsub.s32 %v718, 127
        %v720 = vand.u32 2147483647, %v504
        %v721 = vand.u32 %v720, 8388607
        %v722 = vor.u32 %v721, 8388608
        %v723 = vsub.s32 0, %v722
        %v724 = vadd.s32 %v719, 1
        %vm725 = vcmp.gt.s32.totalorder %v724, 0
        %v726 = vsel %vm725, %v724, 0
        %v727 = vshrl.u32 %v726, 5
        %v728 = vand.u32 %v726, 31
        %v729 = vsub.s32 32, %v728
        %v730 = vshrl.u32 683565275, %v729
        %v731 = vshll.u32 683565275, %v728
        %v732 = vshrl.u32 2475754826, %v729
        %v733 = vor.u32 %v731, %v732
        %v734 = vshll.u32 2475754826, %v728
        %v735 = vshrl.u32 2131351028, %v729
        %v736 = vor.u32 %v734, %v735
        %v737 = vshll.u32 2131351028, %v728
        %v738 = vshrl.u32 2102212464, %v729
        %v739 = vor.u32 %v737, %v738
        %v740 = vshll.u32 2102212464, %v728
        %v741 = vshrl.u32 920167782, %v729
        %v742 = vor.u32 %v740, %v741
        %v743 = vshll.u32 920167782, %v728
        %v744 = vshrl.u32 1326507024, %v729
        %v745 = vor.u32 %v743, %v744
        %vm746 = vcmp.lt.s32.totalorder %v727, 1
        %vm747 = vcmp.lt.s32.totalorder %v727, 2
        %vm748 = vcmp.lt.s32.totalorder %v727, 3
        %vm749 = vcmp.lt.s32.totalorder %v727, 4
        %v750 = vsel %vm746, %v730, %v733
        %v751 = vsel %vm749, %v739, 2102212464
        %v752 = vsel %vm748, %v736, %v751
        %v753 = vsel %vm747, %v750, %v752
        %v754 = vsel %vm746, %v733, %v736
        %v755 = vsel %vm749, %v742, 920167782
        %v756 = vsel %vm748, %v739, %v755
        %v757 = vsel %vm747, %v754, %v756
        %v758 = vsel %vm746, %v736, %v739
        %v759 = vsel %vm749, %v745, 1326507024
        %v760 = vsel %vm748, %v742, %v759
        %v761 = vsel %vm747, %v758, %v760
        %v762 = vshll.u32 %v722, 8
        %v763 = vmul.u32.u64.compose %v762, %v761
        %v764 = vextract.low.u32 %v763
        %v765 = vextract.high.u32 %v763
        %v766 = vmul.u32.u64.compose %v762, %v757
        %v767 = vextract.low.u32 %v766
        %v768 = vextract.high.u32 %v766
        %v769 = vmul.u32 %v762, %v753
        %v770 = vadd.s32 %v765, %v767
        %vm771 = vc.u32 %v765, %v767
        %v772 = vadd.s32 %v768, 1
        %v773 = vsel %vm771, %v772, %v768
        %v774 = vadd.s32 %v769, %v773
        %v775 = vadd.s32 %v774, 536870912
        %v776 = vshrl.u32 %v775, 30
        %v777 = vshll.u32 %v776, 30
        %v778 = vsub.s32 %v774, %v777
        %vm779 = vcmp.lt.s32.totalorder %v778, 0
        %v780 = vsub.s32 0, %v778
        %v781 = vsel %vm779, %v780, %v778
        %v782 = vclz %v781
        %v783 = vsub.s32 %v782, 2
        %vm784 = vcmp.gt.s32.totalorder 0, %v783
        %v785 = vsel %vm784, 0, %v783
        %v786 = vsub.s32 32, %v785
        %v787 = vshll.u32 %v778, %v785
        %v788 = vshrl.u32 %v770, %v786
        %v789 = vor.u32 %v787, %v788
        %v790 = vsub.s32 4294967266, %v785
        %v791 = vadd.s32 %v790, 127
        %v792 = vshll.u32 %v791, 23
        %v793 = vor.u32 4788187, %v792
        %v794 = vand.u32 2147483647, %v793
        %v796 = vcvt.s32.f32 %v789
        %v797 = vmul.f32 %v796, %v794
        %v798 = vxor.u32 %v797, 2147483648
        %v799 = vsel %vm716, %v798, %v797
        %v800 = vsub.s32 4, %v776
        %v801 = vsel %vm716, %v800, %v776
        %v802 = vsel %vm715, %v504, %v799
        %v803 = vsel %vm715, 0, %v801
        %v804 = vcosq.f32.pop %v802
        %v805 = vsinq.f32.pop %v802
        %vm806 = vweird.f32 %v504
        %v807 = vand.u32 %v803, 3
        %vm808 = vcmp.lt.s32.totalorder %v807, 2
        %vm809 = vcmp.eq.s32.totalorder %v807, 0
        %v810 = vxor.u32 %v805, 2147483648
        %v811 = vsel %vm809, %v804, %v810
        %vm812 = vcmp.eq.s32.totalorder %v807, 2
        %v813 = vxor.u32 %v804, 2147483648
        %v814 = vsel %vm812, %v813, %v805
        %v815 = vsel %vm808, %v811, %v814
        %v816 = vsel %vm806, nan, %v815
        %v817 = vand.u32 2147483647, %v505
        %vm818 = vcmp.le.f32.partialorder %v817, 0.7853982
        %vm819 = vcmp.lt.s32.totalorder %v505, 0
        %v820 = vand.u32 %v505, 2139095040
        %v821 = vshrl.u32 %v820, 23
        %v822 = vsub.s32 %v821, 127
        %v823 = vand.u32 2147483647, %v505
        %v824 = vand.u32 %v823, 8388607
        %v825 = vor.u32 %v824, 8388608
        %v826 = vsub.s32 0, %v825
        %v827 = vadd.s32 %v822, 1
        %vm828 = vcmp.gt.s32.totalorder %v827, 0
        %v829 = vsel %vm828, %v827, 0
        %v830 = vshrl.u32 %v829, 5
        %v831 = vand.u32 %v829, 31
        %v832 = vsub.s32 32, %v831
        %v833 = vshrl.u32 683565275, %v832
        %v834 = vshll.u32 683565275, %v831
        %v835 = vshrl.u32 2475754826, %v832
        %v836 = vor.u32 %v834, %v835
        %v837 = vshll.u32 2475754826, %v831
        %v838 = vshrl.u32 2131351028, %v832
        %v839 = vor.u32 %v837, %v838
        %v840 = vshll.u32 2131351028, %v831
        %v841 = vshrl.u32 2102212464, %v832
        %v842 = vor.u32 %v840, %v841
        %v843 = vshll.u32 2102212464, %v831
        %v844 = vshrl.u32 920167782, %v832
        %v845 = vor.u32 %v843, %v844
        %v846 = vshll.u32 920167782, %v831
        %v847 = vshrl.u32 1326507024, %v832
        %v848 = vor.u32 %v846, %v847
        %vm849 = vcmp.lt.s32.totalorder %v830, 1
        %vm850 = vcmp.lt.s32.totalorder %v830, 2
        %vm851 = vcmp.lt.s32.totalorder %v830, 3
        %vm852 = vcmp.lt.s32.totalorder %v830, 4
        %v853 = vsel %vm849, %v833, %v836
        %v854 = vsel %vm852, %v842, 2102212464
        %v855 = vsel %vm851, %v839, %v854
        %v856 = vsel %vm850, %v853, %v855
        %v857 = vsel %vm849, %v836, %v839
        %v858 = vsel %vm852, %v845, 920167782
        %v859 = vsel %vm851, %v842, %v858
        %v860 = vsel %vm850, %v857, %v859
        %v861 = vsel %vm849, %v839, %v842
        %v862 = vsel %vm852, %v848, 1326507024
        %v863 = vsel %vm851, %v845, %v862
        %v864 = vsel %vm850, %v861, %v863
        %v865 = vshll.u32 %v825, 8
        %v866 = vmul.u32.u64.compose %v865, %v864
        %v867 = vextract.low.u32 %v866
        %v868 = vextract.high.u32 %v866
        %v869 = vmul.u32.u64.compose %v865, %v860
        %v870 = vextract.low.u32 %v869
        %v871 = vextract.high.u32 %v869
        %v872 = vmul.u32 %v865, %v856
        %v873 = vadd.s32 %v868, %v870
        %vm874 = vc.u32 %v868, %v870
        %v875 = vadd.s32 %v871, 1
        %v876 = vsel %vm874, %v875, %v871
        %v877 = vadd.s32 %v872, %v876
        %v878 = vadd.s32 %v877, 536870912
        %v879 = vshrl.u32 %v878, 30
        %v880 = vshll.u32 %v879, 30
        %v881 = vsub.s32 %v877, %v880
        %vm882 = vcmp.lt.s32.totalorder %v881, 0
        %v883 = vsub.s32 0, %v881
        %v884 = vsel %vm882, %v883, %v881
        %v885 = vclz %v884
        %v886 = vsub.s32 %v885, 2
        %vm887 = vcmp.gt.s32.totalorder 0, %v886
        %v888 = vsel %vm887, 0, %v886
        %v889 = vsub.s32 32, %v888
        %v890 = vshll.u32 %v881, %v888
        %v891 = vshrl.u32 %v873, %v889
        %v892 = vor.u32 %v890, %v891
        %v893 = vsub.s32 4294967266, %v888
        %v894 = vadd.s32 %v893, 127
        %v895 = vshll.u32 %v894, 23
        %v896 = vor.u32 4788187, %v895
        %v897 = vand.u32 2147483647, %v896
        %v899 = vcvt.s32.f32 %v892
        %v900 = vmul.f32 %v899, %v897
        %v901 = vxor.u32 %v900, 2147483648
        %v902 = vsel %vm819, %v901, %v900
        %v903 = vsub.s32 4, %v879
        %v904 = vsel %vm819, %v903, %v879
        %v905 = vsel %vm818, %v505, %v902
        %v906 = vsel %vm818, 0, %v904
        %v907 = vcosq.f32.pop %v905
        %v908 = vsinq.f32.pop %v905
        %vm909 = vweird.f32 %v505
        %v910 = vand.u32 %v906, 3
        %vm911 = vcmp.lt.s32.totalorder %v910, 2
        %vm912 = vcmp.eq.s32.totalorder %v910, 0
        %v913 = vxor.u32 %v908, 2147483648
        %v914 = vsel %vm912, %v907, %v913
        %vm915 = vcmp.eq.s32.totalorder %v910, 2
        %v916 = vxor.u32 %v907, 2147483648
        %v917 = vsel %vm915, %v916, %v908
        %v918 = vsel %vm911, %v914, %v917
        %v919 = vsel %vm909, nan, %v918
        %v920 = vand.u32 2147483647, %v506
        %vm921 = vcmp.le.f32.partialorder %v920, 0.7853982
        %vm922 = vcmp.lt.s32.totalorder %v506, 0
        %v923 = vand.u32 %v506, 2139095040
        %v924 = vshrl.u32 %v923, 23
        %v925 = vsub.s32 %v924, 127
        %v926 = vand.u32 2147483647, %v506
        %v927 = vand.u32 %v926, 8388607
        %v928 = vor.u32 %v927, 8388608
        %v929 = vsub.s32 0, %v928
        %v930 = vadd.s32 %v925, 1
        %vm931 = vcmp.gt.s32.totalorder %v930, 0
        %v932 = vsel %vm931, %v930, 0
        %v933 = vshrl.u32 %v932, 5
        %v934 = vand.u32 %v932, 31
        %v935 = vsub.s32 32, %v934
        %v936 = vshrl.u32 683565275, %v935
        %v937 = vshll.u32 683565275, %v934
        %v938 = vshrl.u32 2475754826, %v935
        %v939 = vor.u32 %v937, %v938
        %v940 = vshll.u32 2475754826, %v934
        %v941 = vshrl.u32 2131351028, %v935
        %v942 = vor.u32 %v940, %v941
        %v943 = vshll.u32 2131351028, %v934
        %v944 = vshrl.u32 2102212464, %v935
        %v945 = vor.u32 %v943, %v944
        %v946 = vshll.u32 2102212464, %v934
        %v947 = vshrl.u32 920167782, %v935
        %v948 = vor.u32 %v946, %v947
        %v949 = vshll.u32 920167782, %v934
        %v950 = vshrl.u32 1326507024, %v935
        %v951 = vor.u32 %v949, %v950
        %vm952 = vcmp.lt.s32.totalorder %v933, 1
        %vm953 = vcmp.lt.s32.totalorder %v933, 2
        %vm954 = vcmp.lt.s32.totalorder %v933, 3
        %vm955 = vcmp.lt.s32.totalorder %v933, 4
        %v956 = vsel %vm952, %v936, %v939
        %v957 = vsel %vm955, %v945, 2102212464
        %v958 = vsel %vm954, %v942, %v957
        %v959 = vsel %vm953, %v956, %v958
        %v960 = vsel %vm952, %v939, %v942
        %v961 = vsel %vm955, %v948, 920167782
        %v962 = vsel %vm954, %v945, %v961
        %v963 = vsel %vm953, %v960, %v962
        %v964 = vsel %vm952, %v942, %v945
        %v965 = vsel %vm955, %v951, 1326507024
        %v966 = vsel %vm954, %v948, %v965
        %v967 = vsel %vm953, %v964, %v966
        %v968 = vshll.u32 %v928, 8
        %v969 = vmul.u32.u64.compose %v968, %v967
        %v970 = vextract.low.u32 %v969
        %v971 = vextract.high.u32 %v969
        %v972 = vmul.u32.u64.compose %v968, %v963
        %v973 = vextract.low.u32 %v972
        %v974 = vextract.high.u32 %v972
        %v975 = vmul.u32 %v968, %v959
        %v976 = vadd.s32 %v971, %v973
        %vm977 = vc.u32 %v971, %v973
        %v978 = vadd.s32 %v974, 1
        %v979 = vsel %vm977, %v978, %v974
        %v980 = vadd.s32 %v975, %v979
        %v981 = vadd.s32 %v980, 536870912
        %v982 = vshrl.u32 %v981, 30
        %v983 = vshll.u32 %v982, 30
        %v984 = vsub.s32 %v980, %v983
        %vm985 = vcmp.lt.s32.totalorder %v984, 0
        %v986 = vsub.s32 0, %v984
        %v987 = vsel %vm985, %v986, %v984
        %v988 = vclz %v987
        %v989 = vsub.s32 %v988, 2
        %vm990 = vcmp.gt.s32.totalorder 0, %v989
        %v991 = vsel %vm990, 0, %v989
        %v992 = vsub.s32 32, %v991
        %v993 = vshll.u32 %v984, %v991
        %v994 = vshrl.u32 %v976, %v992
        %v995 = vor.u32 %v993, %v994
        %v996 = vsub.s32 4294967266, %v991
        %v997 = vadd.s32 %v996, 127
        %v998 = vshll.u32 %v997, 23
        %v999 = vor.u32 4788187, %v998
        %v1000 = vand.u32 2147483647, %v999
        %v1002 = vcvt.s32.f32 %v995
        %v1003 = vmul.f32 %v1002, %v1000
        %v1004 = vxor.u32 %v1003, 2147483648
        %v1005 = vsel %vm922, %v1004, %v1003
        %v1006 = vsub.s32 4, %v982
        %v1007 = vsel %vm922, %v1006, %v982
        %v1008 = vsel %vm921, %v506, %v1005
        %v1009 = vsel %vm921, 0, %v1007
        %v1010 = vcosq.f32.pop %v1008
        %v1011 = vsinq.f32.pop %v1008
        %vm1012 = vweird.f32 %v506
        %v1013 = vand.u32 %v1009, 3
        %vm1014 = vcmp.lt.s32.totalorder %v1013, 2
        %vm1015 = vcmp.eq.s32.totalorder %v1013, 0
        %v1016 = vxor.u32 %v1011, 2147483648
        %v1017 = vsel %vm1015, %v1010, %v1016
        %vm1018 = vcmp.eq.s32.totalorder %v1013, 2
        %v1019 = vxor.u32 %v1010, 2147483648
        %v1020 = vsel %vm1018, %v1019, %v1011
        %v1021 = vsel %vm1014, %v1017, %v1020
        %v1022 = vsel %vm1012, nan, %v1021
        %v1023 = vand.u32 2147483647, %v507
        %vm1024 = vcmp.le.f32.partialorder %v1023, 0.7853982
        %vm1025 = vcmp.lt.s32.totalorder %v507, 0
        %v1026 = vand.u32 %v507, 2139095040
        %v1027 = vshrl.u32 %v1026, 23
        %v1028 = vsub.s32 %v1027, 127
        %v1029 = vand.u32 2147483647, %v507
        %v1030 = vand.u32 %v1029, 8388607
        %v1031 = vor.u32 %v1030, 8388608
        %v1032 = vsub.s32 0, %v1031
        %v1033 = vadd.s32 %v1028, 1
        %vm1034 = vcmp.gt.s32.totalorder %v1033, 0
        %v1035 = vsel %vm1034, %v1033, 0
        %v1036 = vshrl.u32 %v1035, 5
        %v1037 = vand.u32 %v1035, 31
        %v1038 = vsub.s32 32, %v1037
        %v1039 = vshrl.u32 683565275, %v1038
        %v1040 = vshll.u32 683565275, %v1037
        %v1041 = vshrl.u32 2475754826, %v1038
        %v1042 = vor.u32 %v1040, %v1041
        %v1043 = vshll.u32 2475754826, %v1037
        %v1044 = vshrl.u32 2131351028, %v1038
        %v1045 = vor.u32 %v1043, %v1044
        %v1046 = vshll.u32 2131351028, %v1037
        %v1047 = vshrl.u32 2102212464, %v1038
        %v1048 = vor.u32 %v1046, %v1047
        %v1049 = vshll.u32 2102212464, %v1037
        %v1050 = vshrl.u32 920167782, %v1038
        %v1051 = vor.u32 %v1049, %v1050
        %v1052 = vshll.u32 920167782, %v1037
        %v1053 = vshrl.u32 1326507024, %v1038
        %v1054 = vor.u32 %v1052, %v1053
        %vm1055 = vcmp.lt.s32.totalorder %v1036, 1
        %vm1056 = vcmp.lt.s32.totalorder %v1036, 2
        %vm1057 = vcmp.lt.s32.totalorder %v1036, 3
        %vm1058 = vcmp.lt.s32.totalorder %v1036, 4
        %v1059 = vsel %vm1055, %v1039, %v1042
        %v1060 = vsel %vm1058, %v1048, 2102212464
        %v1061 = vsel %vm1057, %v1045, %v1060
        %v1062 = vsel %vm1056, %v1059, %v1061
        %v1063 = vsel %vm1055, %v1042, %v1045
        %v1064 = vsel %vm1058, %v1051, 920167782
        %v1065 = vsel %vm1057, %v1048, %v1064
        %v1066 = vsel %vm1056, %v1063, %v1065
        %v1067 = vsel %vm1055, %v1045, %v1048
        %v1068 = vsel %vm1058, %v1054, 1326507024
        %v1069 = vsel %vm1057, %v1051, %v1068
        %v1070 = vsel %vm1056, %v1067, %v1069
        %v1071 = vshll.u32 %v1031, 8
        %v1072 = vmul.u32.u64.compose %v1071, %v1070
        %v1073 = vextract.low.u32 %v1072
        %v1074 = vextract.high.u32 %v1072
        %v1075 = vmul.u32.u64.compose %v1071, %v1066
        %v1076 = vextract.low.u32 %v1075
        %v1077 = vextract.high.u32 %v1075
        %v1078 = vmul.u32 %v1071, %v1062
        %v1079 = vadd.s32 %v1074, %v1076
        %vm1080 = vc.u32 %v1074, %v1076
        %v1081 = vadd.s32 %v1077, 1
        %v1082 = vsel %vm1080, %v1081, %v1077
        %v1083 = vadd.s32 %v1078, %v1082
        %v1084 = vadd.s32 %v1083, 536870912
        %v1085 = vshrl.u32 %v1084, 30
        %v1086 = vshll.u32 %v1085, 30
        %v1087 = vsub.s32 %v1083, %v1086
        %vm1088 = vcmp.lt.s32.totalorder %v1087, 0
        %v1089 = vsub.s32 0, %v1087
        %v1090 = vsel %vm1088, %v1089, %v1087
        %v1091 = vclz %v1090
        %v1092 = vsub.s32 %v1091, 2
        %vm1093 = vcmp.gt.s32.totalorder 0, %v1092
        %v1094 = vsel %vm1093, 0, %v1092
        %v1095 = vsub.s32 32, %v1094
        %v1096 = vshll.u32 %v1087, %v1094
        %v1097 = vshrl.u32 %v1079, %v1095
        %v1098 = vor.u32 %v1096, %v1097
        %v1099 = vsub.s32 4294967266, %v1094
        %v1100 = vadd.s32 %v1099, 127
        %v1101 = vshll.u32 %v1100, 23
        %v1102 = vor.u32 4788187, %v1101
        %v1103 = vand.u32 2147483647, %v1102
        %v1105 = vcvt.s32.f32 %v1098
        %v1106 = vmul.f32 %v1105, %v1103
        %v1107 = vxor.u32 %v1106, 2147483648
        %v1108 = vsel %vm1025, %v1107, %v1106
        %v1109 = vsub.s32 4, %v1085
        %v1110 = vsel %vm1025, %v1109, %v1085
        %v1111 = vsel %vm1024, %v507, %v1108
        %v1112 = vsel %vm1024, 0, %v1110
        %v1113 = vcosq.f32.pop %v1111
        %v1114 = vsinq.f32.pop %v1111
        %vm1115 = vweird.f32 %v507
        %v1116 = vand.u32 %v1112, 3
        %vm1117 = vcmp.lt.s32.totalorder %v1116, 2
        %vm1118 = vcmp.eq.s32.totalorder %v1116, 0
        %v1119 = vxor.u32 %v1114, 2147483648
        %v1120 = vsel %vm1118, %v1113, %v1119
        %vm1121 = vcmp.eq.s32.totalorder %v1116, 2
        %v1122 = vxor.u32 %v1113, 2147483648
        %v1123 = vsel %vm1121, %v1122, %v1114
        %v1124 = vsel %vm1117, %v1120, %v1123
        %v1125 = vsel %vm1115, nan, %v1124
        %v1126 = vand.u32 2147483647, %v502
        %vm1127 = vcmp.le.f32.partialorder %v1126, 0.7853982
        %vm1128 = vcmp.lt.s32.totalorder %v502, 0
        %v1129 = vand.u32 %v502, 2139095040
        %v1130 = vshrl.u32 %v1129, 23
        %v1131 = vsub.s32 %v1130, 127
        %v1132 = vand.u32 2147483647, %v502
        %v1133 = vand.u32 %v1132, 8388607
        %v1134 = vor.u32 %v1133, 8388608
        %v1135 = vsub.s32 0, %v1134
        %v1136 = vadd.s32 %v1131, 1
        %vm1137 = vcmp.gt.s32.totalorder %v1136, 0
        %v1138 = vsel %vm1137, %v1136, 0
        %v1139 = vshrl.u32 %v1138, 5
        %v1140 = vand.u32 %v1138, 31
        %v1141 = vsub.s32 32, %v1140
        %v1142 = vshrl.u32 683565275, %v1141
        %v1143 = vshll.u32 683565275, %v1140
        %v1144 = vshrl.u32 2475754826, %v1141
        %v1145 = vor.u32 %v1143, %v1144
        %v1146 = vshll.u32 2475754826, %v1140
        %v1147 = vshrl.u32 2131351028, %v1141
        %v1148 = vor.u32 %v1146, %v1147
        %v1149 = vshll.u32 2131351028, %v1140
        %v1150 = vshrl.u32 2102212464, %v1141
        %v1151 = vor.u32 %v1149, %v1150
        %v1152 = vshll.u32 2102212464, %v1140
        %v1153 = vshrl.u32 920167782, %v1141
        %v1154 = vor.u32 %v1152, %v1153
        %v1155 = vshll.u32 920167782, %v1140
        %v1156 = vshrl.u32 1326507024, %v1141
        %v1157 = vor.u32 %v1155, %v1156
        %vm1158 = vcmp.lt.s32.totalorder %v1139, 1
        %vm1159 = vcmp.lt.s32.totalorder %v1139, 2
        %vm1160 = vcmp.lt.s32.totalorder %v1139, 3
        %vm1161 = vcmp.lt.s32.totalorder %v1139, 4
        %v1162 = vsel %vm1158, %v1142, %v1145
        %v1163 = vsel %vm1161, %v1151, 2102212464
        %v1164 = vsel %vm1160, %v1148, %v1163
        %v1165 = vsel %vm1159, %v1162, %v1164
        %v1166 = vsel %vm1158, %v1145, %v1148
        %v1167 = vsel %vm1161, %v1154, 920167782
        %v1168 = vsel %vm1160, %v1151, %v1167
        %v1169 = vsel %vm1159, %v1166, %v1168
        %v1170 = vsel %vm1158, %v1148, %v1151
        %v1171 = vsel %vm1161, %v1157, 1326507024
        %v1172 = vsel %vm1160, %v1154, %v1171
        %v1173 = vsel %vm1159, %v1170, %v1172
        %v1174 = vshll.u32 %v1134, 8
        %v1175 = vmul.u32.u64.compose %v1174, %v1173
        %v1176 = vextract.low.u32 %v1175
        %v1177 = vextract.high.u32 %v1175
        %v1178 = vmul.u32.u64.compose %v1174, %v1169
        %v1179 = vextract.low.u32 %v1178
        %v1180 = vextract.high.u32 %v1178
        %v1181 = vmul.u32 %v1174, %v1165
        %v1182 = vadd.s32 %v1177, %v1179
        %vm1183 = vc.u32 %v1177, %v1179
        %v1184 = vadd.s32 %v1180, 1
        %v1185 = vsel %vm1183, %v1184, %v1180
        %v1186 = vadd.s32 %v1181, %v1185
        %v1187 = vadd.s32 %v1186, 536870912
        %v1188 = vshrl.u32 %v1187, 30
        %v1189 = vshll.u32 %v1188, 30
        %v1190 = vsub.s32 %v1186, %v1189
        %vm1191 = vcmp.lt.s32.totalorder %v1190, 0
        %v1192 = vsub.s32 0, %v1190
        %v1193 = vsel %vm1191, %v1192, %v1190
        %v1194 = vclz %v1193
        %v1195 = vsub.s32 %v1194, 2
        %vm1196 = vcmp.gt.s32.totalorder 0, %v1195
        %v1197 = vsel %vm1196, 0, %v1195
        %v1198 = vsub.s32 32, %v1197
        %v1199 = vshll.u32 %v1190, %v1197
        %v1200 = vshrl.u32 %v1182, %v1198
        %v1201 = vor.u32 %v1199, %v1200
        %v1202 = vsub.s32 4294967266, %v1197
        %v1203 = vadd.s32 %v1202, 127
        %v1204 = vshll.u32 %v1203, 23
        %v1205 = vor.u32 4788187, %v1204
        %v1206 = vand.u32 2147483647, %v1205
        %v1208 = vcvt.s32.f32 %v1201
        %v1209 = vmul.f32 %v1208, %v1206
        %v1210 = vxor.u32 %v1209, 2147483648
        %v1211 = vsel %vm1128, %v1210, %v1209
        %v1212 = vsub.s32 4, %v1188
        %v1213 = vsel %vm1128, %v1212, %v1188
        %v1214 = vsel %vm1127, %v502, %v1211
        %v1215 = vsel %vm1127, 0, %v1213
        %v1216 = vcosq.f32.pop %v1214
        %v1217 = vsinq.f32.pop %v1214
        %vm1218 = vweird.f32 %v502
        %v1219 = vadd.s32 %v1215, 3
        %v1220 = vand.u32 %v1219, 3
        %vm1221 = vcmp.lt.s32.totalorder %v1220, 2
        %vm1222 = vcmp.eq.s32.totalorder %v1220, 0
        %v1223 = vxor.u32 %v1217, 2147483648
        %v1224 = vsel %vm1222, %v1216, %v1223
        %vm1225 = vcmp.eq.s32.totalorder %v1220, 2
        %v1226 = vxor.u32 %v1216, 2147483648
        %v1227 = vsel %vm1225, %v1226, %v1217
        %v1228 = vsel %vm1221, %v1224, %v1227
        %v1229 = vsel %vm1218, nan, %v1228
        %v1230 = vand.u32 2147483647, %v503
        %vm1231 = vcmp.le.f32.partialorder %v1230, 0.7853982
        %vm1232 = vcmp.lt.s32.totalorder %v503, 0
        %v1233 = vand.u32 %v503, 2139095040
        %v1234 = vshrl.u32 %v1233, 23
        %v1235 = vsub.s32 %v1234, 127
        %v1236 = vand.u32 2147483647, %v503
        %v1237 = vand.u32 %v1236, 8388607
        %v1238 = vor.u32 %v1237, 8388608
        %v1239 = vsub.s32 0, %v1238
        %v1240 = vadd.s32 %v1235, 1
        %vm1241 = vcmp.gt.s32.totalorder %v1240, 0
        %v1242 = vsel %vm1241, %v1240, 0
        %v1243 = vshrl.u32 %v1242, 5
        %v1244 = vand.u32 %v1242, 31
        %v1245 = vsub.s32 32, %v1244
        %v1246 = vshrl.u32 683565275, %v1245
        %v1247 = vshll.u32 683565275, %v1244
        %v1248 = vshrl.u32 2475754826, %v1245
        %v1249 = vor.u32 %v1247, %v1248
        %v1250 = vshll.u32 2475754826, %v1244
        %v1251 = vshrl.u32 2131351028, %v1245
        %v1252 = vor.u32 %v1250, %v1251
        %v1253 = vshll.u32 2131351028, %v1244
        %v1254 = vshrl.u32 2102212464, %v1245
        %v1255 = vor.u32 %v1253, %v1254
        %v1256 = vshll.u32 2102212464, %v1244
        %v1257 = vshrl.u32 920167782, %v1245
        %v1258 = vor.u32 %v1256, %v1257
        %v1259 = vshll.u32 920167782, %v1244
        %v1260 = vshrl.u32 1326507024, %v1245
        %v1261 = vor.u32 %v1259, %v1260
        %vm1262 = vcmp.lt.s32.totalorder %v1243, 1
        %vm1263 = vcmp.lt.s32.totalorder %v1243, 2
        %vm1264 = vcmp.lt.s32.totalorder %v1243, 3
        %vm1265 = vcmp.lt.s32.totalorder %v1243, 4
        %v1266 = vsel %vm1262, %v1246, %v1249
        %v1267 = vsel %vm1265, %v1255, 2102212464
        %v1268 = vsel %vm1264, %v1252, %v1267
        %v1269 = vsel %vm1263, %v1266, %v1268
        %v1270 = vsel %vm1262, %v1249, %v1252
        %v1271 = vsel %vm1265, %v1258, 920167782
        %v1272 = vsel %vm1264, %v1255, %v1271
        %v1273 = vsel %vm1263, %v1270, %v1272
        %v1274 = vsel %vm1262, %v1252, %v1255
        %v1275 = vsel %vm1265, %v1261, 1326507024
        %v1276 = vsel %vm1264, %v1258, %v1275
        %v1277 = vsel %vm1263, %v1274, %v1276
        %v1278 = vshll.u32 %v1238, 8
        %v1279 = vmul.u32.u64.compose %v1278, %v1277
        %v1280 = vextract.low.u32 %v1279
        %v1281 = vextract.high.u32 %v1279
        %v1282 = vmul.u32.u64.compose %v1278, %v1273
        %v1283 = vextract.low.u32 %v1282
        %v1284 = vextract.high.u32 %v1282
        %v1285 = vmul.u32 %v1278, %v1269
        %v1286 = vadd.s32 %v1281, %v1283
        %vm1287 = vc.u32 %v1281, %v1283
        %v1288 = vadd.s32 %v1284, 1
        %v1289 = vsel %vm1287, %v1288, %v1284
        %v1290 = vadd.s32 %v1285, %v1289
        %v1291 = vadd.s32 %v1290, 536870912
        %v1292 = vshrl.u32 %v1291, 30
        %v1293 = vshll.u32 %v1292, 30
        %v1294 = vsub.s32 %v1290, %v1293
        %vm1295 = vcmp.lt.s32.totalorder %v1294, 0
        %v1296 = vsub.s32 0, %v1294
        %v1297 = vsel %vm1295, %v1296, %v1294
        %v1298 = vclz %v1297
        %v1299 = vsub.s32 %v1298, 2
        %vm1300 = vcmp.gt.s32.totalorder 0, %v1299
        %v1301 = vsel %vm1300, 0, %v1299
        %v1302 = vsub.s32 32, %v1301
        %v1303 = vshll.u32 %v1294, %v1301
        %v1304 = vshrl.u32 %v1286, %v1302
        %v1305 = vor.u32 %v1303, %v1304
        %v1306 = vsub.s32 4294967266, %v1301
        %v1307 = vadd.s32 %v1306, 127
        %v1308 = vshll.u32 %v1307, 23
        %v1309 = vor.u32 4788187, %v1308
        %v1310 = vand.u32 2147483647, %v1309
        %v1312 = vcvt.s32.f32 %v1305
        %v1313 = vmul.f32 %v1312, %v1310
        %v1314 = vxor.u32 %v1313, 2147483648
        %v1315 = vsel %vm1232, %v1314, %v1313
        %v1316 = vsub.s32 4, %v1292
        %v1317 = vsel %vm1232, %v1316, %v1292
        %v1318 = vsel %vm1231, %v503, %v1315
        %v1319 = vsel %vm1231, 0, %v1317
        %v1320 = vcosq.f32.pop %v1318
        %v1321 = vsinq.f32.pop %v1318
        %vm1322 = vweird.f32 %v503
        %v1323 = vadd.s32 %v1319, 3
        %v1324 = vand.u32 %v1323, 3
        %vm1325 = vcmp.lt.s32.totalorder %v1324, 2
        %vm1326 = vcmp.eq.s32.totalorder %v1324, 0
        %v1327 = vxor.u32 %v1321, 2147483648
        %v1328 = vsel %vm1326, %v1320, %v1327
        %vm1329 = vcmp.eq.s32.totalorder %v1324, 2
        %v1330 = vxor.u32 %v1320, 2147483648
        %v1331 = vsel %vm1329, %v1330, %v1321
        %v1332 = vsel %vm1325, %v1328, %v1331
        %v1333 = vsel %vm1322, nan, %v1332
        %v1334 = vand.u32 2147483647, %v504
        %vm1335 = vcmp.le.f32.partialorder %v1334, 0.7853982
        %vm1336 = vcmp.lt.s32.totalorder %v504, 0
        %v1337 = vand.u32 %v504, 2139095040
        %v1338 = vshrl.u32 %v1337, 23
        %v1339 = vsub.s32 %v1338, 127
        %v1340 = vand.u32 2147483647, %v504
        %v1341 = vand.u32 %v1340, 8388607
        %v1342 = vor.u32 %v1341, 8388608
        %v1343 = vsub.s32 0, %v1342
        %v1344 = vadd.s32 %v1339, 1
        %vm1345 = vcmp.gt.s32.totalorder %v1344, 0
        %v1346 = vsel %vm1345, %v1344, 0
        %v1347 = vshrl.u32 %v1346, 5
        %v1348 = vand.u32 %v1346, 31
        %v1349 = vsub.s32 32, %v1348
        %v1350 = vshrl.u32 683565275, %v1349
        %v1351 = vshll.u32 683565275, %v1348
        %v1352 = vshrl.u32 2475754826, %v1349
        %v1353 = vor.u32 %v1351, %v1352
        %v1354 = vshll.u32 2475754826, %v1348
        %v1355 = vshrl.u32 2131351028, %v1349
        %v1356 = vor.u32 %v1354, %v1355
        %v1357 = vshll.u32 2131351028, %v1348
        %v1358 = vshrl.u32 2102212464, %v1349
        %v1359 = vor.u32 %v1357, %v1358
        %v1360 = vshll.u32 2102212464, %v1348
        %v1361 = vshrl.u32 920167782, %v1349
        %v1362 = vor.u32 %v1360, %v1361
        %v1363 = vshll.u32 920167782, %v1348
        %v1364 = vshrl.u32 1326507024, %v1349
        %v1365 = vor.u32 %v1363, %v1364
        %vm1366 = vcmp.lt.s32.totalorder %v1347, 1
        %vm1367 = vcmp.lt.s32.totalorder %v1347, 2
        %vm1368 = vcmp.lt.s32.totalorder %v1347, 3
        %vm1369 = vcmp.lt.s32.totalorder %v1347, 4
        %v1370 = vsel %vm1366, %v1350, %v1353
        %v1371 = vsel %vm1369, %v1359, 2102212464
        %v1372 = vsel %vm1368, %v1356, %v1371
        %v1373 = vsel %vm1367, %v1370, %v1372
        %v1374 = vsel %vm1366, %v1353, %v1356
        %v1375 = vsel %vm1369, %v1362, 920167782
        %v1376 = vsel %vm1368, %v1359, %v1375
        %v1377 = vsel %vm1367, %v1374, %v1376
        %v1378 = vsel %vm1366, %v1356, %v1359
        %v1379 = vsel %vm1369, %v1365, 1326507024
        %v1380 = vsel %vm1368, %v1362, %v1379
        %v1381 = vsel %vm1367, %v1378, %v1380
        %v1382 = vshll.u32 %v1342, 8
        %v1383 = vmul.u32.u64.compose %v1382, %v1381
        %v1384 = vextract.low.u32 %v1383
        %v1385 = vextract.high.u32 %v1383
        %v1386 = vmul.u32.u64.compose %v1382, %v1377
        %v1387 = vextract.low.u32 %v1386
        %v1388 = vextract.high.u32 %v1386
        %v1389 = vmul.u32 %v1382, %v1373
        %v1390 = vadd.s32 %v1385, %v1387
        %vm1391 = vc.u32 %v1385, %v1387
        %v1392 = vadd.s32 %v1388, 1
        %v1393 = vsel %vm1391, %v1392, %v1388
        %v1394 = vadd.s32 %v1389, %v1393
        %v1395 = vadd.s32 %v1394, 536870912
        %v1396 = vshrl.u32 %v1395, 30
        %v1397 = vshll.u32 %v1396, 30
        %v1398 = vsub.s32 %v1394, %v1397
        %vm1399 = vcmp.lt.s32.totalorder %v1398, 0
        %v1400 = vsub.s32 0, %v1398
        %v1401 = vsel %vm1399, %v1400, %v1398
        %v1402 = vclz %v1401
        %v1403 = vsub.s32 %v1402, 2
        %vm1404 = vcmp.gt.s32.totalorder 0, %v1403
        %v1405 = vsel %vm1404, 0, %v1403
        %v1406 = vsub.s32 32, %v1405
        %v1407 = vshll.u32 %v1398, %v1405
        %v1408 = vshrl.u32 %v1390, %v1406
        %v1409 = vor.u32 %v1407, %v1408
        %v1410 = vsub.s32 4294967266, %v1405
        %v1411 = vadd.s32 %v1410, 127
        %v1412 = vshll.u32 %v1411, 23
        %v1413 = vor.u32 4788187, %v1412
        %v1414 = vand.u32 2147483647, %v1413
        %v1416 = vcvt.s32.f32 %v1409
        %v1417 = vmul.f32 %v1416, %v1414
        %v1418 = vxor.u32 %v1417, 2147483648
        %v1419 = vsel %vm1336, %v1418, %v1417
        %v1420 = vsub.s32 4, %v1396
        %v1421 = vsel %vm1336, %v1420, %v1396
        %v1422 = vsel %vm1335, %v504, %v1419
        %v1423 = vsel %vm1335, 0, %v1421
        %v1424 = vcosq.f32.pop %v1422
        %v1425 = vsinq.f32.pop %v1422
        %vm1426 = vweird.f32 %v504
        %v1427 = vadd.s32 %v1423, 3
        %v1428 = vand.u32 %v1427, 3
        %vm1429 = vcmp.lt.s32.totalorder %v1428, 2
        %vm1430 = vcmp.eq.s32.totalorder %v1428, 0
        %v1431 = vxor.u32 %v1425, 2147483648
        %v1432 = vsel %vm1430, %v1424, %v1431
        %vm1433 = vcmp.eq.s32.totalorder %v1428, 2
        %v1434 = vxor.u32 %v1424, 2147483648
        %v1435 = vsel %vm1433, %v1434, %v1425
        %v1436 = vsel %vm1429, %v1432, %v1435
        %v1437 = vsel %vm1426, nan, %v1436
        %v1438 = vand.u32 2147483647, %v505
        %vm1439 = vcmp.le.f32.partialorder %v1438, 0.7853982
        %vm1440 = vcmp.lt.s32.totalorder %v505, 0
        %v1441 = vand.u32 %v505, 2139095040
        %v1442 = vshrl.u32 %v1441, 23
        %v1443 = vsub.s32 %v1442, 127
        %v1444 = vand.u32 2147483647, %v505
        %v1445 = vand.u32 %v1444, 8388607
        %v1446 = vor.u32 %v1445, 8388608
        %v1447 = vsub.s32 0, %v1446
        %v1448 = vadd.s32 %v1443, 1
        %vm1449 = vcmp.gt.s32.totalorder %v1448, 0
        %v1450 = vsel %vm1449, %v1448, 0
        %v1451 = vshrl.u32 %v1450, 5
        %v1452 = vand.u32 %v1450, 31
        %v1453 = vsub.s32 32, %v1452
        %v1454 = vshrl.u32 683565275, %v1453
        %v1455 = vshll.u32 683565275, %v1452
        %v1456 = vshrl.u32 2475754826, %v1453
        %v1457 = vor.u32 %v1455, %v1456
        %v1458 = vshll.u32 2475754826, %v1452
        %v1459 = vshrl.u32 2131351028, %v1453
        %v1460 = vor.u32 %v1458, %v1459
        %v1461 = vshll.u32 2131351028, %v1452
        %v1462 = vshrl.u32 2102212464, %v1453
        %v1463 = vor.u32 %v1461, %v1462
        %v1464 = vshll.u32 2102212464, %v1452
        %v1465 = vshrl.u32 920167782, %v1453
        %v1466 = vor.u32 %v1464, %v1465
        %v1467 = vshll.u32 920167782, %v1452
        %v1468 = vshrl.u32 1326507024, %v1453
        %v1469 = vor.u32 %v1467, %v1468
        %vm1470 = vcmp.lt.s32.totalorder %v1451, 1
        %vm1471 = vcmp.lt.s32.totalorder %v1451, 2
        %vm1472 = vcmp.lt.s32.totalorder %v1451, 3
        %vm1473 = vcmp.lt.s32.totalorder %v1451, 4
        %v1474 = vsel %vm1470, %v1454, %v1457
        %v1475 = vsel %vm1473, %v1463, 2102212464
        %v1476 = vsel %vm1472, %v1460, %v1475
        %v1477 = vsel %vm1471, %v1474, %v1476
        %v1478 = vsel %vm1470, %v1457, %v1460
        %v1479 = vsel %vm1473, %v1466, 920167782
        %v1480 = vsel %vm1472, %v1463, %v1479
        %v1481 = vsel %vm1471, %v1478, %v1480
        %v1482 = vsel %vm1470, %v1460, %v1463
        %v1483 = vsel %vm1473, %v1469, 1326507024
        %v1484 = vsel %vm1472, %v1466, %v1483
        %v1485 = vsel %vm1471, %v1482, %v1484
        %v1486 = vshll.u32 %v1446, 8
        %v1487 = vmul.u32.u64.compose %v1486, %v1485
        %v1488 = vextract.low.u32 %v1487
        %v1489 = vextract.high.u32 %v1487
        %v1490 = vmul.u32.u64.compose %v1486, %v1481
        %v1491 = vextract.low.u32 %v1490
        %v1492 = vextract.high.u32 %v1490
        %v1493 = vmul.u32 %v1486, %v1477
        %v1494 = vadd.s32 %v1489, %v1491
        %vm1495 = vc.u32 %v1489, %v1491
        %v1496 = vadd.s32 %v1492, 1
        %v1497 = vsel %vm1495, %v1496, %v1492
        %v1498 = vadd.s32 %v1493, %v1497
        %v1499 = vadd.s32 %v1498, 536870912
        %v1500 = vshrl.u32 %v1499, 30
        %v1501 = vshll.u32 %v1500, 30
        %v1502 = vsub.s32 %v1498, %v1501
        %vm1503 = vcmp.lt.s32.totalorder %v1502, 0
        %v1504 = vsub.s32 0, %v1502
        %v1505 = vsel %vm1503, %v1504, %v1502
        %v1506 = vclz %v1505
        %v1507 = vsub.s32 %v1506, 2
        %vm1508 = vcmp.gt.s32.totalorder 0, %v1507
        %v1509 = vsel %vm1508, 0, %v1507
        %v1510 = vsub.s32 32, %v1509
        %v1511 = vshll.u32 %v1502, %v1509
        %v1512 = vshrl.u32 %v1494, %v1510
        %v1513 = vor.u32 %v1511, %v1512
        %v1514 = vsub.s32 4294967266, %v1509
        %v1515 = vadd.s32 %v1514, 127
        %v1516 = vshll.u32 %v1515, 23
        %v1517 = vor.u32 4788187, %v1516
        %v1518 = vand.u32 2147483647, %v1517
        %v1520 = vcvt.s32.f32 %v1513
        %v1521 = vmul.f32 %v1520, %v1518
        %v1522 = vxor.u32 %v1521, 2147483648
        %v1523 = vsel %vm1440, %v1522, %v1521
        %v1524 = vsub.s32 4, %v1500
        %v1525 = vsel %vm1440, %v1524, %v1500
        %v1526 = vsel %vm1439, %v505, %v1523
        %v1527 = vsel %vm1439, 0, %v1525
        %v1528 = vcosq.f32.pop %v1526
        %v1529 = vsinq.f32.pop %v1526
        %vm1530 = vweird.f32 %v505
        %v1531 = vadd.s32 %v1527, 3
        %v1532 = vand.u32 %v1531, 3
        %vm1533 = vcmp.lt.s32.totalorder %v1532, 2
        %vm1534 = vcmp.eq.s32.totalorder %v1532, 0
        %v1535 = vxor.u32 %v1529, 2147483648
        %v1536 = vsel %vm1534, %v1528, %v1535
        %vm1537 = vcmp.eq.s32.totalorder %v1532, 2
        %v1538 = vxor.u32 %v1528, 2147483648
        %v1539 = vsel %vm1537, %v1538, %v1529
        %v1540 = vsel %vm1533, %v1536, %v1539
        %v1541 = vsel %vm1530, nan, %v1540
        %v1542 = vand.u32 2147483647, %v506
        %vm1543 = vcmp.le.f32.partialorder %v1542, 0.7853982
        %vm1544 = vcmp.lt.s32.totalorder %v506, 0
        %v1545 = vand.u32 %v506, 2139095040
        %v1546 = vshrl.u32 %v1545, 23
        %v1547 = vsub.s32 %v1546, 127
        %v1548 = vand.u32 2147483647, %v506
        %v1549 = vand.u32 %v1548, 8388607
        %v1550 = vor.u32 %v1549, 8388608
        %v1551 = vsub.s32 0, %v1550
        %v1552 = vadd.s32 %v1547, 1
        %vm1553 = vcmp.gt.s32.totalorder %v1552, 0
        %v1554 = vsel %vm1553, %v1552, 0
        %v1555 = vshrl.u32 %v1554, 5
        %v1556 = vand.u32 %v1554, 31
        %v1557 = vsub.s32 32, %v1556
        %v1558 = vshrl.u32 683565275, %v1557
        %v1559 = vshll.u32 683565275, %v1556
        %v1560 = vshrl.u32 2475754826, %v1557
        %v1561 = vor.u32 %v1559, %v1560
        %v1562 = vshll.u32 2475754826, %v1556
        %v1563 = vshrl.u32 2131351028, %v1557
        %v1564 = vor.u32 %v1562, %v1563
        %v1565 = vshll.u32 2131351028, %v1556
        %v1566 = vshrl.u32 2102212464, %v1557
        %v1567 = vor.u32 %v1565, %v1566
        %v1568 = vshll.u32 2102212464, %v1556
        %v1569 = vshrl.u32 920167782, %v1557
        %v1570 = vor.u32 %v1568, %v1569
        %v1571 = vshll.u32 920167782, %v1556
        %v1572 = vshrl.u32 1326507024, %v1557
        %v1573 = vor.u32 %v1571, %v1572
        %vm1574 = vcmp.lt.s32.totalorder %v1555, 1
        %vm1575 = vcmp.lt.s32.totalorder %v1555, 2
        %vm1576 = vcmp.lt.s32.totalorder %v1555, 3
        %vm1577 = vcmp.lt.s32.totalorder %v1555, 4
        %v1578 = vsel %vm1574, %v1558, %v1561
        %v1579 = vsel %vm1577, %v1567, 2102212464
        %v1580 = vsel %vm1576, %v1564, %v1579
        %v1581 = vsel %vm1575, %v1578, %v1580
        %v1582 = vsel %vm1574, %v1561, %v1564
        %v1583 = vsel %vm1577, %v1570, 920167782
        %v1584 = vsel %vm1576, %v1567, %v1583
        %v1585 = vsel %vm1575, %v1582, %v1584
        %v1586 = vsel %vm1574, %v1564, %v1567
        %v1587 = vsel %vm1577, %v1573, 1326507024
        %v1588 = vsel %vm1576, %v1570, %v1587
        %v1589 = vsel %vm1575, %v1586, %v1588
        %v1590 = vshll.u32 %v1550, 8
        %v1591 = vmul.u32.u64.compose %v1590, %v1589
        %v1592 = vextract.low.u32 %v1591
        %v1593 = vextract.high.u32 %v1591
        %v1594 = vmul.u32.u64.compose %v1590, %v1585
        %v1595 = vextract.low.u32 %v1594
        %v1596 = vextract.high.u32 %v1594
        %v1597 = vmul.u32 %v1590, %v1581
        %v1598 = vadd.s32 %v1593, %v1595
        %vm1599 = vc.u32 %v1593, %v1595
        %v1600 = vadd.s32 %v1596, 1
        %v1601 = vsel %vm1599, %v1600, %v1596
        %v1602 = vadd.s32 %v1597, %v1601
        %v1603 = vadd.s32 %v1602, 536870912
        %v1604 = vshrl.u32 %v1603, 30
        %v1605 = vshll.u32 %v1604, 30
        %v1606 = vsub.s32 %v1602, %v1605
        %vm1607 = vcmp.lt.s32.totalorder %v1606, 0
        %v1608 = vsub.s32 0, %v1606
        %v1609 = vsel %vm1607, %v1608, %v1606
        %v1610 = vclz %v1609
        %v1611 = vsub.s32 %v1610, 2
        %vm1612 = vcmp.gt.s32.totalorder 0, %v1611
        %v1613 = vsel %vm1612, 0, %v1611
        %v1614 = vsub.s32 32, %v1613
        %v1615 = vshll.u32 %v1606, %v1613
        %v1616 = vshrl.u32 %v1598, %v1614
        %v1617 = vor.u32 %v1615, %v1616
        %v1618 = vsub.s32 4294967266, %v1613
        %v1619 = vadd.s32 %v1618, 127
        %v1620 = vshll.u32 %v1619, 23
        %v1621 = vor.u32 4788187, %v1620
        %v1622 = vand.u32 2147483647, %v1621
        %v1624 = vcvt.s32.f32 %v1617
        %v1625 = vmul.f32 %v1624, %v1622
        %v1626 = vxor.u32 %v1625, 2147483648
        %v1627 = vsel %vm1544, %v1626, %v1625
        %v1628 = vsub.s32 4, %v1604
        %v1629 = vsel %vm1544, %v1628, %v1604
        %v1630 = vsel %vm1543, %v506, %v1627
        %v1631 = vsel %vm1543, 0, %v1629
        %v1632 = vcosq.f32.pop %v1630
        %v1633 = vsinq.f32.pop %v1630
        %vm1634 = vweird.f32 %v506
        %v1635 = vadd.s32 %v1631, 3
        %v1636 = vand.u32 %v1635, 3
        %vm1637 = vcmp.lt.s32.totalorder %v1636, 2
        %vm1638 = vcmp.eq.s32.totalorder %v1636, 0
        %v1639 = vxor.u32 %v1633, 2147483648
        %v1640 = vsel %vm1638, %v1632, %v1639
        %vm1641 = vcmp.eq.s32.totalorder %v1636, 2
        %v1642 = vxor.u32 %v1632, 2147483648
        %v1643 = vsel %vm1641, %v1642, %v1633
        %v1644 = vsel %vm1637, %v1640, %v1643
        %v1645 = vsel %vm1634, nan, %v1644
        %v1646 = vand.u32 2147483647, %v507
        %vm1647 = vcmp.le.f32.partialorder %v1646, 0.7853982
        %vm1648 = vcmp.lt.s32.totalorder %v507, 0
        %v1649 = vand.u32 %v507, 2139095040
        %v1650 = vshrl.u32 %v1649, 23
        %v1651 = vsub.s32 %v1650, 127
        %v1652 = vand.u32 2147483647, %v507
        %v1653 = vand.u32 %v1652, 8388607
        %v1654 = vor.u32 %v1653, 8388608
        %v1655 = vsub.s32 0, %v1654
        %v1656 = vadd.s32 %v1651, 1
        %vm1657 = vcmp.gt.s32.totalorder %v1656, 0
        %v1658 = vsel %vm1657, %v1656, 0
        %v1659 = vshrl.u32 %v1658, 5
        %v1660 = vand.u32 %v1658, 31
        %v1661 = vsub.s32 32, %v1660
        %v1662 = vshrl.u32 683565275, %v1661
        %v1663 = vshll.u32 683565275, %v1660
        %v1664 = vshrl.u32 2475754826, %v1661
        %v1665 = vor.u32 %v1663, %v1664
        %v1666 = vshll.u32 2475754826, %v1660
        %v1667 = vshrl.u32 2131351028, %v1661
        %v1668 = vor.u32 %v1666, %v1667
        %v1669 = vshll.u32 2131351028, %v1660
        %v1670 = vshrl.u32 2102212464, %v1661
        %v1671 = vor.u32 %v1669, %v1670
        %v1672 = vshll.u32 2102212464, %v1660
        %v1673 = vshrl.u32 920167782, %v1661
        %v1674 = vor.u32 %v1672, %v1673
        %v1675 = vshll.u32 920167782, %v1660
        %v1676 = vshrl.u32 1326507024, %v1661
        %v1677 = vor.u32 %v1675, %v1676
        %vm1678 = vcmp.lt.s32.totalorder %v1659, 1
        %vm1679 = vcmp.lt.s32.totalorder %v1659, 2
        %vm1680 = vcmp.lt.s32.totalorder %v1659, 3
        %vm1681 = vcmp.lt.s32.totalorder %v1659, 4
        %v1682 = vsel %vm1678, %v1662, %v1665
        %v1683 = vsel %vm1681, %v1671, 2102212464
        %v1684 = vsel %vm1680, %v1668, %v1683
        %v1685 = vsel %vm1679, %v1682, %v1684
        %v1686 = vsel %vm1678, %v1665, %v1668
        %v1687 = vsel %vm1681, %v1674, 920167782
        %v1688 = vsel %vm1680, %v1671, %v1687
        %v1689 = vsel %vm1679, %v1686, %v1688
        %v1690 = vsel %vm1678, %v1668, %v1671
        %v1691 = vsel %vm1681, %v1677, 1326507024
        %v1692 = vsel %vm1680, %v1674, %v1691
        %v1693 = vsel %vm1679, %v1690, %v1692
        %v1694 = vshll.u32 %v1654, 8
        %v1695 = vmul.u32.u64.compose %v1694, %v1693
        %v1696 = vextract.low.u32 %v1695
        %v1697 = vextract.high.u32 %v1695
        %v1698 = vmul.u32.u64.compose %v1694, %v1689
        %v1699 = vextract.low.u32 %v1698
        %v1700 = vextract.high.u32 %v1698
        %v1701 = vmul.u32 %v1694, %v1685
        %v1702 = vadd.s32 %v1697, %v1699
        %vm1703 = vc.u32 %v1697, %v1699
        %v1704 = vadd.s32 %v1700, 1
        %v1705 = vsel %vm1703, %v1704, %v1700
        %v1706 = vadd.s32 %v1701, %v1705
        %v1707 = vadd.s32 %v1706, 536870912
        %v1708 = vshrl.u32 %v1707, 30
        %v1709 = vshll.u32 %v1708, 30
        %v1710 = vsub.s32 %v1706, %v1709
        %vm1711 = vcmp.lt.s32.totalorder %v1710, 0
        %v1712 = vsub.s32 0, %v1710
        %v1713 = vsel %vm1711, %v1712, %v1710
        %v1714 = vclz %v1713
        %v1715 = vsub.s32 %v1714, 2
        %vm1716 = vcmp.gt.s32.totalorder 0, %v1715
        %v1717 = vsel %vm1716, 0, %v1715
        %v1718 = vsub.s32 32, %v1717
        %v1719 = vshll.u32 %v1710, %v1717
        %v1720 = vshrl.u32 %v1702, %v1718
        %v1721 = vor.u32 %v1719, %v1720
        %v1722 = vsub.s32 4294967266, %v1717
        %v1723 = vadd.s32 %v1722, 127
        %v1724 = vshll.u32 %v1723, 23
        %v1725 = vor.u32 4788187, %v1724
        %v1726 = vand.u32 2147483647, %v1725
        %v1728 = vcvt.s32.f32 %v1721
        %v1729 = vmul.f32 %v1728, %v1726
        %v1730 = vxor.u32 %v1729, 2147483648
        %v1731 = vsel %vm1648, %v1730, %v1729
        %v1732 = vsub.s32 4, %v1708
        %v1733 = vsel %vm1648, %v1732, %v1708
        %v1734 = vsel %vm1647, %v507, %v1731
        %v1735 = vsel %vm1647, 0, %v1733
        %v1736 = vcosq.f32.pop %v1734
        %v1737 = vsinq.f32.pop %v1734
        %vm1738 = vweird.f32 %v507
        %v1739 = vadd.s32 %v1735, 3
        %v1740 = vand.u32 %v1739, 3
        %vm1741 = vcmp.lt.s32.totalorder %v1740, 2
        %vm1742 = vcmp.eq.s32.totalorder %v1740, 0
        %v1743 = vxor.u32 %v1737, 2147483648
        %v1744 = vsel %vm1742, %v1736, %v1743
        %vm1745 = vcmp.eq.s32.totalorder %v1740, 2
        %v1746 = vxor.u32 %v1736, 2147483648
        %v1747 = vsel %vm1745, %v1746, %v1737
        %v1748 = vsel %vm1741, %v1744, %v1747
        %v1749 = vsel %vm1738, nan, %v1748
        %v1750 = vld [vmem:[#allocation4] sm:$0xff]
        %v1751 = vld [vmem:[#allocation4 + $0x8] sm:$0xff]
        %v1752 = vld [vmem:[#allocation4 + $0x10] sm:$0xff]
        %v1753 = vld [vmem:[#allocation4 + $0x18] sm:$0xff]
        %v1754 = vld [vmem:[%s4] sm:$0xff]
        %v1755 = vld [vmem:[%s4 + $0x8] sm:$0xff]
        %v1756 = vld [vmem:[%s4 + $0x10] sm:$0xff]
        %v1757 = vld [vmem:[%s4 + $0x18] sm:$0xff]
        %1759 = vset.pattern.permute.xlu0 0
        %1760 = vperm.xlu0 %1759, %v1754
        %v1761 = vpop.permute.xlu0 %1760
        %1764 = vset.pattern.permute.xlu0 0
        %1765 = vperm.xlu0 %1764, %v1755
        %v1766 = vpop.permute.xlu0 %1765
        %1769 = vset.pattern.permute.xlu0 0
        %1770 = vperm.xlu0 %1769, %v1756
        %v1771 = vpop.permute.xlu0 %1770
        %1774 = vset.pattern.permute.xlu0 0
        %1775 = vperm.xlu0 %1774, %v1757
        %v1776 = vpop.permute.xlu0 %1775
        %vm1778 = vcmask 261120
        %v1780 = vsel %vm1778, %v1750, 0
        %v1783 = vsel %vm1778, %v1751, 0
        %v1786 = vsel %vm1778, %v1752, 0
        %v1789 = vsel %vm1778, %v1753, 0
        %1791 = vmatprep.subr.mxu0 %v713
        %1792 = vmatpush1.msra.mxu0 %v610
        %1793 = vmatprep.subr.mxu0 %v1022
        %1794 = vmatpush1.msra.mxu0 %v919
        %1795 = vmatprep.subr.mxu0 %v1333
        %1796 = vmatpush1.msra.mxu0 %v1229
        %1797 = vmatprep.subr.mxu0 %v1645
        %1798 = vmatpush1.msra.mxu0 %v1541
        %1799 = vmatprep.subr.mxu0 0.0
        %1800 = vmatpush1.msra.mxu0 0.0
        %1801 = vmatprep.subr.mxu0 0.0
        %1802 = vmatpush1.msra.mxu0 0.0
        %1803 = vmatprep.subr.mxu0 0.0
        %1804 = vmatpush1.msra.mxu0 0.0
        %1805 = vmatprep.subr.mxu0 0.0
        %1806 = vmatpush1.msra.mxu0 0.0
        %1807 = vmatprep.subr.mxu0 0.0
        %1808 = vmatpush1.msra.mxu0 0.0
        %1809 = vmatprep.subr.mxu0 0.0
        %1810 = vmatpush1.msra.mxu0 0.0
        %1811 = vmatprep.subr.mxu0 0.0
        %1812 = vmatpush1.msra.mxu0 0.0
        %1813 = vmatprep.subr.mxu0 0.0
        %1814 = vmatpush1.msra.mxu0 0.0
        %1815 = vmatprep.subr.mxu0 0.0
        %1816 = vmatpush1.msra.mxu0 0.0
        %1817 = vmatprep.subr.mxu0 0.0
        %1818 = vmatpush1.msra.mxu0 0.0
        %1819 = vmatprep.subr.mxu0 0.0
        %1820 = vmatpush1.msra.mxu0 0.0
        %1821 = vmatprep.subr.mxu0 0.0
        %1822 = vmatpush1.msra.mxu0 0.0
        %1823 = vmatprep.subr.mxu0 0.0
        %1824 = vmatpush1.msra.mxu0 0.0
        %1825 = vmatprep.subr.mxu0 0.0
        %1826 = vmatpush1.msra.mxu0 0.0
        %1827 = vmatprep.subr.mxu0 0.0
        %1828 = vmatpush1.msra.mxu0 0.0
        %1829 = vmatprep.subr.mxu0 0.0
        %1830 = vmatpush1.msra.mxu0 0.0
        %1831 = vmatprep.subr.mxu0 0.0
        %1832 = vmatpush1.msra.mxu0 0.0
        %1833 = vmatprep.subr.mxu0 0.0
        %1834 = vmatpush1.msra.mxu0 0.0
        %1835 = vmatprep.subr.mxu0 0.0
        %1836 = vmatpush1.msra.mxu0 0.0
        %1837 = vmatprep.subr.mxu0 0.0
        %1838 = vmatpush1.msra.mxu0 0.0
        %1839 = vmatprep.subr.mxu0 0.0
        %1840 = vmatpush1.msra.mxu0 0.0
        %1841 = vmatprep.subr.mxu0 0.0
        %1842 = vmatpush1.msra.mxu0 0.0
        %1843 = vmatprep.subr.mxu0 0.0
        %1844 = vmatpush1.msra.mxu0 0.0
        %1845 = vmatprep.subr.mxu0 0.0
        %1846 = vmatpush1.msra.mxu0 0.0
        %1847 = vmatprep.subr.mxu0 0.0
        %1848 = vmatpush1.msra.mxu0 0.0
        %1849 = vmatprep.subr.mxu0 0.0
        %1850 = vmatpush1.msra.mxu0 0.0
        %1851 = vmatprep.subr.mxu0 0.0
        %1852 = vmatpush1.msra.mxu0 0.0
        %1853 = vmatprep.subr.mxu0 0.0
        %1854 = vmatpush1.msra.mxu0 0.0
        %1855 = vmatprep.mubr.f32.mxu0 0.0
        %1856 = vmatmul.mubr.f32.gmra.mrb[0].mxu0 %v1780
        %v1857 = vpop.f32.mrb[0].mxu0
        %v1858 = vadd.f32 %v1761, %v1857
        %v1859 = vpop.f32.mrb[0].mxu0
        %v1860 = vadd.f32 %v1761, %v1859
        %1861 = vmatprep.mubr.f32.mxu0 0.0
        %1862 = vmatmul.mubr.f32.gmra.mrb[0].mxu0 %v1783
        %v1863 = vpop.f32.mrb[0].mxu0
        %v1864 = vadd.f32 %v1766, %v1863
        %v1865 = vpop.f32.mrb[0].mxu0
        %v1866 = vadd.f32 %v1766, %v1865
        %1867 = vmatprep.mubr.f32.mxu0 0.0
        %1868 = vmatmul.mubr.f32.gmra.mrb[0].mxu0 %v1786
        %v1869 = vpop.f32.mrb[0].mxu0
        %v1870 = vadd.f32 %v1771, %v1869
        %v1871 = vpop.f32.mrb[0].mxu0
        %v1872 = vadd.f32 %v1771, %v1871
        %1873 = vmatprep.mubr.f32.mxu0 0.0
        %1874 = vmatmul.mubr.f32.gmra.mrb[0].mxu0 %v1789
        %v1875 = vpop.f32.mrb[0].mxu0
        %v1876 = vadd.f32 %v1776, %v1875
        %v1877 = vpop.f32.mrb[0].mxu0
        %v1878 = vadd.f32 %v1776, %v1877
        %1879 = vdwg.mxu0
        %1880 = vmatprep.subr.mxu0 0.0
        %1881 = vmatpush1.msra.mxu0 %v816
        %1882 = vmatprep.subr.mxu0 0.0
        %1883 = vmatpush1.msra.mxu0 %v1125
        %1884 = vmatprep.subr.mxu0 0.0
        %1885 = vmatpush1.msra.mxu0 %v1437
        %1886 = vmatprep.subr.mxu0 0.0
        %1887 = vmatpush1.msra.mxu0 %v1749
        %1888 = vmatprep.subr.mxu0 0.0
        %1889 = vmatpush1.msra.mxu0 0.0
        %1890 = vmatprep.subr.mxu0 0.0
        %1891 = vmatpush1.msra.mxu0 0.0
        %1892 = vmatprep.subr.mxu0 0.0
        %1893 = vmatpush1.msra.mxu0 0.0
        %1894 = vmatprep.subr.mxu0 0.0
        %1895 = vmatpush1.msra.mxu0 0.0
        %1896 = vmatprep.subr.mxu0 0.0
        %1897 = vmatpush1.msra.mxu0 0.0
        %1898 = vmatprep.subr.mxu0 0.0
        %1899 = vmatpush1.msra.mxu0 0.0
        %1900 = vmatprep.subr.mxu0 0.0
        %1901 = vmatpush1.msra.mxu0 0.0
        %1902 = vmatprep.subr.mxu0 0.0
        %1903 = vmatpush1.msra.mxu0 0.0
        %1904 = vmatprep.subr.mxu0 0.0
        %1905 = vmatpush1.msra.mxu0 0.0
        %1906 = vmatprep.subr.mxu0 0.0
        %1907 = vmatpush1.msra.mxu0 0.0
        %1908 = vmatprep.subr.mxu0 0.0
        %1909 = vmatpush1.msra.mxu0 0.0
        %1910 = vmatprep.subr.mxu0 0.0
        %1911 = vmatpush1.msra.mxu0 0.0
        %1912 = vmatprep.subr.mxu0 0.0
        %1913 = vmatpush1.msra.mxu0 0.0
        %1914 = vmatprep.subr.mxu0 0.0
        %1915 = vmatpush1.msra.mxu0 0.0
        %1916 = vmatprep.subr.mxu0 0.0
        %1917 = vmatpush1.msra.mxu0 0.0
        %1918 = vmatprep.subr.mxu0 0.0
        %1919 = vmatpush1.msra.mxu0 0.0
        %1920 = vmatprep.subr.mxu0 0.0
        %1921 = vmatpush1.msra.mxu0 0.0
        %1922 = vmatprep.subr.mxu0 0.0
        %1923 = vmatpush1.msra.mxu0 0.0
        %1924 = vmatprep.subr.mxu0 0.0
        %1925 = vmatpush1.msra.mxu0 0.0
        %1926 = vmatprep.subr.mxu0 0.0
        %1927 = vmatpush1.msra.mxu0 0.0
        %1928 = vmatprep.subr.mxu0 0.0
        %1929 = vmatpush1.msra.mxu0 0.0
        %1930 = vmatprep.subr.mxu0 0.0
        %1931 = vmatpush1.msra.mxu0 0.0
        %1932 = vmatprep.subr.mxu0 0.0
        %1933 = vmatpush1.msra.mxu0 0.0
        %1934 = vmatprep.subr.mxu0 0.0
        %1935 = vmatpush1.msra.mxu0 0.0
        %1936 = vmatprep.subr.mxu0 0.0
        %1937 = vmatpush1.msra.mxu0 0.0
        %1938 = vmatprep.subr.mxu0 0.0
        %1939 = vmatpush1.msra.mxu0 0.0
        %1940 = vmatprep.subr.mxu0 0.0
        %1941 = vmatpush1.msra.mxu0 0.0
        %1942 = vmatprep.subr.mxu0 0.0
        %1943 = vmatpush1.msra.mxu0 0.0
        %1944 = vmatprep.mubr.f32.mxu0 0.0
        %1945 = vmatmul.mubr.f32.gmra.mrb[0].mxu0 %v1780
        %v1946 = vpop.f32.mrb[0].mxu0
        %v1947 = vadd.f32 %v1761, %v1946
        %v1948 = vpop.f32.mrb[0].mxu0
        %1949 = vmatprep.mubr.f32.mxu0 0.0
        %1950 = vmatmul.mubr.f32.gmra.mrb[0].mxu0 %v1783
        %v1951 = vpop.f32.mrb[0].mxu0
        %v1952 = vadd.f32 %v1766, %v1951
        %v1953 = vpop.f32.mrb[0].mxu0
        %1954 = vmatprep.mubr.f32.mxu0 0.0
        %1955 = vmatmul.mubr.f32.gmra.mrb[0].mxu0 %v1786
        %v1956 = vpop.f32.mrb[0].mxu0
        %v1957 = vadd.f32 %v1771, %v1956
        %v1958 = vpop.f32.mrb[0].mxu0
        %1959 = vmatprep.mubr.f32.mxu0 0.0
        %1960 = vmatmul.mubr.f32.gmra.mrb[0].mxu0 %v1789
        %v1961 = vpop.f32.mrb[0].mxu0
        %v1962 = vadd.f32 %v1776, %v1961
        %v1963 = vpop.f32.mrb[0].mxu0
        %1964 = vdwg.mxu0
        %v1965 = vmax.f32 %v1858, 0.0
        %v1966 = vmax.f32 %v1860, 0.0
        %v1967 = vmax.f32 %v1947, 0.0
        %v1968 = vmax.f32 %v1864, 0.0
        %v1969 = vmax.f32 %v1866, 0.0
        %v1970 = vmax.f32 %v1952, 0.0
        %v1971 = vmax.f32 %v1870, 0.0
        %v1972 = vmax.f32 %v1872, 0.0
        %v1973 = vmax.f32 %v1957, 0.0
        %v1974 = vmax.f32 %v1876, 0.0
        %v1975 = vmax.f32 %v1878, 0.0
        %v1976 = vmax.f32 %v1962, 0.0
        %v1977 = vld [vmem:[%s408] sm:$0xff]
        %v1978 = vld [vmem:[%s408 + $0x8] sm:$0xff]
        %v1979 = vld [vmem:[%s408 + $0x10] sm:$0xff]
        %v1980 = vld [vmem:[%s408 + $0x18] sm:$0xff]
        %v1982 = vsel %vm1778, %v1977, 0
        %v1985 = vsel %vm1778, %v1978, 0
        %v1988 = vsel %vm1778, %v1979, 0
        %v1991 = vsel %vm1778, %v1980, 0
        %1993 = vmatprep.subr.mxu0 %v1966
        %1994 = vmatpush1.msra.mxu0 %v1965
        %1995 = vmatprep.subr.mxu0 %v1969
        %1996 = vmatpush1.msra.mxu0 %v1968
        %1997 = vmatprep.subr.mxu0 %v1972
        %1998 = vmatpush1.msra.mxu0 %v1971
        %1999 = vmatprep.subr.mxu0 %v1975
        %2000 = vmatpush1.msra.mxu0 %v1974
        %2001 = vmatprep.subr.mxu0 0.0
        %2002 = vmatpush1.msra.mxu0 0.0
        %2003 = vmatprep.subr.mxu0 0.0
        %2004 = vmatpush1.msra.mxu0 0.0
        %2005 = vmatprep.subr.mxu0 0.0
        %2006 = vmatpush1.msra.mxu0 0.0
        %2007 = vmatprep.subr.mxu0 0.0
        %2008 = vmatpush1.msra.mxu0 0.0
        %2009 = vmatprep.subr.mxu0 0.0
        %2010 = vmatpush1.msra.mxu0 0.0
        %2011 = vmatprep.subr.mxu0 0.0
        %2012 = vmatpush1.msra.mxu0 0.0
        %2013 = vmatprep.subr.mxu0 0.0
        %2014 = vmatpush1.msra.mxu0 0.0
        %2015 = vmatprep.subr.mxu0 0.0
        %2016 = vmatpush1.msra.mxu0 0.0
        %2017 = vmatprep.subr.mxu0 0.0
        %2018 = vmatpush1.msra.mxu0 0.0
        %2019 = vmatprep.subr.mxu0 0.0
        %2020 = vmatpush1.msra.mxu0 0.0
        %2021 = vmatprep.subr.mxu0 0.0
        %2022 = vmatpush1.msra.mxu0 0.0
        %2023 = vmatprep.subr.mxu0 0.0
        %2024 = vmatpush1.msra.mxu0 0.0
        %2025 = vmatprep.subr.mxu0 0.0
        %2026 = vmatpush1.msra.mxu0 0.0
        %2027 = vmatprep.subr.mxu0 0.0
        %2028 = vmatpush1.msra.mxu0 0.0
        %2029 = vmatprep.subr.mxu0 0.0
        %2030 = vmatpush1.msra.mxu0 0.0
        %2031 = vmatprep.subr.mxu0 0.0
        %2032 = vmatpush1.msra.mxu0 0.0
        %2033 = vmatprep.subr.mxu0 0.0
        %2034 = vmatpush1.msra.mxu0 0.0
        %2035 = vmatprep.subr.mxu0 0.0
        %2036 = vmatpush1.msra.mxu0 0.0
        %2037 = vmatprep.subr.mxu0 0.0
        %2038 = vmatpush1.msra.mxu0 0.0
        %2039 = vmatprep.subr.mxu0 0.0
        %2040 = vmatpush1.msra.mxu0 0.0
        %2041 = vmatprep.subr.mxu0 0.0
        %2042 = vmatpush1.msra.mxu0 0.0
        %2043 = vmatprep.subr.mxu0 0.0
        %2044 = vmatpush1.msra.mxu0 0.0
        %2045 = vmatprep.subr.mxu0 0.0
        %2046 = vmatpush1.msra.mxu0 0.0
        %2047 = vmatprep.subr.mxu0 0.0
        %2048 = vmatpush1.msra.mxu0 0.0
        %2049 = vmatprep.subr.mxu0 0.0
        %2050 = vmatpush1.msra.mxu0 0.0
        %2051 = vmatprep.subr.mxu0 0.0
        %2052 = vmatpush1.msra.mxu0 0.0
        %2053 = vmatprep.subr.mxu0 0.0
        %2054 = vmatpush1.msra.mxu0 0.0
        %2055 = vmatprep.subr.mxu0 0.0
        %2056 = vmatpush1.msra.mxu0 0.0
        %2057 = vmatprep.mubr.f32.mxu0 0.0
        %2058 = vmatmul.mubr.f32.gmra.mrb[0].mxu0 %v1982
        %v2059 = vpop.f32.mrb[0].mxu0
        %v2060 = vadd.f32 0.0, %v2059
        %v2061 = vpop.f32.mrb[0].mxu0
        %v2062 = vadd.f32 0.0, %v2061
        %2063 = vmatprep.mubr.f32.mxu0 0.0
        %2064 = vmatmul.mubr.f32.gmra.mrb[0].mxu0 %v1985
        %v2065 = vpop.f32.mrb[0].mxu0
        %v2066 = vadd.f32 0.0, %v2065
        %v2067 = vpop.f32.mrb[0].mxu0
        %v2068 = vadd.f32 0.0, %v2067
        %2069 = vmatprep.mubr.f32.mxu0 0.0
        %2070 = vmatmul.mubr.f32.gmra.mrb[0].mxu0 %v1988
        %v2071 = vpop.f32.mrb[0].mxu0
        %v2072 = vadd.f32 0.0, %v2071
        %v2073 = vpop.f32.mrb[0].mxu0
        %v2074 = vadd.f32 0.0, %v2073
        %2075 = vmatprep.mubr.f32.mxu0 0.0
        %2076 = vmatmul.mubr.f32.gmra.mrb[0].mxu0 %v1991
        %v2077 = vpop.f32.mrb[0].mxu0
        %v2078 = vadd.f32 0.0, %v2077
        %v2079 = vpop.f32.mrb[0].mxu0
        %v2080 = vadd.f32 0.0, %v2079
        %2081 = vdwg.mxu0
        %2082 = vmatprep.subr.mxu0 0.0
        %2083 = vmatpush1.msra.mxu0 %v1967
        %2084 = vmatprep.subr.mxu0 0.0
        %2085 = vmatpush1.msra.mxu0 %v1970
        %2086 = vmatprep.subr.mxu0 0.0
        %2087 = vmatpush1.msra.mxu0 %v1973
        %2088 = vmatprep.subr.mxu0 0.0
        %2089 = vmatpush1.msra.mxu0 %v1976
        %2090 = vmatprep.subr.mxu0 0.0
        %2091 = vmatpush1.msra.mxu0 0.0
        %2092 = vmatprep.subr.mxu0 0.0
        %2093 = vmatpush1.msra.mxu0 0.0
        %2094 = vmatprep.subr.mxu0 0.0
        %2095 = vmatpush1.msra.mxu0 0.0
        %2096 = vmatprep.subr.mxu0 0.0
        %2097 = vmatpush1.msra.mxu0 0.0
        %2098 = vmatprep.subr.mxu0 0.0
        %2099 = vmatpush1.msra.mxu0 0.0
        %2100 = vmatprep.subr.mxu0 0.0
        %2101 = vmatpush1.msra.mxu0 0.0
        %2102 = vmatprep.subr.mxu0 0.0
        %2103 = vmatpush1.msra.mxu0 0.0
        %2104 = vmatprep.subr.mxu0 0.0
        %2105 = vmatpush1.msra.mxu0 0.0
        %2106 = vmatprep.subr.mxu0 0.0
        %2107 = vmatpush1.msra.mxu0 0.0
        %2108 = vmatprep.subr.mxu0 0.0
        %2109 = vmatpush1.msra.mxu0 0.0
        %2110 = vmatprep.subr.mxu0 0.0
        %2111 = vmatpush1.msra.mxu0 0.0
        %2112 = vmatprep.subr.mxu0 0.0
        %2113 = vmatpush1.msra.mxu0 0.0
        %2114 = vmatprep.subr.mxu0 0.0
        %2115 = vmatpush1.msra.mxu0 0.0
        %2116 = vmatprep.subr.mxu0 0.0
        %2117 = vmatpush1.msra.mxu0 0.0
        %2118 = vmatprep.subr.mxu0 0.0
        %2119 = vmatpush1.msra.mxu0 0.0
        %2120 = vmatprep.subr.mxu0 0.0
        %2121 = vmatpush1.msra.mxu0 0.0
        %2122 = vmatprep.subr.mxu0 0.0
        %2123 = vmatpush1.msra.mxu0 0.0
        %2124 = vmatprep.subr.mxu0 0.0
        %2125 = vmatpush1.msra.mxu0 0.0
        %2126 = vmatprep.subr.mxu0 0.0
        %2127 = vmatpush1.msra.mxu0 0.0
        %2128 = vmatprep.subr.mxu0 0.0
        %2129 = vmatpush1.msra.mxu0 0.0
        %2130 = vmatprep.subr.mxu0 0.0
        %2131 = vmatpush1.msra.mxu0 0.0
        %2132 = vmatprep.subr.mxu0 0.0
        %2133 = vmatpush1.msra.mxu0 0.0
        %2134 = vmatprep.subr.mxu0 0.0
        %2135 = vmatpush1.msra.mxu0 0.0
        %2136 = vmatprep.subr.mxu0 0.0
        %2137 = vmatpush1.msra.mxu0 0.0
        %2138 = vmatprep.subr.mxu0 0.0
        %2139 = vmatpush1.msra.mxu0 0.0
        %2140 = vmatprep.subr.mxu0 0.0
        %2141 = vmatpush1.msra.mxu0 0.0
        %2142 = vmatprep.subr.mxu0 0.0
        %2143 = vmatpush1.msra.mxu0 0.0
        %2144 = vmatprep.subr.mxu0 0.0
        %2145 = vmatpush1.msra.mxu0 0.0
        %2146 = vmatprep.mubr.f32.mxu0 0.0
        %2147 = vmatmul.mubr.f32.gmra.mrb[0].mxu0 %v1982
        %v2148 = vpop.f32.mrb[0].mxu0
        %v2149 = vadd.f32 0.0, %v2148
        %v2150 = vpop.f32.mrb[0].mxu0
        %2151 = vmatprep.mubr.f32.mxu0 0.0
        %2152 = vmatmul.mubr.f32.gmra.mrb[0].mxu0 %v1985
        %v2153 = vpop.f32.mrb[0].mxu0
        %v2154 = vadd.f32 0.0, %v2153
        %v2155 = vpop.f32.mrb[0].mxu0
        %2156 = vmatprep.mubr.f32.mxu0 0.0
        %2157 = vmatmul.mubr.f32.gmra.mrb[0].mxu0 %v1988
        %v2158 = vpop.f32.mrb[0].mxu0
        %v2159 = vadd.f32 0.0, %v2158
        %v2160 = vpop.f32.mrb[0].mxu0
        %2161 = vmatprep.mubr.f32.mxu0 0.0
        %2162 = vmatmul.mubr.f32.gmra.mrb[0].mxu0 %v1991
        %v2163 = vpop.f32.mrb[0].mxu0
        %v2164 = vadd.f32 0.0, %v2163
        %v2165 = vpop.f32.mrb[0].mxu0
        %2166 = vdwg.mxu0
        %v2167 = vmax.f32 %v2060, 0.0
        %v2168 = vmax.f32 %v2062, 0.0
        %v2169 = vmax.f32 %v2149, 0.0
        %v2170 = vmax.f32 %v2066, 0.0
        %v2171 = vmax.f32 %v2068, 0.0
        %v2172 = vmax.f32 %v2154, 0.0
        %v2173 = vmax.f32 %v2072, 0.0
        %v2174 = vmax.f32 %v2074, 0.0
        %v2175 = vmax.f32 %v2159, 0.0
        %v2176 = vmax.f32 %v2078, 0.0
        %v2177 = vmax.f32 %v2080, 0.0
        %v2178 = vmax.f32 %v2164, 0.0
        %v2179 = vld [vmem:[%s5] sm:$0xff]
        %v2180 = vld [vmem:[%s5 + $0x8] sm:$0xff]
        %v2181 = vld [vmem:[%s5 + $0x10] sm:$0xff]
        %v2182 = vld [vmem:[%s5 + $0x18] sm:$0xff]
        %v2183 = vld [vmem:[%s6] sm:$0xff]
        %v2184 = vld [vmem:[%s6 + $0x8] sm:$0xff]
        %v2185 = vld [vmem:[%s6 + $0x10] sm:$0xff]
        %v2186 = vld [vmem:[%s6 + $0x18] sm:$0xff]
        %2188 = vset.pattern.permute.xlu0 0
        %2189 = vperm.xlu0 %2188, %v2183
        %v2190 = vpop.permute.xlu0 %2189
        %2193 = vset.pattern.permute.xlu0 0
        %2194 = vperm.xlu0 %2193, %v2184
        %v2195 = vpop.permute.xlu0 %2194
        %2198 = vset.pattern.permute.xlu0 0
        %2199 = vperm.xlu0 %2198, %v2185
        %v2200 = vpop.permute.xlu0 %2199
        %2203 = vset.pattern.permute.xlu0 0
        %2204 = vperm.xlu0 %2203, %v2186
        %v2205 = vpop.permute.xlu0 %2204
        %v2208 = vsel %vm1778, %v2179, 0
        %v2211 = vsel %vm1778, %v2180, 0
        %v2214 = vsel %vm1778, %v2181, 0
        %v2217 = vsel %vm1778, %v2182, 0
        %2219 = vmatprep.subr.mxu0 %v2168
        %2220 = vmatpush1.msra.mxu0 %v2167
        %2221 = vmatprep.subr.mxu0 %v2171
        %2222 = vmatpush1.msra.mxu0 %v2170
        %2223 = vmatprep.subr.mxu0 %v2174
        %2224 = vmatpush1.msra.mxu0 %v2173
        %2225 = vmatprep.subr.mxu0 %v2177
        %2226 = vmatpush1.msra.mxu0 %v2176
        %2227 = vmatprep.subr.mxu0 0.0
        %2228 = vmatpush1.msra.mxu0 0.0
        %2229 = vmatprep.subr.mxu0 0.0
        %2230 = vmatpush1.msra.mxu0 0.0
        %2231 = vmatprep.subr.mxu0 0.0
        %2232 = vmatpush1.msra.mxu0 0.0
        %2233 = vmatprep.subr.mxu0 0.0
        %2234 = vmatpush1.msra.mxu0 0.0
        %2235 = vmatprep.subr.mxu0 0.0
        %2236 = vmatpush1.msra.mxu0 0.0
        %2237 = vmatprep.subr.mxu0 0.0
        %2238 = vmatpush1.msra.mxu0 0.0
        %2239 = vmatprep.subr.mxu0 0.0
        %2240 = vmatpush1.msra.mxu0 0.0
        %2241 = vmatprep.subr.mxu0 0.0
        %2242 = vmatpush1.msra.mxu0 0.0
        %2243 = vmatprep.subr.mxu0 0.0
        %2244 = vmatpush1.msra.mxu0 0.0
        %2245 = vmatprep.subr.mxu0 0.0
        %2246 = vmatpush1.msra.mxu0 0.0
        %2247 = vmatprep.subr.mxu0 0.0
        %2248 = vmatpush1.msra.mxu0 0.0
        %2249 = vmatprep.subr.mxu0 0.0
        %2250 = vmatpush1.msra.mxu0 0.0
        %2251 = vmatprep.subr.mxu0 0.0
        %2252 = vmatpush1.msra.mxu0 0.0
        %2253 = vmatprep.subr.mxu0 0.0
        %2254 = vmatpush1.msra.mxu0 0.0
        %2255 = vmatprep.subr.mxu0 0.0
        %2256 = vmatpush1.msra.mxu0 0.0
        %2257 = vmatprep.subr.mxu0 0.0
        %2258 = vmatpush1.msra.mxu0 0.0
        %2259 = vmatprep.subr.mxu0 0.0
        %2260 = vmatpush1.msra.mxu0 0.0
        %2261 = vmatprep.subr.mxu0 0.0
        %2262 = vmatpush1.msra.mxu0 0.0
        %2263 = vmatprep.subr.mxu0 0.0
        %2264 = vmatpush1.msra.mxu0 0.0
        %2265 = vmatprep.subr.mxu0 0.0
        %2266 = vmatpush1.msra.mxu0 0.0
        %2267 = vmatprep.subr.mxu0 0.0
        %2268 = vmatpush1.msra.mxu0 0.0
        %2269 = vmatprep.subr.mxu0 0.0
        %2270 = vmatpush1.msra.mxu0 0.0
        %2271 = vmatprep.subr.mxu0 0.0
        %2272 = vmatpush1.msra.mxu0 0.0
        %2273 = vmatprep.subr.mxu0 0.0
        %2274 = vmatpush1.msra.mxu0 0.0
        %2275 = vmatprep.subr.mxu0 0.0
        %2276 = vmatpush1.msra.mxu0 0.0
        %2277 = vmatprep.subr.mxu0 0.0
        %2278 = vmatpush1.msra.mxu0 0.0
        %2279 = vmatprep.subr.mxu0 0.0
        %2280 = vmatpush1.msra.mxu0 0.0
        %2281 = vmatprep.subr.mxu0 0.0
        %2282 = vmatpush1.msra.mxu0 0.0
        %2283 = vmatprep.mubr.f32.mxu0 0.0
        %2284 = vmatmul.mubr.f32.gmra.mrb[0].mxu0 %v2208
        %v2285 = vpop.f32.mrb[0].mxu0
        %v2286 = vadd.f32 %v2190, %v2285
        %v2287 = vpop.f32.mrb[0].mxu0
        %v2288 = vadd.f32 %v2190, %v2287
        %2289 = vmatprep.mubr.f32.mxu0 0.0
        %2290 = vmatmul.mubr.f32.gmra.mrb[0].mxu0 %v2211
        %v2291 = vpop.f32.mrb[0].mxu0
        %v2292 = vadd.f32 %v2195, %v2291
        %v2293 = vpop.f32.mrb[0].mxu0
        %v2294 = vadd.f32 %v2195, %v2293
        %2295 = vmatprep.mubr.f32.mxu0 0.0
        %2296 = vmatmul.mubr.f32.gmra.mrb[0].mxu0 %v2214
        %v2297 = vpop.f32.mrb[0].mxu0
        %v2298 = vadd.f32 %v2200, %v2297
        %v2299 = vpop.f32.mrb[0].mxu0
        %v2300 = vadd.f32 %v2200, %v2299
        %2301 = vmatprep.mubr.f32.mxu0 0.0
        %2302 = vmatmul.mubr.f32.gmra.mrb[0].mxu0 %v2217
        %v2303 = vpop.f32.mrb[0].mxu0
        %v2304 = vadd.f32 %v2205, %v2303
        %v2305 = vpop.f32.mrb[0].mxu0
        %v2306 = vadd.f32 %v2205, %v2305
        %2307 = vdwg.mxu0
        %2308 = vmatprep.subr.mxu0 0.0
        %2309 = vmatpush1.msra.mxu0 %v2169
        %2310 = vmatprep.subr.mxu0 0.0
        %2311 = vmatpush1.msra.mxu0 %v2172
        %2312 = vmatprep.subr.mxu0 0.0
        %2313 = vmatpush1.msra.mxu0 %v2175
        %2314 = vmatprep.subr.mxu0 0.0
        %2315 = vmatpush1.msra.mxu0 %v2178
        %2316 = vmatprep.subr.mxu0 0.0
        %2317 = vmatpush1.msra.mxu0 0.0
        %2318 = vmatprep.subr.mxu0 0.0
        %2319 = vmatpush1.msra.mxu0 0.0
        %2320 = vmatprep.subr.mxu0 0.0
        %2321 = vmatpush1.msra.mxu0 0.0
        %2322 = vmatprep.subr.mxu0 0.0
        %2323 = vmatpush1.msra.mxu0 0.0
        %2324 = vmatprep.subr.mxu0 0.0
        %2325 = vmatpush1.msra.mxu0 0.0
        %2326 = vmatprep.subr.mxu0 0.0
        %2327 = vmatpush1.msra.mxu0 0.0
        %2328 = vmatprep.subr.mxu0 0.0
        %2329 = vmatpush1.msra.mxu0 0.0
        %2330 = vmatprep.subr.mxu0 0.0
        %2331 = vmatpush1.msra.mxu0 0.0
        %2332 = vmatprep.subr.mxu0 0.0
        %2333 = vmatpush1.msra.mxu0 0.0
        %2334 = vmatprep.subr.mxu0 0.0
        %2335 = vmatpush1.msra.mxu0 0.0
        %2336 = vmatprep.subr.mxu0 0.0
        %2337 = vmatpush1.msra.mxu0 0.0
        %2338 = vmatprep.subr.mxu0 0.0
        %2339 = vmatpush1.msra.mxu0 0.0
        %2340 = vmatprep.subr.mxu0 0.0
        %2341 = vmatpush1.msra.mxu0 0.0
        %2342 = vmatprep.subr.mxu0 0.0
        %2343 = vmatpush1.msra.mxu0 0.0
        %2344 = vmatprep.subr.mxu0 0.0
        %2345 = vmatpush1.msra.mxu0 0.0
        %2346 = vmatprep.subr.mxu0 0.0
        %2347 = vmatpush1.msra.mxu0 0.0
        %2348 = vmatprep.subr.mxu0 0.0
        %2349 = vmatpush1.msra.mxu0 0.0
        %2350 = vmatprep.subr.mxu0 0.0
        %2351 = vmatpush1.msra.mxu0 0.0
        %2352 = vmatprep.subr.mxu0 0.0
        %2353 = vmatpush1.msra.mxu0 0.0
        %2354 = vmatprep.subr.mxu0 0.0
        %2355 = vmatpush1.msra.mxu0 0.0
        %2356 = vmatprep.subr.mxu0 0.0
        %2357 = vmatpush1.msra.mxu0 0.0
        %2358 = vmatprep.subr.mxu0 0.0
        %2359 = vmatpush1.msra.mxu0 0.0
        %2360 = vmatprep.subr.mxu0 0.0
        %2361 = vmatpush1.msra.mxu0 0.0
        %2362 = vmatprep.subr.mxu0 0.0
        %2363 = vmatpush1.msra.mxu0 0.0
        %2364 = vmatprep.subr.mxu0 0.0
        %2365 = vmatpush1.msra.mxu0 0.0
        %2366 = vmatprep.subr.mxu0 0.0
        %2367 = vmatpush1.msra.mxu0 0.0
        %2368 = vmatprep.subr.mxu0 0.0
        %2369 = vmatpush1.msra.mxu0 0.0
        %2370 = vmatprep.subr.mxu0 0.0
        %2371 = vmatpush1.msra.mxu0 0.0
        %2372 = vmatprep.mubr.f32.mxu0 0.0
        %2373 = vmatmul.mubr.f32.gmra.mrb[0].mxu0 %v2208
        %v2374 = vpop.f32.mrb[0].mxu0
        %v2375 = vadd.f32 %v2190, %v2374
        %v2376 = vpop.f32.mrb[0].mxu0
        %2377 = vmatprep.mubr.f32.mxu0 0.0
        %2378 = vmatmul.mubr.f32.gmra.mrb[0].mxu0 %v2211
        %v2379 = vpop.f32.mrb[0].mxu0
        %v2380 = vadd.f32 %v2195, %v2379
        %v2381 = vpop.f32.mrb[0].mxu0
        %2382 = vmatprep.mubr.f32.mxu0 0.0
        %2383 = vmatmul.mubr.f32.gmra.mrb[0].mxu0 %v2214
        %v2384 = vpop.f32.mrb[0].mxu0
        %v2385 = vadd.f32 %v2200, %v2384
        %v2386 = vpop.f32.mrb[0].mxu0
        %2387 = vmatprep.mubr.f32.mxu0 0.0
        %2388 = vmatmul.mubr.f32.gmra.mrb[0].mxu0 %v2217
        %v2389 = vpop.f32.mrb[0].mxu0
        %v2390 = vadd.f32 %v2205, %v2389
        %v2391 = vpop.f32.mrb[0].mxu0
        %2392 = vdwg.mxu0
        %v2393 = vmax.f32 %v2286, 0.0
        %v2394 = vmax.f32 %v2288, 0.0
        %v2395 = vmax.f32 %v2375, 0.0
        %v2396 = vmax.f32 %v2292, 0.0
        %v2397 = vmax.f32 %v2294, 0.0
        %v2398 = vmax.f32 %v2380, 0.0
        %v2399 = vmax.f32 %v2298, 0.0
        %v2400 = vmax.f32 %v2300, 0.0
        %v2401 = vmax.f32 %v2385, 0.0
        %v2402 = vmax.f32 %v2304, 0.0
        %v2403 = vmax.f32 %v2306, 0.0
        %v2404 = vmax.f32 %v2390, 0.0
        %s2405 = scalar_lea.vmem %s5, 32
        %v2406 = vld [vmem:[%s2405] sm:$0xff]
        %v2407 = vld [vmem:[%s2405 + $0x8] sm:$0xff]
        %v2408 = vld [vmem:[%s2405 + $0x10] sm:$0xff]
        %v2409 = vld [vmem:[%s2405 + $0x18] sm:$0xff]
        %s2410 = scalar_lea.vmem %s6, 32
        %v2411 = vld [vmem:[%s2410] sm:$0xff]
        %v2412 = vld [vmem:[%s2410 + $0x8] sm:$0xff]
        %v2413 = vld [vmem:[%s2410 + $0x10] sm:$0xff]
        %v2414 = vld [vmem:[%s2410 + $0x18] sm:$0xff]
        %2416 = vset.pattern.permute.xlu0 0
        %2417 = vperm.xlu0 %2416, %v2411
        %v2418 = vpop.permute.xlu0 %2417
        %2421 = vset.pattern.permute.xlu0 0
        %2422 = vperm.xlu0 %2421, %v2412
        %v2423 = vpop.permute.xlu0 %2422
        %2426 = vset.pattern.permute.xlu0 0
        %2427 = vperm.xlu0 %2426, %v2413
        %v2428 = vpop.permute.xlu0 %2427
        %2431 = vset.pattern.permute.xlu0 0
        %2432 = vperm.xlu0 %2431, %v2414
        %v2433 = vpop.permute.xlu0 %2432
        %v2436 = vsel %vm1778, %v2406, 0
        %v2439 = vsel %vm1778, %v2407, 0
        %v2442 = vsel %vm1778, %v2408, 0
        %v2445 = vsel %vm1778, %v2409, 0
        %2447 = vmatprep.subr.mxu0 %v2394
        %2448 = vmatpush1.msra.mxu0 %v2393
        %2449 = vmatprep.subr.mxu0 %v2397
        %2450 = vmatpush1.msra.mxu0 %v2396
        %2451 = vmatprep.subr.mxu0 %v2400
        %2452 = vmatpush1.msra.mxu0 %v2399
        %2453 = vmatprep.subr.mxu0 %v2403
        %2454 = vmatpush1.msra.mxu0 %v2402
        %2455 = vmatprep.subr.mxu0 0.0
        %2456 = vmatpush1.msra.mxu0 0.0
        %2457 = vmatprep.subr.mxu0 0.0
        %2458 = vmatpush1.msra.mxu0 0.0
        %2459 = vmatprep.subr.mxu0 0.0
        %2460 = vmatpush1.msra.mxu0 0.0
        %2461 = vmatprep.subr.mxu0 0.0
        %2462 = vmatpush1.msra.mxu0 0.0
        %2463 = vmatprep.subr.mxu0 0.0
        %2464 = vmatpush1.msra.mxu0 0.0
        %2465 = vmatprep.subr.mxu0 0.0
        %2466 = vmatpush1.msra.mxu0 0.0
        %2467 = vmatprep.subr.mxu0 0.0
        %2468 = vmatpush1.msra.mxu0 0.0
        %2469 = vmatprep.subr.mxu0 0.0
        %2470 = vmatpush1.msra.mxu0 0.0
        %2471 = vmatprep.subr.mxu0 0.0
        %2472 = vmatpush1.msra.mxu0 0.0
        %2473 = vmatprep.subr.mxu0 0.0
        %2474 = vmatpush1.msra.mxu0 0.0
        %2475 = vmatprep.subr.mxu0 0.0
        %2476 = vmatpush1.msra.mxu0 0.0
        %2477 = vmatprep.subr.mxu0 0.0
        %2478 = vmatpush1.msra.mxu0 0.0
        %2479 = vmatprep.subr.mxu0 0.0
        %2480 = vmatpush1.msra.mxu0 0.0
        %2481 = vmatprep.subr.mxu0 0.0
        %2482 = vmatpush1.msra.mxu0 0.0
        %2483 = vmatprep.subr.mxu0 0.0
        %2484 = vmatpush1.msra.mxu0 0.0
        %2485 = vmatprep.subr.mxu0 0.0
        %2486 = vmatpush1.msra.mxu0 0.0
        %2487 = vmatprep.subr.mxu0 0.0
        %2488 = vmatpush1.msra.mxu0 0.0
        %2489 = vmatprep.subr.mxu0 0.0
        %2490 = vmatpush1.msra.mxu0 0.0
        %2491 = vmatprep.subr.mxu0 0.0
        %2492 = vmatpush1.msra.mxu0 0.0
        %2493 = vmatprep.subr.mxu0 0.0
        %2494 = vmatpush1.msra.mxu0 0.0
        %2495 = vmatprep.subr.mxu0 0.0
        %2496 = vmatpush1.msra.mxu0 0.0
        %2497 = vmatprep.subr.mxu0 0.0
        %2498 = vmatpush1.msra.mxu0 0.0
        %2499 = vmatprep.subr.mxu0 0.0
        %2500 = vmatpush1.msra.mxu0 0.0
        %2501 = vmatprep.subr.mxu0 0.0
        %2502 = vmatpush1.msra.mxu0 0.0
        %2503 = vmatprep.subr.mxu0 0.0
        %2504 = vmatpush1.msra.mxu0 0.0
        %2505 = vmatprep.subr.mxu0 0.0
        %2506 = vmatpush1.msra.mxu0 0.0
        %2507 = vmatprep.subr.mxu0 0.0
        %2508 = vmatpush1.msra.mxu0 0.0
        %2509 = vmatprep.subr.mxu0 0.0
        %2510 = vmatpush1.msra.mxu0 0.0
        %2511 = vmatprep.mubr.f32.mxu0 0.0
        %2512 = vmatmul.mubr.f32.gmra.mrb[0].mxu0 %v2436
        %v2513 = vpop.f32.mrb[0].mxu0
        %v2514 = vadd.f32 %v2418, %v2513
        %v2515 = vpop.f32.mrb[0].mxu0
        %v2516 = vadd.f32 %v2418, %v2515
        %2517 = vmatprep.mubr.f32.mxu0 0.0
        %2518 = vmatmul.mubr.f32.gmra.mrb[0].mxu0 %v2439
        %v2519 = vpop.f32.mrb[0].mxu0
        %v2520 = vadd.f32 %v2423, %v2519
        %v2521 = vpop.f32.mrb[0].mxu0
        %v2522 = vadd.f32 %v2423, %v2521
        %2523 = vmatprep.mubr.f32.mxu0 0.0
        %2524 = vmatmul.mubr.f32.gmra.mrb[0].mxu0 %v2442
        %v2525 = vpop.f32.mrb[0].mxu0
        %v2526 = vadd.f32 %v2428, %v2525
        %v2527 = vpop.f32.mrb[0].mxu0
        %v2528 = vadd.f32 %v2428, %v2527
        %2529 = vmatprep.mubr.f32.mxu0 0.0
        %2530 = vmatmul.mubr.f32.gmra.mrb[0].mxu0 %v2445
        %v2531 = vpop.f32.mrb[0].mxu0
        %v2532 = vadd.f32 %v2433, %v2531
        %v2533 = vpop.f32.mrb[0].mxu0
        %v2534 = vadd.f32 %v2433, %v2533
        %2535 = vdwg.mxu0
        %2536 = vmatprep.subr.mxu0 0.0
        %2537 = vmatpush1.msra.mxu0 %v2395
        %2538 = vmatprep.subr.mxu0 0.0
        %2539 = vmatpush1.msra.mxu0 %v2398
        %2540 = vmatprep.subr.mxu0 0.0
        %2541 = vmatpush1.msra.mxu0 %v2401
        %2542 = vmatprep.subr.mxu0 0.0
        %2543 = vmatpush1.msra.mxu0 %v2404
        %2544 = vmatprep.subr.mxu0 0.0
        %2545 = vmatpush1.msra.mxu0 0.0
        %2546 = vmatprep.subr.mxu0 0.0
        %2547 = vmatpush1.msra.mxu0 0.0
        %2548 = vmatprep.subr.mxu0 0.0
        %2549 = vmatpush1.msra.mxu0 0.0
        %2550 = vmatprep.subr.mxu0 0.0
        %2551 = vmatpush1.msra.mxu0 0.0
        %2552 = vmatprep.subr.mxu0 0.0
        %2553 = vmatpush1.msra.mxu0 0.0
        %2554 = vmatprep.subr.mxu0 0.0
        %2555 = vmatpush1.msra.mxu0 0.0
        %2556 = vmatprep.subr.mxu0 0.0
        %2557 = vmatpush1.msra.mxu0 0.0
        %2558 = vmatprep.subr.mxu0 0.0
        %2559 = vmatpush1.msra.mxu0 0.0
        %2560 = vmatprep.subr.mxu0 0.0
        %2561 = vmatpush1.msra.mxu0 0.0
        %2562 = vmatprep.subr.mxu0 0.0
        %2563 = vmatpush1.msra.mxu0 0.0
        %2564 = vmatprep.subr.mxu0 0.0
        %2565 = vmatpush1.msra.mxu0 0.0
        %2566 = vmatprep.subr.mxu0 0.0
        %2567 = vmatpush1.msra.mxu0 0.0
        %2568 = vmatprep.subr.mxu0 0.0
        %2569 = vmatpush1.msra.mxu0 0.0
        %2570 = vmatprep.subr.mxu0 0.0
        %2571 = vmatpush1.msra.mxu0 0.0
        %2572 = vmatprep.subr.mxu0 0.0
        %2573 = vmatpush1.msra.mxu0 0.0
        %2574 = vmatprep.subr.mxu0 0.0
        %2575 = vmatpush1.msra.mxu0 0.0
        %2576 = vmatprep.subr.mxu0 0.0
        %2577 = vmatpush1.msra.mxu0 0.0
        %2578 = vmatprep.subr.mxu0 0.0
        %2579 = vmatpush1.msra.mxu0 0.0
        %2580 = vmatprep.subr.mxu0 0.0
        %2581 = vmatpush1.msra.mxu0 0.0
        %2582 = vmatprep.subr.mxu0 0.0
        %2583 = vmatpush1.msra.mxu0 0.0
        %2584 = vmatprep.subr.mxu0 0.0
        %2585 = vmatpush1.msra.mxu0 0.0
        %2586 = vmatprep.subr.mxu0 0.0
        %2587 = vmatpush1.msra.mxu0 0.0
        %2588 = vmatprep.subr.mxu0 0.0
        %2589 = vmatpush1.msra.mxu0 0.0
        %2590 = vmatprep.subr.mxu0 0.0
        %2591 = vmatpush1.msra.mxu0 0.0
        %2592 = vmatprep.subr.mxu0 0.0
        %2593 = vmatpush1.msra.mxu0 0.0
        %2594 = vmatprep.subr.mxu0 0.0
        %2595 = vmatpush1.msra.mxu0 0.0
        %2596 = vmatprep.subr.mxu0 0.0
        %2597 = vmatpush1.msra.mxu0 0.0
        %2598 = vmatprep.subr.mxu0 0.0
        %2599 = vmatpush1.msra.mxu0 0.0
        %2600 = vmatprep.mubr.f32.mxu0 0.0
        %2601 = vmatmul.mubr.f32.gmra.mrb[0].mxu0 %v2436
        %v2602 = vpop.f32.mrb[0].mxu0
        %v2603 = vadd.f32 %v2418, %v2602
        %v2604 = vpop.f32.mrb[0].mxu0
        %2605 = vmatprep.mubr.f32.mxu0 0.0
        %2606 = vmatmul.mubr.f32.gmra.mrb[0].mxu0 %v2439
        %v2607 = vpop.f32.mrb[0].mxu0
        %v2608 = vadd.f32 %v2423, %v2607
        %v2609 = vpop.f32.mrb[0].mxu0
        %2610 = vmatprep.mubr.f32.mxu0 0.0
        %2611 = vmatmul.mubr.f32.gmra.mrb[0].mxu0 %v2442
        %v2612 = vpop.f32.mrb[0].mxu0
        %v2613 = vadd.f32 %v2428, %v2612
        %v2614 = vpop.f32.mrb[0].mxu0
        %2615 = vmatprep.mubr.f32.mxu0 0.0
        %2616 = vmatmul.mubr.f32.gmra.mrb[0].mxu0 %v2445
        %v2617 = vpop.f32.mrb[0].mxu0
        %v2618 = vadd.f32 %v2433, %v2617
        %v2619 = vpop.f32.mrb[0].mxu0
        %2620 = vdwg.mxu0
        %v2621 = vmax.f32 %v2514, 0.0
        %v2622 = vmax.f32 %v2516, 0.0
        %v2623 = vmax.f32 %v2603, 0.0
        %v2624 = vmax.f32 %v2520, 0.0
        %v2625 = vmax.f32 %v2522, 0.0
        %v2626 = vmax.f32 %v2608, 0.0
        %v2627 = vmax.f32 %v2526, 0.0
        %v2628 = vmax.f32 %v2528, 0.0
        %v2629 = vmax.f32 %v2613, 0.0
        %v2630 = vmax.f32 %v2532, 0.0
        %v2631 = vmax.f32 %v2534, 0.0
        %v2632 = vmax.f32 %v2618, 0.0
        %v2633 = vld [vmem:[%s7] sm:$0x7]
        %v2634 = vld [vmem:[%s8] sm:$0x7]
        %2636 = vset.pattern.permute.xlu0 0
        %2637 = vperm.xlu0 %2636, %v2634
        %v2638 = vpop.permute.xlu0 %2637
        %v2641 = vsel %vm1778, %v2633, 0
        %2643 = vmatprep.subr.mxu0 %v2622
        %2644 = vmatpush1.msra.mxu0 %v2621
        %2645 = vmatprep.subr.mxu0 %v2625
        %2646 = vmatpush1.msra.mxu0 %v2624
        %2647 = vmatprep.subr.mxu0 %v2628
        %2648 = vmatpush1.msra.mxu0 %v2627
        %2649 = vmatprep.subr.mxu0 %v2631
        %2650 = vmatpush1.msra.mxu0 %v2630
        %2651 = vmatprep.subr.mxu0 0.0
        %2652 = vmatpush1.msra.mxu0 0.0
        %2653 = vmatprep.subr.mxu0 0.0
        %2654 = vmatpush1.msra.mxu0 0.0
        %2655 = vmatprep.subr.mxu0 0.0
        %2656 = vmatpush1.msra.mxu0 0.0
        %2657 = vmatprep.subr.mxu0 0.0
        %2658 = vmatpush1.msra.mxu0 0.0
        %2659 = vmatprep.subr.mxu0 0.0
        %2660 = vmatpush1.msra.mxu0 0.0
        %2661 = vmatprep.subr.mxu0 0.0
        %2662 = vmatpush1.msra.mxu0 0.0
        %2663 = vmatprep.subr.mxu0 0.0
        %2664 = vmatpush1.msra.mxu0 0.0
        %2665 = vmatprep.subr.mxu0 0.0
        %2666 = vmatpush1.msra.mxu0 0.0
        %2667 = vmatprep.subr.mxu0 0.0
        %2668 = vmatpush1.msra.mxu0 0.0
        %2669 = vmatprep.subr.mxu0 0.0
        %2670 = vmatpush1.msra.mxu0 0.0
        %2671 = vmatprep.subr.mxu0 0.0
        %2672 = vmatpush1.msra.mxu0 0.0
        %2673 = vmatprep.subr.mxu0 0.0
        %2674 = vmatpush1.msra.mxu0 0.0
        %2675 = vmatprep.subr.mxu0 0.0
        %2676 = vmatpush1.msra.mxu0 0.0
        %2677 = vmatprep.subr.mxu0 0.0
        %2678 = vmatpush1.msra.mxu0 0.0
        %2679 = vmatprep.subr.mxu0 0.0
        %2680 = vmatpush1.msra.mxu0 0.0
        %2681 = vmatprep.subr.mxu0 0.0
        %2682 = vmatpush1.msra.mxu0 0.0
        %2683 = vmatprep.subr.mxu0 0.0
        %2684 = vmatpush1.msra.mxu0 0.0
        %2685 = vmatprep.subr.mxu0 0.0
        %2686 = vmatpush1.msra.mxu0 0.0
        %2687 = vmatprep.subr.mxu0 0.0
        %2688 = vmatpush1.msra.mxu0 0.0
        %2689 = vmatprep.subr.mxu0 0.0
        %2690 = vmatpush1.msra.mxu0 0.0
        %2691 = vmatprep.subr.mxu0 0.0
        %2692 = vmatpush1.msra.mxu0 0.0
        %2693 = vmatprep.subr.mxu0 0.0
        %2694 = vmatpush1.msra.mxu0 0.0
        %2695 = vmatprep.subr.mxu0 0.0
        %2696 = vmatpush1.msra.mxu0 0.0
        %2697 = vmatprep.subr.mxu0 0.0
        %2698 = vmatpush1.msra.mxu0 0.0
        %2699 = vmatprep.subr.mxu0 0.0
        %2700 = vmatpush1.msra.mxu0 0.0
        %2701 = vmatprep.subr.mxu0 0.0
        %2702 = vmatpush1.msra.mxu0 0.0
        %2703 = vmatprep.subr.mxu0 0.0
        %2704 = vmatpush1.msra.mxu0 0.0
        %2705 = vmatprep.subr.mxu0 0.0
        %2706 = vmatpush1.msra.mxu0 0.0
        %2707 = vmatprep.mubr.f32.mxu0 0.0
        %2708 = vmatmul.mubr.f32.gmra.mrb[0].mxu0 %v2641
        %v2709 = vpop.f32.mrb[0].mxu0
        %v2710 = vadd.f32 %v2638, %v2709
        %v2711 = vpop.f32.mrb[0].mxu0
        %v2712 = vadd.f32 %v2638, %v2711
        %2713 = vdwg.mxu0
        %2714 = vmatprep.subr.mxu0 0.0
        %2715 = vmatpush1.msra.mxu0 %v2623
        %2716 = vmatprep.subr.mxu0 0.0
        %2717 = vmatpush1.msra.mxu0 %v2626
        %2718 = vmatprep.subr.mxu0 0.0
        %2719 = vmatpush1.msra.mxu0 %v2629
        %2720 = vmatprep.subr.mxu0 0.0
        %2721 = vmatpush1.msra.mxu0 %v2632
        %2722 = vmatprep.subr.mxu0 0.0
        %2723 = vmatpush1.msra.mxu0 0.0
        %2724 = vmatprep.subr.mxu0 0.0
        %2725 = vmatpush1.msra.mxu0 0.0
        %2726 = vmatprep.subr.mxu0 0.0
        %2727 = vmatpush1.msra.mxu0 0.0
        %2728 = vmatprep.subr.mxu0 0.0
        %2729 = vmatpush1.msra.mxu0 0.0
        %2730 = vmatprep.subr.mxu0 0.0
        %2731 = vmatpush1.msra.mxu0 0.0
        %2732 = vmatprep.subr.mxu0 0.0
        %2733 = vmatpush1.msra.mxu0 0.0
        %2734 = vmatprep.subr.mxu0 0.0
        %2735 = vmatpush1.msra.mxu0 0.0
        %2736 = vmatprep.subr.mxu0 0.0
        %2737 = vmatpush1.msra.mxu0 0.0
        %2738 = vmatprep.subr.mxu0 0.0
        %2739 = vmatpush1.msra.mxu0 0.0
        %2740 = vmatprep.subr.mxu0 0.0
        %2741 = vmatpush1.msra.mxu0 0.0
        %2742 = vmatprep.subr.mxu0 0.0
        %2743 = vmatpush1.msra.mxu0 0.0
        %2744 = vmatprep.subr.mxu0 0.0
        %2745 = vmatpush1.msra.mxu0 0.0
        %2746 = vmatprep.subr.mxu0 0.0
        %2747 = vmatpush1.msra.mxu0 0.0
        %2748 = vmatprep.subr.mxu0 0.0
        %2749 = vmatpush1.msra.mxu0 0.0
        %2750 = vmatprep.subr.mxu0 0.0
        %2751 = vmatpush1.msra.mxu0 0.0
        %2752 = vmatprep.subr.mxu0 0.0
        %2753 = vmatpush1.msra.mxu0 0.0
        %2754 = vmatprep.subr.mxu0 0.0
        %2755 = vmatpush1.msra.mxu0 0.0
        %2756 = vmatprep.subr.mxu0 0.0
        %2757 = vmatpush1.msra.mxu0 0.0
        %2758 = vmatprep.subr.mxu0 0.0
        %2759 = vmatpush1.msra.mxu0 0.0
        %2760 = vmatprep.subr.mxu0 0.0
        %2761 = vmatpush1.msra.mxu0 0.0
        %2762 = vmatprep.subr.mxu0 0.0
        %2763 = vmatpush1.msra.mxu0 0.0
        %2764 = vmatprep.subr.mxu0 0.0
        %2765 = vmatpush1.msra.mxu0 0.0
        %2766 = vmatprep.subr.mxu0 0.0
        %2767 = vmatpush1.msra.mxu0 0.0
        %2768 = vmatprep.subr.mxu0 0.0
        %2769 = vmatpush1.msra.mxu0 0.0
        %2770 = vmatprep.subr.mxu0 0.0
        %2771 = vmatpush1.msra.mxu0 0.0
        %2772 = vmatprep.subr.mxu0 0.0
        %2773 = vmatpush1.msra.mxu0 0.0
        %2774 = vmatprep.subr.mxu0 0.0
        %2775 = vmatpush1.msra.mxu0 0.0
        %2776 = vmatprep.subr.mxu0 0.0
        %2777 = vmatpush1.msra.mxu0 0.0
        %2778 = vmatprep.mubr.f32.mxu0 0.0
        %2779 = vmatmul.mubr.f32.gmra.mrb[0].mxu0 %v2641
        %v2780 = vpop.f32.mrb[0].mxu0
        %v2781 = vadd.f32 %v2638, %v2780
        %v2782 = vpop.f32.mrb[0].mxu0
        %2783 = vdwg.mxu0
        %v2786 = vcombine.low %v2710, %v2712
        %2788 = vst [vmem:[%s398] sm:$0x77] %v2786
        %2789 = vst [vmem:[%s398 + $0x8] sm:$0x7] %v2781
        %s2790 = sand.u32 %s247, 1
        %s2791 = sand.u32 %s247, 1
        %s2792 = smul.addr %s2791, 12
        %s2793 = scalar_lea.vmem [#allocation6], %s2792
        // Predicated region
        $region65: #{tpu_custom_call.1} parent=55 // pred_check
          %p2794 = pneg %p257
        $region66: #{tpu_custom_call.1} parent=55 // pred_check_branch
          %2796 = sbr.rel (%p2794) target = $region68
        $region67: #{tpu_custom_call.1} parent=55 // pred_region
          %s2797 = smul.u32 3, %s29
          %s2798 = ssub.s32 4, %s2797
          %p2799 = scmp.lt.s32.totalorder %s2798, 3
          %s2800 = scalar_select %p2799, %s2798, 3
          %s2801 = smul.u32 64, %s2800
          %p2802 = scmp.ne.s32.totalorder 0, %s2801
          %s2803 = smul.addr %s28, 4
          %s2804 = sadd.s32 %s2797, %s2803
          %s2805 = smul.addr %s2804, 4
          %s2806 = scalar_lea.vmem %s9, %s2805
          %s2807 = smul.u32 %s2800, 4
          // Predicated region
          $region69: #{tpu_custom_call.1} parent=67 // pred_check
            %p2808 = pneg %p2802
          $region70: #{tpu_custom_call.1} parent=67 // pred_check_branch
            %2810 = sbr.rel (%p2808) target = $region72
          $region71: #{tpu_custom_call.1} parent=67 // pred_region
            %p2811 = scmp.lt.u32.totalorder %s2807, 8
            %p2812 = pneg %p2811
            // Predicated region
            $region73: #{tpu_custom_call.1} parent=71 // pred_check
              _
            $region74: #{tpu_custom_call.1} parent=71 // pred_check_branch
              %2814 = sbr.rel (%p2811) target = $region76
            $region75: #{tpu_custom_call.1} parent=71 // pred_region
              %s2829 = sand.u32 %s2807, 7
              %p2830 = scmp.eq.s32.totalorder %s2829, 0
              // Predicated region
              $region88: #{tpu_custom_call.1} parent=75 // pred_check
                %p2831 = pneg %p2830
              $region89: #{tpu_custom_call.1} parent=75 // pred_check_branch
                %2833 = sbr.rel (%p2831) target = $region91
              $region90: #{tpu_custom_call.1} parent=75 // pred_region
                %s2834 = sshrl.u32 %s2807, 3
                %s2835 = sshrl.u32 %s2834, 6
                // While loop
                $region92: #{tpu_custom_call.1} parent=90 // loop_pre_header
                  _
                $region93: #{tpu_custom_call.1} parent=90 // loop_header
                  %s2839 = sphi 0, %s2841
                  %p2840 = scmp.ge.s32.totalorder %s2839, %s2835
                  %s2844 = sphi 0, %s2977
                  %s2845 = sphi %s2793, %s2980
                  %s2846 = sphi %s2806, %s2981
                $region94: #{tpu_custom_call.1} parent=90 // loop_header_branch
                  %2843 = sbr.rel (%p2840) target = $region98
                $region95: #{tpu_custom_call.1} parent=90 // loop_body
                  %v2847 = vld [vmem:[%s2845] sm:$0xff]
                  %2848 = vst [vmem:[%s2846] sm:$0xff] %v2847
                  %v2849 = vld [vmem:[%s2845 + $0x8] sm:$0xff]
                  %2850 = vst [vmem:[%s2846 + $0x8] sm:$0xff] %v2849
                  %v2851 = vld [vmem:[%s2845 + $0x10] sm:$0xff]
                  %2852 = vst [vmem:[%s2846 + $0x10] sm:$0xff] %v2851
                  %v2853 = vld [vmem:[%s2845 + $0x18] sm:$0xff]
                  %2854 = vst [vmem:[%s2846 + $0x18] sm:$0xff] %v2853
                  %v2855 = vld [vmem:[%s2845 + $0x20] sm:$0xff]
                  %2856 = vst [vmem:[%s2846 + $0x20] sm:$0xff] %v2855
                  %v2857 = vld [vmem:[%s2845 + $0x28] sm:$0xff]
                  %2858 = vst [vmem:[%s2846 + $0x28] sm:$0xff] %v2857
                  %v2859 = vld [vmem:[%s2845 + $0x30] sm:$0xff]
                  %2860 = vst [vmem:[%s2846 + $0x30] sm:$0xff] %v2859
                  %v2861 = vld [vmem:[%s2845 + $0x38] sm:$0xff]
                  %2862 = vst [vmem:[%s2846 + $0x38] sm:$0xff] %v2861
                  %v2863 = vld [vmem:[%s2845 + $0x40] sm:$0xff]
                  %2864 = vst [vmem:[%s2846 + $0x40] sm:$0xff] %v2863
                  %v2865 = vld [vmem:[%s2845 + $0x48] sm:$0xff]
                  %2866 = vst [vmem:[%s2846 + $0x48] sm:$0xff] %v2865
                  %v2867 = vld [vmem:[%s2845 + $0x50] sm:$0xff]
                  %2868 = vst [vmem:[%s2846 + $0x50] sm:$0xff] %v2867
                  %v2869 = vld [vmem:[%s2845 + $0x58] sm:$0xff]
                  %2870 = vst [vmem:[%s2846 + $0x58] sm:$0xff] %v2869
                  %v2871 = vld [vmem:[%s2845 + $0x60] sm:$0xff]
                  %2872 = vst [vmem:[%s2846 + $0x60] sm:$0xff] %v2871
                  %v2873 = vld [vmem:[%s2845 + $0x68] sm:$0xff]
                  %2874 = vst [vmem:[%s2846 + $0x68] sm:$0xff] %v2873
                  %v2875 = vld [vmem:[%s2845 + $0x70] sm:$0xff]
                  %2876 = vst [vmem:[%s2846 + $0x70] sm:$0xff] %v2875
                  %v2877 = vld [vmem:[%s2845 + $0x78] sm:$0xff]
                  %2878 = vst [vmem:[%s2846 + $0x78] sm:$0xff] %v2877
                  %v2879 = vld [vmem:[%s2845 + $0x80] sm:$0xff]
                  %2880 = vst [vmem:[%s2846 + $0x80] sm:$0xff] %v2879
                  %v2881 = vld [vmem:[%s2845 + $0x88] sm:$0xff]
                  %2882 = vst [vmem:[%s2846 + $0x88] sm:$0xff] %v2881
                  %v2883 = vld [vmem:[%s2845 + $0x90] sm:$0xff]
                  %2884 = vst [vmem:[%s2846 + $0x90] sm:$0xff] %v2883
                  %v2885 = vld [vmem:[%s2845 + $0x98] sm:$0xff]
                  %2886 = vst [vmem:[%s2846 + $0x98] sm:$0xff] %v2885
                  %v2887 = vld [vmem:[%s2845 + $0xa0] sm:$0xff]
                  %2888 = vst [vmem:[%s2846 + $0xa0] sm:$0xff] %v2887
                  %v2889 = vld [vmem:[%s2845 + $0xa8] sm:$0xff]
                  %2890 = vst [vmem:[%s2846 + $0xa8] sm:$0xff] %v2889
                  %v2891 = vld [vmem:[%s2845 + $0xb0] sm:$0xff]
                  %2892 = vst [vmem:[%s2846 + $0xb0] sm:$0xff] %v2891
                  %v2893 = vld [vmem:[%s2845 + $0xb8] sm:$0xff]
                  %2894 = vst [vmem:[%s2846 + $0xb8] sm:$0xff] %v2893
                  %v2895 = vld [vmem:[%s2845 + $0xc0] sm:$0xff]
                  %2896 = vst [vmem:[%s2846 + $0xc0] sm:$0xff] %v2895
                  %v2897 = vld [vmem:[%s2845 + $0xc8] sm:$0xff]
                  %2898 = vst [vmem:[%s2846 + $0xc8] sm:$0xff] %v2897
                  %v2899 = vld [vmem:[%s2845 + $0xd0] sm:$0xff]
                  %2900 = vst [vmem:[%s2846 + $0xd0] sm:$0xff] %v2899
                  %v2901 = vld [vmem:[%s2845 + $0xd8] sm:$0xff]
                  %2902 = vst [vmem:[%s2846 + $0xd8] sm:$0xff] %v2901
                  %v2903 = vld [vmem:[%s2845 + $0xe0] sm:$0xff]
                  %2904 = vst [vmem:[%s2846 + $0xe0] sm:$0xff] %v2903
                  %v2905 = vld [vmem:[%s2845 + $0xe8] sm:$0xff]
                  %2906 = vst [vmem:[%s2846 + $0xe8] sm:$0xff] %v2905
                  %v2907 = vld [vmem:[%s2845 + $0xf0] sm:$0xff]
                  %2908 = vst [vmem:[%s2846 + $0xf0] sm:$0xff] %v2907
                  %v2909 = vld [vmem:[%s2845 + $0xf8] sm:$0xff]
                  %2910 = vst [vmem:[%s2846 + $0xf8] sm:$0xff] %v2909
                  %v2911 = vld [vmem:[%s2845 + $0x100] sm:$0xff]
                  %2912 = vst [vmem:[%s2846 + $0x100] sm:$0xff] %v2911
                  %v2913 = vld [vmem:[%s2845 + $0x108] sm:$0xff]
                  %2914 = vst [vmem:[%s2846 + $0x108] sm:$0xff] %v2913
                  %v2915 = vld [vmem:[%s2845 + $0x110] sm:$0xff]
                  %2916 = vst [vmem:[%s2846 + $0x110] sm:$0xff] %v2915
                  %v2917 = vld [vmem:[%s2845 + $0x118] sm:$0xff]
                  %2918 = vst [vmem:[%s2846 + $0x118] sm:$0xff] %v2917
                  %v2919 = vld [vmem:[%s2845 + $0x120] sm:$0xff]
                  %2920 = vst [vmem:[%s2846 + $0x120] sm:$0xff] %v2919
                  %v2921 = vld [vmem:[%s2845 + $0x128] sm:$0xff]
                  %2922 = vst [vmem:[%s2846 + $0x128] sm:$0xff] %v2921
                  %v2923 = vld [vmem:[%s2845 + $0x130] sm:$0xff]
                  %2924 = vst [vmem:[%s2846 + $0x130] sm:$0xff] %v2923
                  %v2925 = vld [vmem:[%s2845 + $0x138] sm:$0xff]
                  %2926 = vst [vmem:[%s2846 + $0x138] sm:$0xff] %v2925
                  %v2927 = vld [vmem:[%s2845 + $0x140] sm:$0xff]
                  %2928 = vst [vmem:[%s2846 + $0x140] sm:$0xff] %v2927
                  %v2929 = vld [vmem:[%s2845 + $0x148] sm:$0xff]
                  %2930 = vst [vmem:[%s2846 + $0x148] sm:$0xff] %v2929
                  %v2931 = vld [vmem:[%s2845 + $0x150] sm:$0xff]
                  %2932 = vst [vmem:[%s2846 + $0x150] sm:$0xff] %v2931
                  %v2933 = vld [vmem:[%s2845 + $0x158] sm:$0xff]
                  %2934 = vst [vmem:[%s2846 + $0x158] sm:$0xff] %v2933
                  %v2935 = vld [vmem:[%s2845 + $0x160] sm:$0xff]
                  %2936 = vst [vmem:[%s2846 + $0x160] sm:$0xff] %v2935
                  %v2937 = vld [vmem:[%s2845 + $0x168] sm:$0xff]
                  %2938 = vst [vmem:[%s2846 + $0x168] sm:$0xff] %v2937
                  %v2939 = vld [vmem:[%s2845 + $0x170] sm:$0xff]
                  %2940 = vst [vmem:[%s2846 + $0x170] sm:$0xff] %v2939
                  %v2941 = vld [vmem:[%s2845 + $0x178] sm:$0xff]
                  %2942 = vst [vmem:[%s2846 + $0x178] sm:$0xff] %v2941
                  %v2943 = vld [vmem:[%s2845 + $0x180] sm:$0xff]
                  %2944 = vst [vmem:[%s2846 + $0x180] sm:$0xff] %v2943
                  %v2945 = vld [vmem:[%s2845 + $0x188] sm:$0xff]
                  %2946 = vst [vmem:[%s2846 + $0x188] sm:$0xff] %v2945
                  %v2947 = vld [vmem:[%s2845 + $0x190] sm:$0xff]
                  %2948 = vst [vmem:[%s2846 + $0x190] sm:$0xff] %v2947
                  %v2949 = vld [vmem:[%s2845 + $0x198] sm:$0xff]
                  %2950 = vst [vmem:[%s2846 + $0x198] sm:$0xff] %v2949
                  %v2951 = vld [vmem:[%s2845 + $0x1a0] sm:$0xff]
                  %2952 = vst [vmem:[%s2846 + $0x1a0] sm:$0xff] %v2951
                  %v2953 = vld [vmem:[%s2845 + $0x1a8] sm:$0xff]
                  %2954 = vst [vmem:[%s2846 + $0x1a8] sm:$0xff] %v2953
                  %v2955 = vld [vmem:[%s2845 + $0x1b0] sm:$0xff]
                  %2956 = vst [vmem:[%s2846 + $0x1b0] sm:$0xff] %v2955
                  %v2957 = vld [vmem:[%s2845 + $0x1b8] sm:$0xff]
                  %2958 = vst [vmem:[%s2846 + $0x1b8] sm:$0xff] %v2957
                  %v2959 = vld [vmem:[%s2845 + $0x1c0] sm:$0xff]
                  %2960 = vst [vmem:[%s2846 + $0x1c0] sm:$0xff] %v2959
                  %v2961 = vld [vmem:[%s2845 + $0x1c8] sm:$0xff]
                  %2962 = vst [vmem:[%s2846 + $0x1c8] sm:$0xff] %v2961
                  %v2963 = vld [vmem:[%s2845 + $0x1d0] sm:$0xff]
                  %2964 = vst [vmem:[%s2846 + $0x1d0] sm:$0xff] %v2963
                  %v2965 = vld [vmem:[%s2845 + $0x1d8] sm:$0xff]
                  %2966 = vst [vmem:[%s2846 + $0x1d8] sm:$0xff] %v2965
                  %v2967 = vld [vmem:[%s2845 + $0x1e0] sm:$0xff]
                  %2968 = vst [vmem:[%s2846 + $0x1e0] sm:$0xff] %v2967
                  %v2969 = vld [vmem:[%s2845 + $0x1e8] sm:$0xff]
                  %2970 = vst [vmem:[%s2846 + $0x1e8] sm:$0xff] %v2969
                  %v2971 = vld [vmem:[%s2845 + $0x1f0] sm:$0xff]
                  %2972 = vst [vmem:[%s2846 + $0x1f0] sm:$0xff] %v2971
                  %v2973 = vld [vmem:[%s2845 + $0x1f8] sm:$0xff]
                  %2974 = vst [vmem:[%s2846 + $0x1f8] sm:$0xff] %v2973
                  %s2975 = sadd.s32 1, %s2844
                  %p2976 = scmp.ge.s32.totalorder %s2975, %s2835
                  %s2977 = scalar_select %p2976, 0, %s2975
                  %s2978 = smul.u32 %s2977, 512
                  %s2979 = smul.u32 %s2977, 512
                  %s2980 = scalar_lea.vmem %s2793, %s2978 [#allocation6]
                  %s2981 = scalar_lea.vmem %s2806, %s2979
                $region96: #{tpu_custom_call.1} parent=90 // loop_footer
                  %s2841 = sadd.s32 %s2839, 1
                $region97: #{tpu_custom_call.1} parent=90 // loop_footer_branch
                  %2838 = sbr.rel target = $region93
                $region98: #{tpu_custom_call.1} parent=90 // loop_exit
                  _
                %s2982 = sshrl.u32 %s2834, 6
                %s2983 = sand.u32 %s2834, 63
                %s2984 = smul.u32 %s2982, 64
                %s2985 = smul.u32 128, %s2984
                %s2986 = sshra.s32 %s2985, 4
                %s2987 = scalar_lea.vmem %s2793, %s2986 [#allocation6]
                %s2988 = smul.u32 128, %s2984
                %s2989 = sshra.s32 %s2988, 4
                %s2990 = scalar_lea.vmem %s2806, %s2989
                // While loop
                $region99: #{tpu_custom_call.1} parent=90 // loop_pre_header
                  _
                $region100: #{tpu_custom_call.1} parent=90 // loop_header
                  %s2994 = sphi 0, %s2996
                  %p2995 = scmp.ge.s32.totalorder %s2994, %s2983
                  %s2999 = sphi 0, %s3006
                  %s3000 = sphi %s2987, %s3009
                  %s3001 = sphi %s2990, %s3010
                $region101: #{tpu_custom_call.1} parent=90 // loop_header_branch
                  %2998 = sbr.rel (%p2995) target = $region105
                $region102: #{tpu_custom_call.1} parent=90 // loop_body
                  %v3002 = vld [vmem:[%s3000] sm:$0xff]
                  %3003 = vst [vmem:[%s3001] sm:$0xff] %v3002
                  %s3004 = sadd.s32 1, %s2999
                  %p3005 = scmp.ge.s32.totalorder %s3004, %s2983
                  %s3006 = scalar_select %p3005, 0, %s3004
                  %s3007 = smul.u32 %s3006, 8
                  %s3008 = smul.u32 %s3006, 8
                  %s3009 = scalar_lea.vmem %s2987, %s3007 [#allocation6]
                  %s3010 = scalar_lea.vmem %s2990, %s3008
                $region103: #{tpu_custom_call.1} parent=90 // loop_footer
                  %s2996 = sadd.s32 %s2994, 1
                $region104: #{tpu_custom_call.1} parent=90 // loop_footer_branch
                  %2993 = sbr.rel target = $region100
                $region105: #{tpu_custom_call.1} parent=90 // loop_exit
                  _
              $region91: #{tpu_custom_call.1} parent=75 // pred_fallthru
                _
              %p3011 = pneg %p2830
              // Predicated region
              $region106: #{tpu_custom_call.1} parent=75 // pred_check
                _
              $region107: #{tpu_custom_call.1} parent=75 // pred_check_branch
                %3013 = sbr.rel (%p2830) target = $region109
              $region108: #{tpu_custom_call.1} parent=75 // pred_region
                %s3014 = sand.u32 %s2807, 7
                %s3015 = ssub.s32 %s2807, %s3014
                %s3016 = scalar_lea.vmem %s2793, %s3015 [#allocation6]
                %s3017 = ssub.s32 %s2807, %s3014
                %s3018 = scalar_lea.vmem %s2806, %s3017
                %s3019 = sshrl.u32 %s2807, 3
                %s3020 = sshrl.u32 %s3019, 6
                // While loop
                $region110: #{tpu_custom_call.1} parent=108 // loop_pre_header
                  _
                $region111: #{tpu_custom_call.1} parent=108 // loop_header
                  %s3024 = sphi 0, %s3026
                  %p3025 = scmp.ge.s32.totalorder %s3024, %s3020
                  %s3029 = sphi 0, %s3162
                  %s3030 = sphi %s2793, %s3165
                  %s3031 = sphi %s2806, %s3166
                $region112: #{tpu_custom_call.1} parent=108 // loop_header_branch
                  %3028 = sbr.rel (%p3025) target = $region116
                $region113: #{tpu_custom_call.1} parent=108 // loop_body
                  %v3032 = vld [vmem:[%s3030] sm:$0xff]
                  %3033 = vst [vmem:[%s3031] sm:$0xff] %v3032
                  %v3034 = vld [vmem:[%s3030 + $0x8] sm:$0xff]
                  %3035 = vst [vmem:[%s3031 + $0x8] sm:$0xff] %v3034
                  %v3036 = vld [vmem:[%s3030 + $0x10] sm:$0xff]
                  %3037 = vst [vmem:[%s3031 + $0x10] sm:$0xff] %v3036
                  %v3038 = vld [vmem:[%s3030 + $0x18] sm:$0xff]
                  %3039 = vst [vmem:[%s3031 + $0x18] sm:$0xff] %v3038
                  %v3040 = vld [vmem:[%s3030 + $0x20] sm:$0xff]
                  %3041 = vst [vmem:[%s3031 + $0x20] sm:$0xff] %v3040
                  %v3042 = vld [vmem:[%s3030 + $0x28] sm:$0xff]
                  %3043 = vst [vmem:[%s3031 + $0x28] sm:$0xff] %v3042
                  %v3044 = vld [vmem:[%s3030 + $0x30] sm:$0xff]
                  %3045 = vst [vmem:[%s3031 + $0x30] sm:$0xff] %v3044
                  %v3046 = vld [vmem:[%s3030 + $0x38] sm:$0xff]
                  %3047 = vst [vmem:[%s3031 + $0x38] sm:$0xff] %v3046
                  %v3048 = vld [vmem:[%s3030 + $0x40] sm:$0xff]
                  %3049 = vst [vmem:[%s3031 + $0x40] sm:$0xff] %v3048
                  %v3050 = vld [vmem:[%s3030 + $0x48] sm:$0xff]
                  %3051 = vst [vmem:[%s3031 + $0x48] sm:$0xff] %v3050
                  %v3052 = vld [vmem:[%s3030 + $0x50] sm:$0xff]
                  %3053 = vst [vmem:[%s3031 + $0x50] sm:$0xff] %v3052
                  %v3054 = vld [vmem:[%s3030 + $0x58] sm:$0xff]
                  %3055 = vst [vmem:[%s3031 + $0x58] sm:$0xff] %v3054
                  %v3056 = vld [vmem:[%s3030 + $0x60] sm:$0xff]
                  %3057 = vst [vmem:[%s3031 + $0x60] sm:$0xff] %v3056
                  %v3058 = vld [vmem:[%s3030 + $0x68] sm:$0xff]
                  %3059 = vst [vmem:[%s3031 + $0x68] sm:$0xff] %v3058
                  %v3060 = vld [vmem:[%s3030 + $0x70] sm:$0xff]
                  %3061 = vst [vmem:[%s3031 + $0x70] sm:$0xff] %v3060
                  %v3062 = vld [vmem:[%s3030 + $0x78] sm:$0xff]
                  %3063 = vst [vmem:[%s3031 + $0x78] sm:$0xff] %v3062
                  %v3064 = vld [vmem:[%s3030 + $0x80] sm:$0xff]
                  %3065 = vst [vmem:[%s3031 + $0x80] sm:$0xff] %v3064
                  %v3066 = vld [vmem:[%s3030 + $0x88] sm:$0xff]
                  %3067 = vst [vmem:[%s3031 + $0x88] sm:$0xff] %v3066
                  %v3068 = vld [vmem:[%s3030 + $0x90] sm:$0xff]
                  %3069 = vst [vmem:[%s3031 + $0x90] sm:$0xff] %v3068
                  %v3070 = vld [vmem:[%s3030 + $0x98] sm:$0xff]
                  %3071 = vst [vmem:[%s3031 + $0x98] sm:$0xff] %v3070
                  %v3072 = vld [vmem:[%s3030 + $0xa0] sm:$0xff]
                  %3073 = vst [vmem:[%s3031 + $0xa0] sm:$0xff] %v3072
                  %v3074 = vld [vmem:[%s3030 + $0xa8] sm:$0xff]
                  %3075 = vst [vmem:[%s3031 + $0xa8] sm:$0xff] %v3074
                  %v3076 = vld [vmem:[%s3030 + $0xb0] sm:$0xff]
                  %3077 = vst [vmem:[%s3031 + $0xb0] sm:$0xff] %v3076
                  %v3078 = vld [vmem:[%s3030 + $0xb8] sm:$0xff]
                  %3079 = vst [vmem:[%s3031 + $0xb8] sm:$0xff] %v3078
                  %v3080 = vld [vmem:[%s3030 + $0xc0] sm:$0xff]
                  %3081 = vst [vmem:[%s3031 + $0xc0] sm:$0xff] %v3080
                  %v3082 = vld [vmem:[%s3030 + $0xc8] sm:$0xff]
                  %3083 = vst [vmem:[%s3031 + $0xc8] sm:$0xff] %v3082
                  %v3084 = vld [vmem:[%s3030 + $0xd0] sm:$0xff]
                  %3085 = vst [vmem:[%s3031 + $0xd0] sm:$0xff] %v3084
                  %v3086 = vld [vmem:[%s3030 + $0xd8] sm:$0xff]
                  %3087 = vst [vmem:[%s3031 + $0xd8] sm:$0xff] %v3086
                  %v3088 = vld [vmem:[%s3030 + $0xe0] sm:$0xff]
                  %3089 = vst [vmem:[%s3031 + $0xe0] sm:$0xff] %v3088
                  %v3090 = vld [vmem:[%s3030 + $0xe8] sm:$0xff]
                  %3091 = vst [vmem:[%s3031 + $0xe8] sm:$0xff] %v3090
                  %v3092 = vld [vmem:[%s3030 + $0xf0] sm:$0xff]
                  %3093 = vst [vmem:[%s3031 + $0xf0] sm:$0xff] %v3092
                  %v3094 = vld [vmem:[%s3030 + $0xf8] sm:$0xff]
                  %3095 = vst [vmem:[%s3031 + $0xf8] sm:$0xff] %v3094
                  %v3096 = vld [vmem:[%s3030 + $0x100] sm:$0xff]
                  %3097 = vst [vmem:[%s3031 + $0x100] sm:$0xff] %v3096
                  %v3098 = vld [vmem:[%s3030 + $0x108] sm:$0xff]
                  %3099 = vst [vmem:[%s3031 + $0x108] sm:$0xff] %v3098
                  %v3100 = vld [vmem:[%s3030 + $0x110] sm:$0xff]
                  %3101 = vst [vmem:[%s3031 + $0x110] sm:$0xff] %v3100
                  %v3102 = vld [vmem:[%s3030 + $0x118] sm:$0xff]
                  %3103 = vst [vmem:[%s3031 + $0x118] sm:$0xff] %v3102
                  %v3104 = vld [vmem:[%s3030 + $0x120] sm:$0xff]
                  %3105 = vst [vmem:[%s3031 + $0x120] sm:$0xff] %v3104
                  %v3106 = vld [vmem:[%s3030 + $0x128] sm:$0xff]
                  %3107 = vst [vmem:[%s3031 + $0x128] sm:$0xff] %v3106
                  %v3108 = vld [vmem:[%s3030 + $0x130] sm:$0xff]
                  %3109 = vst [vmem:[%s3031 + $0x130] sm:$0xff] %v3108
                  %v3110 = vld [vmem:[%s3030 + $0x138] sm:$0xff]
                  %3111 = vst [vmem:[%s3031 + $0x138] sm:$0xff] %v3110
                  %v3112 = vld [vmem:[%s3030 + $0x140] sm:$0xff]
                  %3113 = vst [vmem:[%s3031 + $0x140] sm:$0xff] %v3112
                  %v3114 = vld [vmem:[%s3030 + $0x148] sm:$0xff]
                  %3115 = vst [vmem:[%s3031 + $0x148] sm:$0xff] %v3114
                  %v3116 = vld [vmem:[%s3030 + $0x150] sm:$0xff]
                  %3117 = vst [vmem:[%s3031 + $0x150] sm:$0xff] %v3116
                  %v3118 = vld [vmem:[%s3030 + $0x158] sm:$0xff]
                  %3119 = vst [vmem:[%s3031 + $0x158] sm:$0xff] %v3118
                  %v3120 = vld [vmem:[%s3030 + $0x160] sm:$0xff]
                  %3121 = vst [vmem:[%s3031 + $0x160] sm:$0xff] %v3120
                  %v3122 = vld [vmem:[%s3030 + $0x168] sm:$0xff]
                  %3123 = vst [vmem:[%s3031 + $0x168] sm:$0xff] %v3122
                  %v3124 = vld [vmem:[%s3030 + $0x170] sm:$0xff]
                  %3125 = vst [vmem:[%s3031 + $0x170] sm:$0xff] %v3124
                  %v3126 = vld [vmem:[%s3030 + $0x178] sm:$0xff]
                  %3127 = vst [vmem:[%s3031 + $0x178] sm:$0xff] %v3126
                  %v3128 = vld [vmem:[%s3030 + $0x180] sm:$0xff]
                  %3129 = vst [vmem:[%s3031 + $0x180] sm:$0xff] %v3128
                  %v3130 = vld [vmem:[%s3030 + $0x188] sm:$0xff]
                  %3131 = vst [vmem:[%s3031 + $0x188] sm:$0xff] %v3130
                  %v3132 = vld [vmem:[%s3030 + $0x190] sm:$0xff]
                  %3133 = vst [vmem:[%s3031 + $0x190] sm:$0xff] %v3132
                  %v3134 = vld [vmem:[%s3030 + $0x198] sm:$0xff]
                  %3135 = vst [vmem:[%s3031 + $0x198] sm:$0xff] %v3134
                  %v3136 = vld [vmem:[%s3030 + $0x1a0] sm:$0xff]
                  %3137 = vst [vmem:[%s3031 + $0x1a0] sm:$0xff] %v3136
                  %v3138 = vld [vmem:[%s3030 + $0x1a8] sm:$0xff]
                  %3139 = vst [vmem:[%s3031 + $0x1a8] sm:$0xff] %v3138
                  %v3140 = vld [vmem:[%s3030 + $0x1b0] sm:$0xff]
                  %3141 = vst [vmem:[%s3031 + $0x1b0] sm:$0xff] %v3140
                  %v3142 = vld [vmem:[%s3030 + $0x1b8] sm:$0xff]
                  %3143 = vst [vmem:[%s3031 + $0x1b8] sm:$0xff] %v3142
                  %v3144 = vld [vmem:[%s3030 + $0x1c0] sm:$0xff]
                  %3145 = vst [vmem:[%s3031 + $0x1c0] sm:$0xff] %v3144
                  %v3146 = vld [vmem:[%s3030 + $0x1c8] sm:$0xff]
                  %3147 = vst [vmem:[%s3031 + $0x1c8] sm:$0xff] %v3146
                  %v3148 = vld [vmem:[%s3030 + $0x1d0] sm:$0xff]
                  %3149 = vst [vmem:[%s3031 + $0x1d0] sm:$0xff] %v3148
                  %v3150 = vld [vmem:[%s3030 + $0x1d8] sm:$0xff]
                  %3151 = vst [vmem:[%s3031 + $0x1d8] sm:$0xff] %v3150
                  %v3152 = vld [vmem:[%s3030 + $0x1e0] sm:$0xff]
                  %3153 = vst [vmem:[%s3031 + $0x1e0] sm:$0xff] %v3152
                  %v3154 = vld [vmem:[%s3030 + $0x1e8] sm:$0xff]
                  %3155 = vst [vmem:[%s3031 + $0x1e8] sm:$0xff] %v3154
                  %v3156 = vld [vmem:[%s3030 + $0x1f0] sm:$0xff]
                  %3157 = vst [vmem:[%s3031 + $0x1f0] sm:$0xff] %v3156
                  %v3158 = vld [vmem:[%s3030 + $0x1f8] sm:$0xff]
                  %3159 = vst [vmem:[%s3031 + $0x1f8] sm:$0xff] %v3158
                  %s3160 = sadd.s32 1, %s3029
                  %p3161 = scmp.ge.s32.totalorder %s3160, %s3020
                  %s3162 = scalar_select %p3161, 0, %s3160
                  %s3163 = smul.u32 %s3162, 512
                  %s3164 = smul.u32 %s3162, 512
                  %s3165 = scalar_lea.vmem %s2793, %s3163 [#allocation6]
                  %s3166 = scalar_lea.vmem %s2806, %s3164
                $region114: #{tpu_custom_call.1} parent=108 // loop_footer
                  %s3026 = sadd.s32 %s3024, 1
                $region115: #{tpu_custom_call.1} parent=108 // loop_footer_branch
                  %3023 = sbr.rel target = $region111
                $region116: #{tpu_custom_call.1} parent=108 // loop_exit
                  _
                %s3167 = sshrl.u32 %s3019, 6
                %s3168 = sand.u32 %s3019, 63
                %s3169 = smul.u32 %s3167, 64
                %s3170 = smul.u32 128, %s3169
                %s3171 = sshra.s32 %s3170, 4
                %s3172 = scalar_lea.vmem %s2793, %s3171 [#allocation6]
                %s3173 = smul.u32 128, %s3169
                %s3174 = sshra.s32 %s3173, 4
                %s3175 = scalar_lea.vmem %s2806, %s3174
                // While loop
                $region117: #{tpu_custom_call.1} parent=108 // loop_pre_header
                  _
                $region118: #{tpu_custom_call.1} parent=108 // loop_header
                  %s3179 = sphi 0, %s3181
                  %p3180 = scmp.ge.s32.totalorder %s3179, %s3168
                  %s3184 = sphi 0, %s3191
                  %s3185 = sphi %s3172, %s3194
                  %s3186 = sphi %s3175, %s3195
                $region119: #{tpu_custom_call.1} parent=108 // loop_header_branch
                  %3183 = sbr.rel (%p3180) target = $region123
                $region120: #{tpu_custom_call.1} parent=108 // loop_body
                  %v3187 = vld [vmem:[%s3185] sm:$0xff]
                  %3188 = vst [vmem:[%s3186] sm:$0xff] %v3187
                  %s3189 = sadd.s32 1, %s3184
                  %p3190 = scmp.ge.s32.totalorder %s3189, %s3168
                  %s3191 = scalar_select %p3190, 0, %s3189
                  %s3192 = smul.u32 %s3191, 8
                  %s3193 = smul.u32 %s3191, 8
                  %s3194 = scalar_lea.vmem %s3172, %s3192 [#allocation6]
                  %s3195 = scalar_lea.vmem %s3175, %s3193
                $region121: #{tpu_custom_call.1} parent=108 // loop_footer
                  %s3181 = sadd.s32 %s3179, 1
                $region122: #{tpu_custom_call.1} parent=108 // loop_footer_branch
                  %3178 = sbr.rel target = $region118
                $region123: #{tpu_custom_call.1} parent=108 // loop_exit
                  _
                %s3196 = sshllo.u32 0, %s3014
                loop: start=0, step=1, limit=1
                $region124: #{tpu_custom_call.1} parent=108 // loop_pre_header
                  _
                $region125: #{tpu_custom_call.1} parent=108 // loop_header
                  %s3198 = sphi 0, %s3202
                  %p3199 = scmp.ge.s32.totalorder %s3198, 1
                  %s3203 = sphi %s3016, %s3016
                  %s3204 = sphi %s3018, %s3018
                $region126: #{tpu_custom_call.1} parent=108 // loop_header_branch
                  %3201 = sbr.rel (%p3199) target = $region130
                $region127: #{tpu_custom_call.1} parent=108 // loop_body
                  %v3205 = vld [vmem:[%s3203] sm:%s3196]
                  %3206 = vst [vmem:[%s3204] sm:%s3196] %v3205
                $region128: #{tpu_custom_call.1} parent=108 // loop_footer
                  %s3202 = sadd.s32 1, %s3198
                $region129: #{tpu_custom_call.1} parent=108 // loop_footer_branch
                  %3197 = sbr.rel target = $region125
                $region130: #{tpu_custom_call.1} parent=108 // loop_exit
                  _
              $region109: #{tpu_custom_call.1} parent=75 // pred_fallthru
                _
            $region76: #{tpu_custom_call.1} parent=71 // pred_fallthru
              _
            // Predicated region
            $region77: #{tpu_custom_call.1} parent=71 // pred_check
              %p2815 = pneg %p2811
            $region78: #{tpu_custom_call.1} parent=71 // pred_check_branch
              %2817 = sbr.rel (%p2815) target = $region80
            $region79: #{tpu_custom_call.1} parent=71 // pred_region
              %s2818 = sshllo.u32 0, %s2807
              loop: start=0, step=1, limit=1
              $region81: #{tpu_custom_call.1} parent=79 // loop_pre_header
                _
              $region82: #{tpu_custom_call.1} parent=79 // loop_header
                %s2820 = sphi 0, %s2824
                %p2821 = scmp.ge.s32.totalorder %s2820, 1
                %s2825 = sphi %s2793, %s2793
                %s2826 = sphi %s2806, %s2806
              $region83: #{tpu_custom_call.1} parent=79 // loop_header_branch
                %2823 = sbr.rel (%p2821) target = $region87
              $region84: #{tpu_custom_call.1} parent=79 // loop_body
                %v2827 = vld [vmem:[%s2825] sm:%s2818]
                %2828 = vst [vmem:[%s2826] sm:%s2818] %v2827
              $region85: #{tpu_custom_call.1} parent=79 // loop_footer
                %s2824 = sadd.s32 1, %s2820
              $region86: #{tpu_custom_call.1} parent=79 // loop_footer_branch
                %2819 = sbr.rel target = $region82
              $region87: #{tpu_custom_call.1} parent=79 // loop_exit
                _
            $region80: #{tpu_custom_call.1} parent=71 // pred_fallthru
              _
          $region72: #{tpu_custom_call.1} parent=67 // pred_fallthru
            _
          %3207 = vnop
        $region68: #{tpu_custom_call.1} parent=55 // pred_fallthru
          _
      $region56: #{tpu_custom_call.1} parent=5 // pred_fallthru
        _
      %p3208 = scmp.le.s32.totalorder 2, %s19
      // Predicated region
      $region131: #{tpu_custom_call.1} parent=5 // pred_check
        %p3209 = pneg %p3208
      $region132: #{tpu_custom_call.1} parent=5 // pred_check_branch
        %3211 = sbr.rel (%p3209) target = $region134
      $region133: #{tpu_custom_call.1} parent=5 // pred_region
        %s3212 = ssub.s32 %s19, 2
        // Predicated region
        $region135: #{tpu_custom_call.1} parent=133 // pred_check
          %p3213 = pneg %p263
        $region136: #{tpu_custom_call.1} parent=133 // pred_check_branch
          %3215 = sbr.rel (%p3213) target = $region138
        $region137: #{tpu_custom_call.1} parent=133 // pred_region
          %s3216 = sand.u32 %s248, 1
          %s3217 = sand.u32 %s248, 1
          %s3218 = smul.addr %s3217, 12
          %s3219 = scalar_lea.vmem [#allocation6], %s3218
        $region138: #{tpu_custom_call.1} parent=133 // pred_fallthru
          _
      $region134: #{tpu_custom_call.1} parent=5 // pred_fallthru
        _
    $region6: #{tpu_custom_call.1} parent=1 // loop_footer
      %s23 = sadd.s32 1, %s19
    $region7: #{tpu_custom_call.1} parent=1 // loop_footer_branch
      %18 = sbr.rel target = $region3
    $region8: #{tpu_custom_call.1} parent=1 // loop_exit
      _
    %3220 = vsyncpa [#allocation3], 1
    %s3221 = scalar_lea.sflag [#allocation3], 1
    %3222 = vsyncpa %s3221, 1
    %3223 = vsyncpa [#allocation5], 1

</llo_original>
